<compile_context>
chip_gen: v5e
topology: v5e:2x2
jax: 0.10.0
libtpu: 0.0.40
codegen_flags: <defaults>
</compile_context>

<pallas_src>
import functools

import jax
import jax.numpy as jnp
from jax.experimental import pallas as pl
from jax.experimental.pallas import tpu as pltpu


# ----------------------------------------------------------------------------
# Pallas kernel: fused (X @ W + bias) with optional ReLU, N-tiled.
# ----------------------------------------------------------------------------
def _matmul_bias_kernel(x_ref, w_ref, b_ref, o_ref, *, apply_relu):
    acc = jnp.dot(x_ref[...], w_ref[...], preferred_element_type=jnp.float32)
    acc = acc + b_ref[...]            # (1, tn) bias broadcasts over rows
    if apply_relu:
        acc = jnp.maximum(acc, 0.0)
    o_ref[...] = acc.astype(o_ref.dtype)


def matmul_bias(x, w, b, *, relu, tn=512):
    """x: (M, K), w: (K, N), b: (N,) -> (M, N) f32.  bf16 MXU, f32 accumulate.

    N is tiled into `tn`-wide lane-dense blocks (grid marked "parallel" so it
    shards across TensorCores on v7x).  K stays a single full block: the last
    / second-to-last block dims then equal the full array dims, which
    satisfies the (8,128) rule for arbitrary K (e.g. flatten = 1572).
    """
    M, K = x.shape
    K2, N = w.shape
    assert K == K2
    if N % tn != 0:                  # small / non-128-multiple N: single block
        tn = N
    grid_n = N // tn

    xb = x.astype(jnp.bfloat16)
    wb = w.astype(jnp.bfloat16)
    b2 = b.reshape(1, N).astype(jnp.float32)

    return pl.pallas_call(
        functools.partial(_matmul_bias_kernel, apply_relu=relu),
        out_shape=jax.ShapeDtypeStruct((M, N), jnp.float32),
        grid=(grid_n,),
        in_specs=[
            pl.BlockSpec((M, K), lambda j: (0, 0)),    # activations (resident)
            pl.BlockSpec((K, tn), lambda j: (0, j)),   # weight column tile
            pl.BlockSpec((1, tn), lambda j: (0, j)),   # bias column tile
        ],
        out_specs=pl.BlockSpec((M, tn), lambda j: (0, j)),
        compiler_params=pltpu.CompilerParams(
            dimension_semantics=("parallel",)),
    )(xb, wb, b2)


# ----------------------------------------------------------------------------
# Plain-JAX glue: replication padding + im2col in NLC layout (no transposes
# between conv layers).
# ----------------------------------------------------------------------------
def replication_pad_nlc(x, pad):
    # x: (B, L, C) -> (B, L + 2*pad, C), edge-replicated like nn.ReplicationPad1d
    return jnp.pad(x, ((0, 0), (pad, pad), (0, 0)), mode="edge")


def conv1d_relu_nlc(x, w_mat, b, *, kernel_size, stride):
    """Conv1d + ReLU via im2col + the Pallas matmul kernel, NLC layout.

    x:     (B, L_pad, C_in)        (already padded)
    w_mat: (K*C_in, C_out)         k-major / ci-minor rows (pre-packed)
    b:     (C_out,)
    returns (B, L_out, C_out)
    """
    B, L_pad, C_in = x.shape
    K = kernel_size
    C_out = w_mat.shape[1]
    L_out = (L_pad - K) // stride + 1
    # im2col: K shifted strided slices along L -> (B, L_out, K, C_in)
    cols = jnp.stack(
        [x[:, k:k + stride * L_out:stride, :] for k in range(K)], axis=2)
    patches = cols.reshape(B * L_out, K * C_in)       # k-major / ci-minor
    out = matmul_bias(patches, w_mat, b, relu=True)   # (B*L_out, C_out)
    return out.reshape(B, L_out, C_out)


# ----------------------------------------------------------------------------
# Deterministic synthetic parameters (shapes from the module's __init__),
# pre-packed into kernel-friendly layouts (bf16 matmul weights, fused heads).
# ----------------------------------------------------------------------------
def cnn_output_length(L):
    L1 = (L + 2 - 3) // 1 + 1       # pad(1,1) + conv(k=3, s=1)
    L2 = (L1 + 4 - 5) // 2 + 1      # pad(2,2) + conv(k=5, s=2)
    L3 = (L2 + 6 - 7) // 3 + 1      # pad(3,3) + conv(k=7, s=3)
    return L3


def init_params(in_seq_dim, out_seq_dim=1):
    key = jax.random.PRNGKey(0)
    keys = jax.random.split(key, 14)

    def uinit(k, shape, fan_in):
        bound = 1.0 / jnp.sqrt(jnp.float32(fan_in))
        return jax.random.uniform(k, shape, jnp.float32, -bound, bound)

    L3 = cnn_output_length(in_seq_dim)
    flatten = 524 * L3

    def pack_conv(w):
        # PyTorch (C_out, C_in, K) -> (K*C_in, C_out), k-major/ci-minor rows,
        # matching the NLC im2col patch ordering.  Stored bf16 for the MXU.
        return jnp.transpose(w, (2, 1, 0)).reshape(
            w.shape[2] * w.shape[1], w.shape[0]).astype(jnp.bfloat16)

    c1_w = uinit(keys[0], (32, 1, 3), 1 * 3)
    c2_w = uinit(keys[2], (128, 32, 5), 32 * 5)
    c3_w = uinit(keys[4], (524, 128, 7), 128 * 7)
    clas_w1 = uinit(keys[6], (flatten, 1024), flatten)
    reg_w1 = uinit(keys[10], (flatten, 1024), flatten)

    params = {
        "c1_wm": pack_conv(c1_w), "c1_b": uinit(keys[1], (32,), 1 * 3),
        "c2_wm": pack_conv(c2_w), "c2_b": uinit(keys[3], (128,), 32 * 5),
        "c3_wm": pack_conv(c3_w), "c3_b": uinit(keys[5], (524,), 128 * 7),
        # Fused first-layer head weights: [clas | reg] along N -> one launch.
        "head_w1": jnp.concatenate([clas_w1, reg_w1], axis=1).astype(jnp.bfloat16),
        "head_b1": jnp.concatenate([uinit(keys[7], (1024,), flatten),
                                    uinit(keys[11], (1024,), flatten)], axis=0),
        # Tiny second-layer head weights stay f32 (plain jnp matvec).
        "clas_w2": uinit(keys[8], (1024, out_seq_dim), 1024),
        "clas_b2": uinit(keys[9], (out_seq_dim,), 1024),
        "reg_w2": uinit(keys[12], (1024, out_seq_dim), 1024),
        "reg_b2": uinit(keys[13], (out_seq_dim,), 1024),
    }
    meta = {"flatten": flatten}
    return params, meta


# ----------------------------------------------------------------------------
# Forward pass (mirrors AblationMark_Ws_Mtl.forward).
# ----------------------------------------------------------------------------
def forward(params, meta, x):
    # x: (B, 1, L) NCW -> NLC (B, L, 1); conv chain stays NLC throughout.
    h = jnp.transpose(x, (0, 2, 1))

    h = replication_pad_nlc(h, 1)
    h = conv1d_relu_nlc(h, params["c1_wm"], params["c1_b"], kernel_size=3, stride=1)
    h = replication_pad_nlc(h, 2)
    h = conv1d_relu_nlc(h, params["c2_wm"], params["c2_b"], kernel_size=5, stride=2)
    h = replication_pad_nlc(h, 3)
    h = conv1d_relu_nlc(h, params["c3_wm"], params["c3_b"], kernel_size=7, stride=3)

    # Single small transpose: NLC -> NCW so the flatten matches PyTorch's
    # x.view(-1, flatten_size) ordering exactly.
    B = h.shape[0]
    flat = jnp.transpose(h, (0, 2, 1)).reshape(B, meta["flatten"])

    # Fused heads layer 1: one Pallas launch, N = 2048 (4 parallel tiles).
    hidden = matmul_bias(flat, params["head_w1"], params["head_b1"],
                         relu=True, tn=512)          # (B, 2048) f32, ReLU'd

    # Layer 2 of each head: tiny (B,1024)@(1024,out_seq) — plain jnp (launch
    # overhead of a dedicated kernel would exceed the compute).
    out_clas = hidden[:, :1024] @ params["clas_w2"] + params["clas_b2"]
    out_reg = hidden[:, 1024:] @ params["reg_w2"] + params["reg_b2"]
    return out_clas, out_reg


if __name__ == "__main__":
    in_seq_dim = 16
    out_seq_dim = 1
    batch = 2

    params, meta = init_params(in_seq_dim, out_seq_dim)

    x = jax.random.normal(jax.random.PRNGKey(0), (batch, 1, in_seq_dim),
                          dtype=jnp.float32)

    fwd = jax.jit(lambda p, xx: forward(p, meta, xx))
    out_clas, out_reg = fwd(params, x)
    jax.block_until_ready((out_clas, out_reg))

    assert out_clas.shape == (batch, out_seq_dim)
    assert out_reg.shape == (batch, out_seq_dim)
    print("KERNEL_OK")
</pallas_src>

<mosaic_0001>
module attributes {stable_mosaic.version = 11 : i64} {
  func.func @_matmul_bias_kernel(%arg0: i32, %arg1: memref<32x3xbf16, #tpu.memory_space<vmem>>, %arg2: memref<3x32xbf16, #tpu.memory_space<vmem>>, %arg3: memref<1x32xf32, #tpu.memory_space<vmem>>, %arg4: memref<32x32xf32, #tpu.memory_space<vmem>>) attributes {dimension_semantics = [#tpu.dimension_semantics<parallel>], iteration_bounds = array<i64: 1>, scalar_prefetch = 0 : i64, scratch_operands = 0 : i64, tpu.core_type = #tpu.core_type<tc>, window_params = [{pipeline_mode = #tpu.pipeline_mode<synchronous>, transform_indices = @transform_0, window_bounds = array<i64: 32, 3>}, {transform_indices = @transform_1, window_bounds = array<i64: 3, 32>}, {transform_indices = @transform_2, window_bounds = array<i64: 1, 32>}, {transform_indices = @transform_3, window_bounds = array<i64: 32, 32>}]} {
    %c0 = arith.constant 0 : index
    %c0_0 = arith.constant 0 : index
    %0 = vector.load %arg1[%c0, %c0_0] : memref<32x3xbf16, #tpu.memory_space<vmem>>, vector<32x3xbf16>
    %c0_1 = arith.constant 0 : index
    %c0_2 = arith.constant 0 : index
    %1 = vector.load %arg2[%c0_1, %c0_2] : memref<3x32xbf16, #tpu.memory_space<vmem>>, vector<3x32xbf16>
    %cst = arith.constant dense<0.000000e+00> : vector<32x32xf32>
    %2 = tpu.matmul %0, %1, %cst {dimension_numbers = #tpu.dot_dimension_numbers<[1], [0], [0], [1], [0, 0, 1, 1], [], []>} : vector<32x3xbf16>, vector<3x32xbf16>, vector<32x32xf32> -> vector<32x32xf32>
    %c0_3 = arith.constant 0 : index
    %c0_4 = arith.constant 0 : index
    %3 = vector.load %arg3[%c0_3, %c0_4] : memref<1x32xf32, #tpu.memory_space<vmem>>, vector<1x32xf32>
    %4 = vector.broadcast %3 : vector<1x32xf32> to vector<32x32xf32>
    %5 = arith.addf %2, %4 : vector<32x32xf32>
    %cst_5 = arith.constant 0.000000e+00 : f32
    %6 = vector.broadcast %cst_5 : f32 to vector<32x32xf32>
    %7 = arith.maximumf %5, %6 : vector<32x32xf32>
    %c0_6 = arith.constant 0 : index
    %c0_7 = arith.constant 0 : index
    %8 = vector.load %arg4[%c0_6, %c0_7] : memref<32x32xf32, #tpu.memory_space<vmem>>, vector<32x32xf32>
    tpu.vector_store %arg4[%c0_6, %c0_7], %7 {strides = array<i32>} : memref<32x32xf32, #tpu.memory_space<vmem>>, vector<32x32xf32>,
    return
  }
  func.func @transform_0(%arg0: i32) -> (i32, i32) {
    %c0_i32 = arith.constant 0 : i32
    %c0_i32_0 = arith.constant 0 : i32
    %c0_i32_1 = arith.constant 0 : i32
    return %c0_i32, %c0_i32_0 : i32, i32
  }
  func.func @transform_1(%arg0: i32) -> (i32, i32) {
    %c0_i32 = arith.constant 0 : i32
    %c0_i32_0 = arith.constant 0 : i32
    return %c0_i32, %arg0 : i32, i32
  }
  func.func @transform_2(%arg0: i32) -> (i32, i32) {
    %c0_i32 = arith.constant 0 : i32
    %c0_i32_0 = arith.constant 0 : i32
    return %c0_i32, %arg0 : i32, i32
  }
  func.func @transform_3(%arg0: i32) -> (i32, i32) {
    %c0_i32 = arith.constant 0 : i32
    %c0_i32_0 = arith.constant 0 : i32
    return %c0_i32, %arg0 : i32, i32
  }
}

module attributes {stable_mosaic.version = 11 : i64} {
  func.func @_matmul_bias_kernel(%arg0: i32, %arg1: memref<16x160xbf16, #tpu.memory_space<vmem>>, %arg2: memref<160x128xbf16, #tpu.memory_space<vmem>>, %arg3: memref<1x128xf32, #tpu.memory_space<vmem>>, %arg4: memref<16x128xf32, #tpu.memory_space<vmem>>) attributes {dimension_semantics = [#tpu.dimension_semantics<parallel>], iteration_bounds = array<i64: 1>, scalar_prefetch = 0 : i64, scratch_operands = 0 : i64, tpu.core_type = #tpu.core_type<tc>, window_params = [{pipeline_mode = #tpu.pipeline_mode<synchronous>, transform_indices = @transform_0, window_bounds = array<i64: 16, 160>}, {transform_indices = @transform_1, window_bounds = array<i64: 160, 128>}, {transform_indices = @transform_2, window_bounds = array<i64: 1, 128>}, {transform_indices = @transform_3, window_bounds = array<i64: 16, 128>}]} {
    %c0 = arith.constant 0 : index
    %c0_0 = arith.constant 0 : index
    %0 = vector.load %arg1[%c0, %c0_0] : memref<16x160xbf16, #tpu.memory_space<vmem>>, vector<16x160xbf16>
    %c0_1 = arith.constant 0 : index
    %c0_2 = arith.constant 0 : index
    %1 = vector.load %arg2[%c0_1, %c0_2] : memref<160x128xbf16, #tpu.memory_space<vmem>>, vector<160x128xbf16>
    %cst = arith.constant dense<0.000000e+00> : vector<16x128xf32>
    %2 = tpu.matmul %0, %1, %cst {dimension_numbers = #tpu.dot_dimension_numbers<[1], [0], [0], [1], [0, 0, 1, 1], [], []>} : vector<16x160xbf16>, vector<160x128xbf16>, vector<16x128xf32> -> vector<16x128xf32>
    %c0_3 = arith.constant 0 : index
    %c0_4 = arith.constant 0 : index
    %3 = vector.load %arg3[%c0_3, %c0_4] : memref<1x128xf32, #tpu.memory_space<vmem>>, vector<1x128xf32>
    %4 = vector.broadcast %3 : vector<1x128xf32> to vector<16x128xf32>
    %5 = arith.addf %2, %4 : vector<16x128xf32>
    %cst_5 = arith.constant 0.000000e+00 : f32
    %6 = vector.broadcast %cst_5 : f32 to vector<16x128xf32>
    %7 = arith.maximumf %5, %6 : vector<16x128xf32>
    %c0_6 = arith.constant 0 : index
    %c0_7 = arith.constant 0 : index
    %8 = vector.load %arg4[%c0_6, %c0_7] : memref<16x128xf32, #tpu.memory_space<vmem>>, vector<16x128xf32>
    tpu.vector_store %arg4[%c0_6, %c0_7], %7 {strides = array<i32>} : memref<16x128xf32, #tpu.memory_space<vmem>>, vector<16x128xf32>,
    return
  }
  func.func @transform_0(%arg0: i32) -> (i32, i32) {
    %c0_i32 = arith.constant 0 : i32
    %c0_i32_0 = arith.constant 0 : i32
    %c0_i32_1 = arith.constant 0 : i32
    return %c0_i32, %c0_i32_0 : i32, i32
  }
  func.func @transform_1(%arg0: i32) -> (i32, i32) {
    %c0_i32 = arith.constant 0 : i32
    %c0_i32_0 = arith.constant 0 : i32
    return %c0_i32, %arg0 : i32, i32
  }
  func.func @transform_2(%arg0: i32) -> (i32, i32) {
    %c0_i32 = arith.constant 0 : i32
    %c0_i32_0 = arith.constant 0 : i32
    return %c0_i32, %arg0 : i32, i32
  }
  func.func @transform_3(%arg0: i32) -> (i32, i32) {
    %c0_i32 = arith.constant 0 : i32
    %c0_i32_0 = arith.constant 0 : i32
    return %c0_i32, %arg0 : i32, i32
  }
}

module attributes {stable_mosaic.version = 11 : i64} {
  func.func @_matmul_bias_kernel(%arg0: i32, %arg1: memref<6x896xbf16, #tpu.memory_space<vmem>>, %arg2: memref<896x524xbf16, #tpu.memory_space<vmem>>, %arg3: memref<1x524xf32, #tpu.memory_space<vmem>>, %arg4: memref<6x524xf32, #tpu.memory_space<vmem>>) attributes {dimension_semantics = [#tpu.dimension_semantics<parallel>], iteration_bounds = array<i64: 1>, scalar_prefetch = 0 : i64, scratch_operands = 0 : i64, tpu.core_type = #tpu.core_type<tc>, window_params = [{pipeline_mode = #tpu.pipeline_mode<synchronous>, transform_indices = @transform_0, window_bounds = array<i64: 6, 896>}, {transform_indices = @transform_1, window_bounds = array<i64: 896, 524>}, {transform_indices = @transform_2, window_bounds = array<i64: 1, 524>}, {transform_indices = @transform_3, window_bounds = array<i64: 6, 524>}]} {
    %c0 = arith.constant 0 : index
    %c0_0 = arith.constant 0 : index
    %0 = vector.load %arg1[%c0, %c0_0] : memref<6x896xbf16, #tpu.memory_space<vmem>>, vector<6x896xbf16>
    %c0_1 = arith.constant 0 : index
    %c0_2 = arith.constant 0 : index
    %1 = vector.load %arg2[%c0_1, %c0_2] : memref<896x524xbf16, #tpu.memory_space<vmem>>, vector<896x524xbf16>
    %cst = arith.constant dense<0.000000e+00> : vector<6x524xf32>
    %2 = tpu.matmul %0, %1, %cst {dimension_numbers = #tpu.dot_dimension_numbers<[1], [0], [0], [1], [0, 0, 1, 1], [], []>} : vector<6x896xbf16>, vector<896x524xbf16>, vector<6x524xf32> -> vector<6x524xf32>
    %c0_3 = arith.constant 0 : index
    %c0_4 = arith.constant 0 : index
    %3 = vector.load %arg3[%c0_3, %c0_4] : memref<1x524xf32, #tpu.memory_space<vmem>>, vector<1x524xf32>
    %4 = vector.broadcast %3 : vector<1x524xf32> to vector<6x524xf32>
    %5 = arith.addf %2, %4 : vector<6x524xf32>
    %cst_5 = arith.constant 0.000000e+00 : f32
    %6 = vector.broadcast %cst_5 : f32 to vector<6x524xf32>
    %7 = arith.maximumf %5, %6 : vector<6x524xf32>
    %c0_6 = arith.constant 0 : index
    %c0_7 = arith.constant 0 : index
    %8 = vector.load %arg4[%c0_6, %c0_7] : memref<6x524xf32, #tpu.memory_space<vmem>>, vector<6x524xf32>
    tpu.vector_store %arg4[%c0_6, %c0_7], %7 {strides = array<i32>} : memref<6x524xf32, #tpu.memory_space<vmem>>, vector<6x524xf32>,
    return
  }
  func.func @transform_0(%arg0: i32) -> (i32, i32) {
    %c0_i32 = arith.constant 0 : i32
    %c0_i32_0 = arith.constant 0 : i32
    %c0_i32_1 = arith.constant 0 : i32
    return %c0_i32, %c0_i32_0 : i32, i32
  }
  func.func @transform_1(%arg0: i32) -> (i32, i32) {
    %c0_i32 = arith.constant 0 : i32
    %c0_i32_0 = arith.constant 0 : i32
    return %c0_i32, %arg0 : i32, i32
  }
  func.func @transform_2(%arg0: i32) -> (i32, i32) {
    %c0_i32 = arith.constant 0 : i32
    %c0_i32_0 = arith.constant 0 : i32
    return %c0_i32, %arg0 : i32, i32
  }
  func.func @transform_3(%arg0: i32) -> (i32, i32) {
    %c0_i32 = arith.constant 0 : i32
    %c0_i32_0 = arith.constant 0 : i32
    return %c0_i32, %arg0 : i32, i32
  }
}

module attributes {stable_mosaic.version = 11 : i64} {
  func.func @_matmul_bias_kernel(%arg0: i32, %arg1: memref<2x1572xbf16, #tpu.memory_space<vmem>>, %arg2: memref<1572x512xbf16, #tpu.memory_space<vmem>>, %arg3: memref<1x512xf32, #tpu.memory_space<vmem>>, %arg4: memref<2x512xf32, #tpu.memory_space<vmem>>) attributes {dimension_semantics = [#tpu.dimension_semantics<parallel>], iteration_bounds = array<i64: 4>, scalar_prefetch = 0 : i64, scratch_operands = 0 : i64, tpu.core_type = #tpu.core_type<tc>, window_params = [{pipeline_mode = #tpu.pipeline_mode<synchronous>, transform_indices = @transform_0, window_bounds = array<i64: 2, 1572>}, {transform_indices = @transform_1, window_bounds = array<i64: 1572, 512>}, {transform_indices = @transform_2, window_bounds = array<i64: 1, 512>}, {transform_indices = @transform_3, window_bounds = array<i64: 2, 512>}]} {
    %c0 = arith.constant 0 : index
    %c0_0 = arith.constant 0 : index
    %0 = vector.load %arg1[%c0, %c0_0] : memref<2x1572xbf16, #tpu.memory_space<vmem>>, vector<2x1572xbf16>
    %c0_1 = arith.constant 0 : index
    %c0_2 = arith.constant 0 : index
    %1 = vector.load %arg2[%c0_1, %c0_2] : memref<1572x512xbf16, #tpu.memory_space<vmem>>, vector<1572x512xbf16>
    %cst = arith.constant dense<0.000000e+00> : vector<2x512xf32>
    %2 = tpu.matmul %0, %1, %cst {dimension_numbers = #tpu.dot_dimension_numbers<[1], [0], [0], [1], [0, 0, 1, 1], [], []>} : vector<2x1572xbf16>, vector<1572x512xbf16>, vector<2x512xf32> -> vector<2x512xf32>
    %c0_3 = arith.constant 0 : index
    %c0_4 = arith.constant 0 : index
    %3 = vector.load %arg3[%c0_3, %c0_4] : memref<1x512xf32, #tpu.memory_space<vmem>>, vector<1x512xf32>
    %4 = vector.broadcast %3 : vector<1x512xf32> to vector<2x512xf32>
    %5 = arith.addf %2, %4 : vector<2x512xf32>
    %cst_5 = arith.constant 0.000000e+00 : f32
    %6 = vector.broadcast %cst_5 : f32 to vector<2x512xf32>
    %7 = arith.maximumf %5, %6 : vector<2x512xf32>
    %c0_6 = arith.constant 0 : index
    %c0_7 = arith.constant 0 : index
    %8 = vector.load %arg4[%c0_6, %c0_7] : memref<2x512xf32, #tpu.memory_space<vmem>>, vector<2x512xf32>
    tpu.vector_store %arg4[%c0_6, %c0_7], %7 {strides = array<i32>} : memref<2x512xf32, #tpu.memory_space<vmem>>, vector<2x512xf32>,
    return
  }
  func.func @transform_0(%arg0: i32) -> (i32, i32) {
    %c0_i32 = arith.constant 0 : i32
    %c0_i32_0 = arith.constant 0 : i32
    %c0_i32_1 = arith.constant 0 : i32
    return %c0_i32, %c0_i32_0 : i32, i32
  }
  func.func @transform_1(%arg0: i32) -> (i32, i32) {
    %c0_i32 = arith.constant 0 : i32
    %c0_i32_0 = arith.constant 0 : i32
    return %c0_i32, %arg0 : i32, i32
  }
  func.func @transform_2(%arg0: i32) -> (i32, i32) {
    %c0_i32 = arith.constant 0 : i32
    %c0_i32_0 = arith.constant 0 : i32
    return %c0_i32, %arg0 : i32, i32
  }
  func.func @transform_3(%arg0: i32) -> (i32, i32) {
    %c0_i32 = arith.constant 0 : i32
    %c0_i32_0 = arith.constant 0 : i32
    return %c0_i32, %arg0 : i32, i32
  }
}

</mosaic_0001>

<llo_original>
// kernel: _lambda_.4
$region0: #{_lambda_.4}
  #allocation0 [shape = 'u32[]', space=smem, size = 0x4, offset = 0x4, fixed_abs, tag = 'smem constant byte address 0x4 - core index']
  #allocation1 [shape = 'u32[72,128]{1,0:T(1,128)}', space=vmem, size = 0x9000, scoped, tag = 'internal scratch']
  %s0 = inlined_call_operand.vmem [shape: bf16[32,3], index: 0, kind: input, shape index: {}]
  %s1 = inlined_call_operand.hbm [shape: bf16[3,32], index: 1, kind: input, shape index: {}]
  %s2 = inlined_call_operand.hbm [shape: f32[1,32], index: 2, kind: input, shape index: {}]
  %s3 = inlined_call_operand.vmem [shape: f32[32,32], index: 3, kind: output, shape index: {}]
  %s4 = sld [smem:[#allocation0]]
  $region30: #{_lambda_.4} parent=0
    _
  %s6 = ssub.s32 1, %s4
  %s7 = scalar_select 0, %s6, %s4
  $region1: #{_lambda_.4} parent=0
    #allocation2 [shape = 'u8[1024]{0}', space=vmem, size = 0x400, scoped, tag = 'input window, operand 1, single buffered']
    #allocation3 [shape = 's32[1]{0}', space=sflag, size = 0x4, scoped, tag = 'scoped memory for _lambda_.4']
    #allocation4 [shape = 'u8[512]{0}', space=vmem, size = 0x400, scoped, tag = 'input window, operand 2, single buffered']
    #allocation5 [shape = 's32[1]{0}', space=sflag, size = 0x4, scoped, tag = 'scoped memory for _lambda_.4']
    %8 = vsyncpa [#allocation3], 0
    %9 = vsyncpa [#allocation5], 0
    // Predicated region
    $region2: #{_lambda_.4} parent=1 // pred_check
      _
    $region3: #{_lambda_.4} parent=1 // pred_check_branch
      %11 = sbr.rel (0) target = $region5
    $region4: #{_lambda_.4} parent=1 // pred_region
      _
    $region5: #{_lambda_.4} parent=1 // pred_fallthru
      _
    // Predicated region
    $region6: #{_lambda_.4} parent=1 // pred_check
      _
    $region7: #{_lambda_.4} parent=1 // pred_check_branch
      %13 = sbr.rel (0) target = $region9
    $region8: #{_lambda_.4} parent=1 // pred_region
      %15 = vsyncadd [#allocation3], 0
      %s17 = sshll.u32 %s1, 4
      %s18 = int_to_ptr.hbm [resolvable:$true] %s17
      %s19 = sshll.u32 [#allocation2], 4
      %s20 = int_to_ptr.vmem [resolvable:$true] %s19
      %22 = dma.hbm_to_vmem [thread:$0]  %s18, 32, %s20, [#allocation3]
    $region9: #{_lambda_.4} parent=1 // pred_fallthru
      _
    // Predicated region
    $region10: #{_lambda_.4} parent=1 // pred_check
      _
    $region11: #{_lambda_.4} parent=1 // pred_check_branch
      %24 = sbr.rel (0) target = $region13
    $region12: #{_lambda_.4} parent=1 // pred_region
      %26 = vsyncadd [#allocation5], 0
      %s28 = sshll.u32 %s2, 4
      %s29 = int_to_ptr.hbm [resolvable:$true] %s28
      %s30 = sshll.u32 [#allocation4], 4
      %s31 = int_to_ptr.vmem [resolvable:$true] %s30
      %33 = dma.hbm_to_vmem [thread:$0]  %s29, 16, %s31, [#allocation5]
    $region13: #{_lambda_.4} parent=1 // pred_fallthru
      _
    // Predicated region
    $region14: #{_lambda_.4} parent=1 // pred_check
      _
    $region15: #{_lambda_.4} parent=1 // pred_check_branch
      %35 = sbr.rel (0) target = $region17
    $region16: #{_lambda_.4} parent=1 // pred_region
      %37 = dma.done [#allocation3], 32
    $region17: #{_lambda_.4} parent=1 // pred_fallthru
      _
    // Predicated region
    $region18: #{_lambda_.4} parent=1 // pred_check
      _
    $region19: #{_lambda_.4} parent=1 // pred_check_branch
      %39 = sbr.rel (0) target = $region21
    $region20: #{_lambda_.4} parent=1 // pred_region
      %41 = dma.done [#allocation5], 16
    $region21: #{_lambda_.4} parent=1 // pred_fallthru
      _
    %v43 = vld [vmem:[%s0] sm:$0xf]
    %v44 = vld [vmem:[%s0 + $0x4] sm:$0xf]
    %v45 = vld [vmem:[%s0 + $0x8] sm:$0xf]
    %v46 = vld [vmem:[%s0 + $0xc] sm:$0xf]
    %v47 = vld [vmem:[#allocation2] sm:$0x3]
    %v48 = vld [vmem:[#allocation4] sm:$0x1]
    %v50 = vperm.slane %v48, 0
    %v56 = vunpack.c.l.b16 %v43
    %v57 = vunpack.c.l.b16 %v44
    %v58 = vunpack.c.l.b16 %v45
    %v59 = vunpack.c.l.b16 %v46
    %v60 = vpack.c.b16 %v57, %v56
    %v61 = vpack.c.b16 %v59, %v58
    %vm62 = vcmask 23552
    %v64 = vsel %vm62, %v60, 0
    %v67 = vsel %vm62, %v61, 0
    %vm69 = vcmask 1040384
    %vm70 = vcmask 1041408
    %v71 = vsel %vm69, 4294967295, 65535
    %v72 = vsel %vm70, %v71, 0
    %v74 = vand.u32 %v47, %v72
    %76 = vmatpush.bf16.msra.mxu0 0
    %77 = vmatpush.bf16.msra.mxu0 0
    %78 = vmatpush.bf16.msra.mxu0 0
    %79 = vmatpush.bf16.msra.mxu0 0
    %80 = vmatpush.bf16.msra.mxu0 0
    %81 = vmatpush.bf16.msra.mxu0 0
    %82 = vmatpush.bf16.msra.mxu0 0
    %83 = vmatpush.bf16.msra.mxu0 %v74
    %84 = vmatmul.bf16.gmra.mxu0 %v64
    %v85 = vpop.f32.mrf.mxu0
    %v86 = vadd.f32 %v50, %v85
    %v87 = vpop.f32.mrf.mxu0
    %v88 = vadd.f32 %v50, %v87
    %89 = vmatmul.bf16.gmra.mxu0 %v67
    %v90 = vpop.f32.mrf.mxu0
    %v91 = vadd.f32 %v50, %v90
    %v92 = vpop.f32.mrf.mxu0
    %v93 = vadd.f32 %v50, %v92
    %94 = vdwg.mxu0
    %v95 = vmax.f32 %v86, 0.0
    %v96 = vmax.f32 %v88, 0.0
    %v97 = vmax.f32 %v91, 0.0
    %v98 = vmax.f32 %v93, 0.0
    %vm99 = vcmask 261120
    %100 = vst.msk [vmem:[%s3] sm:$0xff] %vm99, %v95
    %101 = vst.msk [vmem:[%s3 + $0x8] sm:$0xff] %vm99, %v96
    %102 = vst.msk [vmem:[%s3 + $0x10] sm:$0xff] %vm99, %v97
    %103 = vst.msk [vmem:[%s3 + $0x18] sm:$0xff] %vm99, %v98
    // Predicated region
    $region22: #{_lambda_.4} parent=1 // pred_check
      _
    $region23: #{_lambda_.4} parent=1 // pred_check_branch
      %105 = sbr.rel (0) target = $region25
    $region24: #{_lambda_.4} parent=1 // pred_region
      _
    $region25: #{_lambda_.4} parent=1 // pred_fallthru
      _
    // Predicated region
    $region26: #{_lambda_.4} parent=1 // pred_check
      _
    $region27: #{_lambda_.4} parent=1 // pred_check_branch
      %107 = sbr.rel (0) target = $region29
    $region28: #{_lambda_.4} parent=1 // pred_region
      _
    $region29: #{_lambda_.4} parent=1 // pred_fallthru
      _
    %108 = vsyncpa [#allocation3], 1
    %109 = vsyncpa [#allocation5], 1

// kernel: _lambda_.5
$region0: #{_lambda_.5}
  #allocation0 [shape = 'u32[]', space=smem, size = 0x4, offset = 0x4, fixed_abs, tag = 'smem constant byte address 0x4 - core index']
  #allocation1 [shape = 'u32[72,128]{1,0:T(1,128)}', space=vmem, size = 0x9000, scoped, tag = 'internal scratch']
  %s0 = inlined_call_operand.vmem [shape: bf16[16,160], index: 0, kind: input, shape index: {}]
  %s1 = inlined_call_operand.hbm [shape: bf16[160,128], index: 1, kind: input, shape index: {}]
  %s2 = inlined_call_operand.hbm [shape: f32[1,128], index: 2, kind: input, shape index: {}]
  %s3 = inlined_call_operand.vmem [shape: f32[16,128], index: 3, kind: output, shape index: {}]
  %s4 = sld [smem:[#allocation0]]
  $region30: #{_lambda_.5} parent=0
    _
  %s6 = ssub.s32 1, %s4
  %s7 = scalar_select 0, %s6, %s4
  $region1: #{_lambda_.5} parent=0
    #allocation2 [shape = 'u8[40960]{0}', space=vmem, size = 0xa000, scoped, tag = 'input window, operand 1, single buffered']
    #allocation3 [shape = 's32[1]{0}', space=sflag, size = 0x4, scoped, tag = 'scoped memory for _lambda_.5']
    #allocation4 [shape = 'u8[512]{0}', space=vmem, size = 0x400, scoped, tag = 'input window, operand 2, single buffered']
    #allocation5 [shape = 's32[1]{0}', space=sflag, size = 0x4, scoped, tag = 'scoped memory for _lambda_.5']
    %8 = vsyncpa [#allocation3], 0
    %9 = vsyncpa [#allocation5], 0
    // Predicated region
    $region2: #{_lambda_.5} parent=1 // pred_check
      _
    $region3: #{_lambda_.5} parent=1 // pred_check_branch
      %11 = sbr.rel (0) target = $region5
    $region4: #{_lambda_.5} parent=1 // pred_region
      _
    $region5: #{_lambda_.5} parent=1 // pred_fallthru
      _
    // Predicated region
    $region6: #{_lambda_.5} parent=1 // pred_check
      _
    $region7: #{_lambda_.5} parent=1 // pred_check_branch
      %13 = sbr.rel (0) target = $region9
    $region8: #{_lambda_.5} parent=1 // pred_region
      %15 = vsyncadd [#allocation3], 0
      %s16 = sshll.u32 %s1, 4
      %s17 = int_to_ptr.hbm [resolvable:$true] %s16
      %s18 = sshll.u32 [#allocation2], 4
      %s19 = int_to_ptr.vmem [resolvable:$true] %s18
      %24 = dma.hbm_to_vmem [thread:$0]  %s17, 1280, %s19, [#allocation3], 64, 64, 4
    $region9: #{_lambda_.5} parent=1 // pred_fallthru
      _
    // Predicated region
    $region10: #{_lambda_.5} parent=1 // pred_check
      _
    $region11: #{_lambda_.5} parent=1 // pred_check_branch
      %26 = sbr.rel (0) target = $region13
    $region12: #{_lambda_.5} parent=1 // pred_region
      %28 = vsyncadd [#allocation5], 0
      %s30 = sshll.u32 %s2, 4
      %s31 = int_to_ptr.hbm [resolvable:$true] %s30
      %s32 = sshll.u32 [#allocation4], 4
      %s33 = int_to_ptr.vmem [resolvable:$true] %s32
      %35 = dma.hbm_to_vmem [thread:$0]  %s31, 16, %s33, [#allocation5]
    $region13: #{_lambda_.5} parent=1 // pred_fallthru
      _
    // Predicated region
    $region14: #{_lambda_.5} parent=1 // pred_check
      _
    $region15: #{_lambda_.5} parent=1 // pred_check_branch
      %37 = sbr.rel (0) target = $region17
    $region16: #{_lambda_.5} parent=1 // pred_region
      %39 = dma.done [#allocation3], 1280
    $region17: #{_lambda_.5} parent=1 // pred_fallthru
      _
    // Predicated region
    $region18: #{_lambda_.5} parent=1 // pred_check
      _
    $region19: #{_lambda_.5} parent=1 // pred_check_branch
      %41 = sbr.rel (0) target = $region21
    $region20: #{_lambda_.5} parent=1 // pred_region
      %43 = dma.done [#allocation5], 16
    $region21: #{_lambda_.5} parent=1 // pred_fallthru
      _
    %v45 = vld [vmem:[%s0] sm:$0xff]
    %v46 = vld [vmem:[%s0 + $0x8] sm:$0xff]
    %v47 = vld [vmem:[#allocation2] sm:$0xf]
    %v48 = vld [vmem:[#allocation2 + $0x4] sm:$0xf]
    %v49 = vld [vmem:[#allocation2 + $0x8] sm:$0xf]
    %v50 = vld [vmem:[#allocation2 + $0xc] sm:$0xf]
    %v51 = vld [vmem:[#allocation2 + $0x10] sm:$0xf]
    %v52 = vld [vmem:[#allocation2 + $0x14] sm:$0xf]
    %v53 = vld [vmem:[#allocation2 + $0x18] sm:$0xf]
    %v54 = vld [vmem:[#allocation2 + $0x1c] sm:$0xf]
    %v55 = vld [vmem:[#allocation2 + $0x20] sm:$0xf]
    %v56 = vld [vmem:[#allocation2 + $0x24] sm:$0xf]
    %v57 = vld [vmem:[#allocation2 + $0x28] sm:$0xf]
    %v58 = vld [vmem:[#allocation2 + $0x2c] sm:$0xf]
    %v59 = vld [vmem:[#allocation2 + $0x30] sm:$0xf]
    %v60 = vld [vmem:[#allocation2 + $0x34] sm:$0xf]
    %v61 = vld [vmem:[#allocation2 + $0x38] sm:$0xf]
    %v62 = vld [vmem:[#allocation2 + $0x3c] sm:$0xf]
    %v63 = vld [vmem:[#allocation2 + $0x40] sm:$0xf]
    %v64 = vld [vmem:[#allocation2 + $0x44] sm:$0xf]
    %v65 = vld [vmem:[#allocation2 + $0x48] sm:$0xf]
    %v66 = vld [vmem:[#allocation2 + $0x4c] sm:$0xf]
    %v67 = vld [vmem:[#allocation4] sm:$0x1]
    %v69 = vperm.slane %v67, 0
    %v73 = vunpack.c.l.b16 %v45
    %v74 = vunpack.c.h.b16 %v45
    %v75 = vunpack.c.l.b16 %v46
    %v76 = vunpack.c.h.b16 %v46
    %v77 = vpack.c.b16 %v75, %v73
    %v78 = vpack.c.b16 %v76, %v74
    %v100 = vunpack.c.l.b16 %v47
    %v101 = vunpack.c.l.b16 %v48
    %v102 = vunpack.c.l.b16 %v49
    %v103 = vunpack.c.l.b16 %v50
    %v104 = vunpack.c.l.b16 %v51
    %v105 = vunpack.c.l.b16 %v52
    %v106 = vunpack.c.l.b16 %v53
    %v107 = vunpack.c.l.b16 %v54
    %v108 = vunpack.c.l.b16 %v55
    %v109 = vunpack.c.l.b16 %v56
    %v110 = vunpack.c.l.b16 %v57
    %v111 = vunpack.c.l.b16 %v58
    %v112 = vunpack.c.l.b16 %v59
    %v113 = vunpack.c.l.b16 %v60
    %v114 = vunpack.c.l.b16 %v61
    %v115 = vunpack.c.l.b16 %v62
    %v116 = vunpack.c.l.b16 %v63
    %v117 = vunpack.c.l.b16 %v64
    %v118 = vunpack.c.l.b16 %v65
    %v119 = vunpack.c.l.b16 %v66
    %v120 = vpack.c.b16 %v101, %v100
    %v121 = vpack.c.b16 %v103, %v102
    %v122 = vpack.c.b16 %v105, %v104
    %v123 = vpack.c.b16 %v107, %v106
    %v124 = vpack.c.b16 %v109, %v108
    %v125 = vpack.c.b16 %v111, %v110
    %v126 = vpack.c.b16 %v113, %v112
    %v127 = vpack.c.b16 %v115, %v114
    %v128 = vpack.c.b16 %v117, %v116
    %v129 = vpack.c.b16 %v119, %v118
    %vm140 = vcmask 261120
    %v142 = vsel %vm140, %v78, 0
    %144 = vmatpush.bf16.msra.mxu0 %v127
    %145 = vmatpush.bf16.msra.mxu0 %v126
    %146 = vmatpush.bf16.msra.mxu0 %v125
    %147 = vmatpush.bf16.msra.mxu0 %v124
    %148 = vmatpush.bf16.msra.mxu0 %v123
    %149 = vmatpush.bf16.msra.mxu0 %v122
    %150 = vmatpush.bf16.msra.mxu0 %v121
    %151 = vmatpush.bf16.msra.mxu0 %v120
    %152 = vmatmul.bf16.gmra.mxu0 %v77
    %v153 = vpop.f32.mrf.mxu0
    %v154 = vadd.f32 %v69, %v153
    %v155 = vpop.f32.mrf.mxu0
    %v156 = vadd.f32 %v69, %v155
    %157 = vdwg.mxu0
    %158 = vmatpush.bf16.msra.mxu0 0
    %159 = vmatpush.bf16.msra.mxu0 0
    %160 = vmatpush.bf16.msra.mxu0 0
    %161 = vmatpush.bf16.msra.mxu0 0
    %162 = vmatpush.bf16.msra.mxu0 0
    %163 = vmatpush.bf16.msra.mxu0 0
    %164 = vmatpush.bf16.msra.mxu0 %v129
    %165 = vmatpush.bf16.msra.mxu0 %v128
    %166 = vmatmul.bf16.gmra.mxu0 %v142
    %v167 = vpop.f32.mrf.mxu0
    %v168 = vadd.f32 %v154, %v167
    %v169 = vpop.f32.mrf.mxu0
    %v170 = vadd.f32 %v156, %v169
    %171 = vdwg.mxu0
    %v172 = vmax.f32 %v168, 0.0
    %v173 = vmax.f32 %v170, 0.0
    %174 = vst [vmem:[%s3] sm:$0xff] %v172
    %175 = vst [vmem:[%s3 + $0x8] sm:$0xff] %v173
    // Predicated region
    $region22: #{_lambda_.5} parent=1 // pred_check
      _
    $region23: #{_lambda_.5} parent=1 // pred_check_branch
      %177 = sbr.rel (0) target = $region25
    $region24: #{_lambda_.5} parent=1 // pred_region
      _
    $region25: #{_lambda_.5} parent=1 // pred_fallthru
      _
    // Predicated region
    $region26: #{_lambda_.5} parent=1 // pred_check
      _
    $region27: #{_lambda_.5} parent=1 // pred_check_branch
      %179 = sbr.rel (0) target = $region29
    $region28: #{_lambda_.5} parent=1 // pred_region
      _
    $region29: #{_lambda_.5} parent=1 // pred_fallthru
      _
    %180 = vsyncpa [#allocation3], 1
    %181 = vsyncpa [#allocation5], 1

// kernel: _lambda_.6
$region0: #{_lambda_.6}
  #allocation0 [shape = 'u32[]', space=smem, size = 0x4, offset = 0x4, fixed_abs, tag = 'smem constant byte address 0x4 - core index']
  #allocation1 [shape = 'u32[72,128]{1,0:T(1,128)}', space=vmem, size = 0x9000, scoped, tag = 'internal scratch']
  %s0 = inlined_call_operand.vmem [shape: bf16[6,896], index: 0, kind: input, shape index: {}]
  %s1 = inlined_call_operand.vmem [shape: bf16[896,524], index: 1, kind: input, shape index: {}]
  %s2 = inlined_call_operand.vmem [shape: f32[1,524], index: 2, kind: input, shape index: {}]
  %s3 = inlined_call_operand.vmem [shape: f32[6,524], index: 3, kind: output, shape index: {}]
  %s4 = sld [smem:[#allocation0]]
  $region22: #{_lambda_.6} parent=0
    _
  %s6 = ssub.s32 1, %s4
  %s7 = scalar_select 0, %s6, %s4
  // Predicated region
  $region2: #{_lambda_.6} parent=0 // pred_check
    _
  $region3: #{_lambda_.6} parent=0 // pred_check_branch
    %9 = sbr.rel (0) target = $region5
  $region4: #{_lambda_.6} parent=0 // pred_region
    _
  $region5: #{_lambda_.6} parent=0 // pred_fallthru
    _
  // Predicated region
  $region6: #{_lambda_.6} parent=0 // pred_check
    _
  $region7: #{_lambda_.6} parent=0 // pred_check_branch
    %11 = sbr.rel (0) target = $region9
  $region8: #{_lambda_.6} parent=0 // pred_region
    _
  $region9: #{_lambda_.6} parent=0 // pred_fallthru
    _
  // Predicated region
  $region10: #{_lambda_.6} parent=0 // pred_check
    _
  $region11: #{_lambda_.6} parent=0 // pred_check_branch
    %13 = sbr.rel (0) target = $region13
  $region12: #{_lambda_.6} parent=0 // pred_region
    _
  $region13: #{_lambda_.6} parent=0 // pred_fallthru
    _
  %v14 = vld [vmem:[%s0] sm:$0x77]
  %v15 = vld [vmem:[%s0 + $0x8] sm:$0x77]
  %v16 = vld [vmem:[%s0 + $0x10] sm:$0x77]
  %v17 = vld [vmem:[%s0 + $0x18] sm:$0x7]
  %v18 = vld [vmem:[%s1] sm:$0xff]
  %v19 = vld [vmem:[%s1 + $0x8] sm:$0xff]
  %v20 = vld [vmem:[%s1 + $0x10] sm:$0xf]
  %v21 = vld [vmem:[%s1 + $0x14] sm:$0xff]
  %v22 = vld [vmem:[%s1 + $0x1c] sm:$0xff]
  %v23 = vld [vmem:[%s1 + $0x24] sm:$0xf]
  %v24 = vld [vmem:[%s1 + $0x28] sm:$0xff]
  %v25 = vld [vmem:[%s1 + $0x30] sm:$0xff]
  %v26 = vld [vmem:[%s1 + $0x38] sm:$0xf]
  %v27 = vld [vmem:[%s1 + $0x3c] sm:$0xff]
  %v28 = vld [vmem:[%s1 + $0x44] sm:$0xff]
  %v29 = vld [vmem:[%s1 + $0x4c] sm:$0xf]
  %v30 = vld [vmem:[%s1 + $0x50] sm:$0xff]
  %v31 = vld [vmem:[%s1 + $0x58] sm:$0xff]
  %v32 = vld [vmem:[%s1 + $0x60] sm:$0xf]
  %v33 = vld [vmem:[%s1 + $0x64] sm:$0xff]
  %v34 = vld [vmem:[%s1 + $0x6c] sm:$0xff]
  %v35 = vld [vmem:[%s1 + $0x74] sm:$0xf]
  %v36 = vld [vmem:[%s1 + $0x78] sm:$0xff]
  %v37 = vld [vmem:[%s1 + $0x80] sm:$0xff]
  %v38 = vld [vmem:[%s1 + $0x88] sm:$0xf]
  %v39 = vld [vmem:[%s1 + $0x8c] sm:$0xff]
  %v40 = vld [vmem:[%s1 + $0x94] sm:$0xff]
  %v41 = vld [vmem:[%s1 + $0x9c] sm:$0xf]
  %v42 = vld [vmem:[%s1 + $0xa0] sm:$0xff]
  %v43 = vld [vmem:[%s1 + $0xa8] sm:$0xff]
  %v44 = vld [vmem:[%s1 + $0xb0] sm:$0xf]
  %v45 = vld [vmem:[%s1 + $0xb4] sm:$0xff]
  %v46 = vld [vmem:[%s1 + $0xbc] sm:$0xff]
  %v47 = vld [vmem:[%s1 + $0xc4] sm:$0xf]
  %v48 = vld [vmem:[%s1 + $0xc8] sm:$0xff]
  %v49 = vld [vmem:[%s1 + $0xd0] sm:$0xff]
  %v50 = vld [vmem:[%s1 + $0xd8] sm:$0xf]
  %v51 = vld [vmem:[%s1 + $0xdc] sm:$0xff]
  %v52 = vld [vmem:[%s1 + $0xe4] sm:$0xff]
  %v53 = vld [vmem:[%s1 + $0xec] sm:$0xf]
  %v54 = vld [vmem:[%s1 + $0xf0] sm:$0xff]
  %v55 = vld [vmem:[%s1 + $0xf8] sm:$0xff]
  %v56 = vld [vmem:[%s1 + $0x100] sm:$0xf]
  %v57 = vld [vmem:[%s1 + $0x104] sm:$0xff]
  %v58 = vld [vmem:[%s1 + $0x10c] sm:$0xff]
  %v59 = vld [vmem:[%s1 + $0x114] sm:$0xf]
  %v60 = vld [vmem:[%s1 + $0x118] sm:$0xff]
  %v61 = vld [vmem:[%s1 + $0x120] sm:$0xff]
  %v62 = vld [vmem:[%s1 + $0x128] sm:$0xf]
  %v63 = vld [vmem:[%s1 + $0x12c] sm:$0xff]
  %v64 = vld [vmem:[%s1 + $0x134] sm:$0xff]
  %v65 = vld [vmem:[%s1 + $0x13c] sm:$0xf]
  %v66 = vld [vmem:[%s1 + $0x140] sm:$0xff]
  %v67 = vld [vmem:[%s1 + $0x148] sm:$0xff]
  %v68 = vld [vmem:[%s1 + $0x150] sm:$0xf]
  %v69 = vld [vmem:[%s1 + $0x154] sm:$0xff]
  %v70 = vld [vmem:[%s1 + $0x15c] sm:$0xff]
  %v71 = vld [vmem:[%s1 + $0x164] sm:$0xf]
  %v72 = vld [vmem:[%s1 + $0x168] sm:$0xff]
  %v73 = vld [vmem:[%s1 + $0x170] sm:$0xff]
  %v74 = vld [vmem:[%s1 + $0x178] sm:$0xf]
  %v75 = vld [vmem:[%s1 + $0x17c] sm:$0xff]
  %v76 = vld [vmem:[%s1 + $0x184] sm:$0xff]
  %v77 = vld [vmem:[%s1 + $0x18c] sm:$0xf]
  %v78 = vld [vmem:[%s1 + $0x190] sm:$0xff]
  %v79 = vld [vmem:[%s1 + $0x198] sm:$0xff]
  %v80 = vld [vmem:[%s1 + $0x1a0] sm:$0xf]
  %v81 = vld [vmem:[%s1 + $0x1a4] sm:$0xff]
  %v82 = vld [vmem:[%s1 + $0x1ac] sm:$0xff]
  %v83 = vld [vmem:[%s1 + $0x1b4] sm:$0xf]
  %v84 = vld [vmem:[%s1 + $0x1b8] sm:$0xff]
  %v85 = vld [vmem:[%s1 + $0x1c0] sm:$0xff]
  %v86 = vld [vmem:[%s1 + $0x1c8] sm:$0xf]
  %v87 = vld [vmem:[%s1 + $0x1cc] sm:$0xff]
  %v88 = vld [vmem:[%s1 + $0x1d4] sm:$0xff]
  %v89 = vld [vmem:[%s1 + $0x1dc] sm:$0xf]
  %v90 = vld [vmem:[%s1 + $0x1e0] sm:$0xff]
  %v91 = vld [vmem:[%s1 + $0x1e8] sm:$0xff]
  %v92 = vld [vmem:[%s1 + $0x1f0] sm:$0xf]
  %v93 = vld [vmem:[%s1 + $0x1f4] sm:$0xff]
  %v94 = vld [vmem:[%s1 + $0x1fc] sm:$0xff]
  %v95 = vld [vmem:[%s1 + $0x204] sm:$0xf]
  %v96 = vld [vmem:[%s1 + $0x208] sm:$0xff]
  %v97 = vld [vmem:[%s1 + $0x210] sm:$0xff]
  %v98 = vld [vmem:[%s1 + $0x218] sm:$0xf]
  %v99 = vld [vmem:[%s1 + $0x21c] sm:$0xff]
  %v100 = vld [vmem:[%s1 + $0x224] sm:$0xff]
  %v101 = vld [vmem:[%s1 + $0x22c] sm:$0xf]
  %v102 = vld [vmem:[%s1 + $0x230] sm:$0xff]
  %v103 = vld [vmem:[%s1 + $0x238] sm:$0xff]
  %v104 = vld [vmem:[%s1 + $0x240] sm:$0xf]
  %v105 = vld [vmem:[%s1 + $0x244] sm:$0xff]
  %v106 = vld [vmem:[%s1 + $0x24c] sm:$0xff]
  %v107 = vld [vmem:[%s1 + $0x254] sm:$0xf]
  %v108 = vld [vmem:[%s1 + $0x258] sm:$0xff]
  %v109 = vld [vmem:[%s1 + $0x260] sm:$0xff]
  %v110 = vld [vmem:[%s1 + $0x268] sm:$0xf]
  %v111 = vld [vmem:[%s1 + $0x26c] sm:$0xff]
  %v112 = vld [vmem:[%s1 + $0x274] sm:$0xff]
  %v113 = vld [vmem:[%s1 + $0x27c] sm:$0xf]
  %v114 = vld [vmem:[%s1 + $0x280] sm:$0xff]
  %v115 = vld [vmem:[%s1 + $0x288] sm:$0xff]
  %v116 = vld [vmem:[%s1 + $0x290] sm:$0xf]
  %v117 = vld [vmem:[%s1 + $0x294] sm:$0xff]
  %v118 = vld [vmem:[%s1 + $0x29c] sm:$0xff]
  %v119 = vld [vmem:[%s1 + $0x2a4] sm:$0xf]
  %v120 = vld [vmem:[%s1 + $0x2a8] sm:$0xff]
  %v121 = vld [vmem:[%s1 + $0x2b0] sm:$0xff]
  %v122 = vld [vmem:[%s1 + $0x2b8] sm:$0xf]
  %v123 = vld [vmem:[%s1 + $0x2bc] sm:$0xff]
  %v124 = vld [vmem:[%s1 + $0x2c4] sm:$0xff]
  %v125 = vld [vmem:[%s1 + $0x2cc] sm:$0xf]
  %v126 = vld [vmem:[%s1 + $0x2d0] sm:$0xff]
  %v127 = vld [vmem:[%s1 + $0x2d8] sm:$0xff]
  %v128 = vld [vmem:[%s1 + $0x2e0] sm:$0xf]
  %v129 = vld [vmem:[%s1 + $0x2e4] sm:$0xff]
  %v130 = vld [vmem:[%s1 + $0x2ec] sm:$0xff]
  %v131 = vld [vmem:[%s1 + $0x2f4] sm:$0xf]
  %v132 = vld [vmem:[%s1 + $0x2f8] sm:$0xff]
  %v133 = vld [vmem:[%s1 + $0x300] sm:$0xff]
  %v134 = vld [vmem:[%s1 + $0x308] sm:$0xf]
  %v135 = vld [vmem:[%s1 + $0x30c] sm:$0xff]
  %v136 = vld [vmem:[%s1 + $0x314] sm:$0xff]
  %v137 = vld [vmem:[%s1 + $0x31c] sm:$0xf]
  %v138 = vld [vmem:[%s1 + $0x320] sm:$0xff]
  %v139 = vld [vmem:[%s1 + $0x328] sm:$0xff]
  %v140 = vld [vmem:[%s1 + $0x330] sm:$0xf]
  %v141 = vld [vmem:[%s1 + $0x334] sm:$0xff]
  %v142 = vld [vmem:[%s1 + $0x33c] sm:$0xff]
  %v143 = vld [vmem:[%s1 + $0x344] sm:$0xf]
  %v144 = vld [vmem:[%s1 + $0x348] sm:$0xff]
  %v145 = vld [vmem:[%s1 + $0x350] sm:$0xff]
  %v146 = vld [vmem:[%s1 + $0x358] sm:$0xf]
  %v147 = vld [vmem:[%s1 + $0x35c] sm:$0xff]
  %v148 = vld [vmem:[%s1 + $0x364] sm:$0xff]
  %v149 = vld [vmem:[%s1 + $0x36c] sm:$0xf]
  %v150 = vld [vmem:[%s1 + $0x370] sm:$0xff]
  %v151 = vld [vmem:[%s1 + $0x378] sm:$0xff]
  %v152 = vld [vmem:[%s1 + $0x380] sm:$0xf]
  %v153 = vld [vmem:[%s1 + $0x384] sm:$0xff]
  %v154 = vld [vmem:[%s1 + $0x38c] sm:$0xff]
  %v155 = vld [vmem:[%s1 + $0x394] sm:$0xf]
  %v156 = vld [vmem:[%s1 + $0x398] sm:$0xff]
  %v157 = vld [vmem:[%s1 + $0x3a0] sm:$0xff]
  %v158 = vld [vmem:[%s1 + $0x3a8] sm:$0xf]
  %v159 = vld [vmem:[%s1 + $0x3ac] sm:$0xff]
  %v160 = vld [vmem:[%s1 + $0x3b4] sm:$0xff]
  %v161 = vld [vmem:[%s1 + $0x3bc] sm:$0xf]
  %v162 = vld [vmem:[%s1 + $0x3c0] sm:$0xff]
  %v163 = vld [vmem:[%s1 + $0x3c8] sm:$0xff]
  %v164 = vld [vmem:[%s1 + $0x3d0] sm:$0xf]
  %v165 = vld [vmem:[%s1 + $0x3d4] sm:$0xff]
  %v166 = vld [vmem:[%s1 + $0x3dc] sm:$0xff]
  %v167 = vld [vmem:[%s1 + $0x3e4] sm:$0xf]
  %v168 = vld [vmem:[%s1 + $0x3e8] sm:$0xff]
  %v169 = vld [vmem:[%s1 + $0x3f0] sm:$0xff]
  %v170 = vld [vmem:[%s1 + $0x3f8] sm:$0xf]
  %v171 = vld [vmem:[%s1 + $0x3fc] sm:$0xff]
  %v172 = vld [vmem:[%s1 + $0x404] sm:$0xff]
  %v173 = vld [vmem:[%s1 + $0x40c] sm:$0xf]
  %v174 = vld [vmem:[%s1 + $0x410] sm:$0xff]
  %v175 = vld [vmem:[%s1 + $0x418] sm:$0xff]
  %v176 = vld [vmem:[%s1 + $0x420] sm:$0xf]
  %v177 = vld [vmem:[%s1 + $0x424] sm:$0xff]
  %v178 = vld [vmem:[%s1 + $0x42c] sm:$0xff]
  %v179 = vld [vmem:[%s1 + $0x434] sm:$0xf]
  %v180 = vld [vmem:[%s1 + $0x438] sm:$0xff]
  %v181 = vld [vmem:[%s1 + $0x440] sm:$0xff]
  %v182 = vld [vmem:[%s1 + $0x448] sm:$0xf]
  %v183 = vld [vmem:[%s1 + $0x44c] sm:$0xff]
  %v184 = vld [vmem:[%s1 + $0x454] sm:$0xff]
  %v185 = vld [vmem:[%s1 + $0x45c] sm:$0xf]
  %v186 = vld [vmem:[%s1 + $0x460] sm:$0xff]
  %v187 = vld [vmem:[%s1 + $0x468] sm:$0xff]
  %v188 = vld [vmem:[%s1 + $0x470] sm:$0xf]
  %v189 = vld [vmem:[%s1 + $0x474] sm:$0xff]
  %v190 = vld [vmem:[%s1 + $0x47c] sm:$0xff]
  %v191 = vld [vmem:[%s1 + $0x484] sm:$0xf]
  %v192 = vld [vmem:[%s1 + $0x488] sm:$0xff]
  %v193 = vld [vmem:[%s1 + $0x490] sm:$0xff]
  %v194 = vld [vmem:[%s1 + $0x498] sm:$0xf]
  %v195 = vld [vmem:[%s1 + $0x49c] sm:$0xff]
  %v196 = vld [vmem:[%s1 + $0x4a4] sm:$0xff]
  %v197 = vld [vmem:[%s1 + $0x4ac] sm:$0xf]
  %v198 = vld [vmem:[%s1 + $0x4b0] sm:$0xff]
  %v199 = vld [vmem:[%s1 + $0x4b8] sm:$0xff]
  %v200 = vld [vmem:[%s1 + $0x4c0] sm:$0xf]
  %v201 = vld [vmem:[%s1 + $0x4c4] sm:$0xff]
  %v202 = vld [vmem:[%s1 + $0x4cc] sm:$0xff]
  %v203 = vld [vmem:[%s1 + $0x4d4] sm:$0xf]
  %v204 = vld [vmem:[%s1 + $0x4d8] sm:$0xff]
  %v205 = vld [vmem:[%s1 + $0x4e0] sm:$0xff]
  %v206 = vld [vmem:[%s1 + $0x4e8] sm:$0xf]
  %v207 = vld [vmem:[%s1 + $0x4ec] sm:$0xff]
  %v208 = vld [vmem:[%s1 + $0x4f4] sm:$0xff]
  %v209 = vld [vmem:[%s1 + $0x4fc] sm:$0xf]
  %v210 = vld [vmem:[%s1 + $0x500] sm:$0xff]
  %v211 = vld [vmem:[%s1 + $0x508] sm:$0xff]
  %v212 = vld [vmem:[%s1 + $0x510] sm:$0xf]
  %v213 = vld [vmem:[%s1 + $0x514] sm:$0xff]
  %v214 = vld [vmem:[%s1 + $0x51c] sm:$0xff]
  %v215 = vld [vmem:[%s1 + $0x524] sm:$0xf]
  %v216 = vld [vmem:[%s1 + $0x528] sm:$0xff]
  %v217 = vld [vmem:[%s1 + $0x530] sm:$0xff]
  %v218 = vld [vmem:[%s1 + $0x538] sm:$0xf]
  %v219 = vld [vmem:[%s1 + $0x53c] sm:$0xff]
  %v220 = vld [vmem:[%s1 + $0x544] sm:$0xff]
  %v221 = vld [vmem:[%s1 + $0x54c] sm:$0xf]
  %v222 = vld [vmem:[%s1 + $0x550] sm:$0xff]
  %v223 = vld [vmem:[%s1 + $0x558] sm:$0xff]
  %v224 = vld [vmem:[%s1 + $0x560] sm:$0xf]
  %v225 = vld [vmem:[%s1 + $0x564] sm:$0xff]
  %v226 = vld [vmem:[%s1 + $0x56c] sm:$0xff]
  %v227 = vld [vmem:[%s1 + $0x574] sm:$0xf]
  %v228 = vld [vmem:[%s1 + $0x578] sm:$0xff]
  %v229 = vld [vmem:[%s1 + $0x580] sm:$0xff]
  %v230 = vld [vmem:[%s1 + $0x588] sm:$0xf]
  %v231 = vld [vmem:[%s1 + $0x58c] sm:$0xff]
  %v232 = vld [vmem:[%s1 + $0x594] sm:$0xff]
  %v233 = vld [vmem:[%s1 + $0x59c] sm:$0xf]
  %v234 = vld [vmem:[%s1 + $0x5a0] sm:$0xff]
  %v235 = vld [vmem:[%s1 + $0x5a8] sm:$0xff]
  %v236 = vld [vmem:[%s1 + $0x5b0] sm:$0xf]
  %v237 = vld [vmem:[%s1 + $0x5b4] sm:$0xff]
  %v238 = vld [vmem:[%s1 + $0x5bc] sm:$0xff]
  %v239 = vld [vmem:[%s1 + $0x5c4] sm:$0xf]
  %v240 = vld [vmem:[%s1 + $0x5c8] sm:$0xff]
  %v241 = vld [vmem:[%s1 + $0x5d0] sm:$0xff]
  %v242 = vld [vmem:[%s1 + $0x5d8] sm:$0xf]
  %v243 = vld [vmem:[%s1 + $0x5dc] sm:$0xff]
  %v244 = vld [vmem:[%s1 + $0x5e4] sm:$0xff]
  %v245 = vld [vmem:[%s1 + $0x5ec] sm:$0xf]
  %v246 = vld [vmem:[%s1 + $0x5f0] sm:$0xff]
  %v247 = vld [vmem:[%s1 + $0x5f8] sm:$0xff]
  %v248 = vld [vmem:[%s1 + $0x600] sm:$0xf]
  %v249 = vld [vmem:[%s1 + $0x604] sm:$0xff]
  %v250 = vld [vmem:[%s1 + $0x60c] sm:$0xff]
  %v251 = vld [vmem:[%s1 + $0x614] sm:$0xf]
  %v252 = vld [vmem:[%s1 + $0x618] sm:$0xff]
  %v253 = vld [vmem:[%s1 + $0x620] sm:$0xff]
  %v254 = vld [vmem:[%s1 + $0x628] sm:$0xf]
  %v255 = vld [vmem:[%s1 + $0x62c] sm:$0xff]
  %v256 = vld [vmem:[%s1 + $0x634] sm:$0xff]
  %v257 = vld [vmem:[%s1 + $0x63c] sm:$0xf]
  %v258 = vld [vmem:[%s1 + $0x640] sm:$0xff]
  %v259 = vld [vmem:[%s1 + $0x648] sm:$0xff]
  %v260 = vld [vmem:[%s1 + $0x650] sm:$0xf]
  %v261 = vld [vmem:[%s1 + $0x654] sm:$0xff]
  %v262 = vld [vmem:[%s1 + $0x65c] sm:$0xff]
  %v263 = vld [vmem:[%s1 + $0x664] sm:$0xf]
  %v264 = vld [vmem:[%s1 + $0x668] sm:$0xff]
  %v265 = vld [vmem:[%s1 + $0x670] sm:$0xff]
  %v266 = vld [vmem:[%s1 + $0x678] sm:$0xf]
  %v267 = vld [vmem:[%s1 + $0x67c] sm:$0xff]
  %v268 = vld [vmem:[%s1 + $0x684] sm:$0xff]
  %v269 = vld [vmem:[%s1 + $0x68c] sm:$0xf]
  %v270 = vld [vmem:[%s1 + $0x690] sm:$0xff]
  %v271 = vld [vmem:[%s1 + $0x698] sm:$0xff]
  %v272 = vld [vmem:[%s1 + $0x6a0] sm:$0xf]
  %v273 = vld [vmem:[%s1 + $0x6a4] sm:$0xff]
  %v274 = vld [vmem:[%s1 + $0x6ac] sm:$0xff]
  %v275 = vld [vmem:[%s1 + $0x6b4] sm:$0xf]
  %v276 = vld [vmem:[%s1 + $0x6b8] sm:$0xff]
  %v277 = vld [vmem:[%s1 + $0x6c0] sm:$0xff]
  %v278 = vld [vmem:[%s1 + $0x6c8] sm:$0xf]
  %v279 = vld [vmem:[%s1 + $0x6cc] sm:$0xff]
  %v280 = vld [vmem:[%s1 + $0x6d4] sm:$0xff]
  %v281 = vld [vmem:[%s1 + $0x6dc] sm:$0xf]
  %v282 = vld [vmem:[%s1 + $0x6e0] sm:$0xff]
  %v283 = vld [vmem:[%s1 + $0x6e8] sm:$0xff]
  %v284 = vld [vmem:[%s1 + $0x6f0] sm:$0xf]
  %v285 = vld [vmem:[%s1 + $0x6f4] sm:$0xff]
  %v286 = vld [vmem:[%s1 + $0x6fc] sm:$0xff]
  %v287 = vld [vmem:[%s1 + $0x704] sm:$0xf]
  %v288 = vld [vmem:[%s1 + $0x708] sm:$0xff]
  %v289 = vld [vmem:[%s1 + $0x710] sm:$0xff]
  %v290 = vld [vmem:[%s1 + $0x718] sm:$0xf]
  %v291 = vld [vmem:[%s1 + $0x71c] sm:$0xff]
  %v292 = vld [vmem:[%s1 + $0x724] sm:$0xff]
  %v293 = vld [vmem:[%s1 + $0x72c] sm:$0xf]
  %v294 = vld [vmem:[%s1 + $0x730] sm:$0xff]
  %v295 = vld [vmem:[%s1 + $0x738] sm:$0xff]
  %v296 = vld [vmem:[%s1 + $0x740] sm:$0xf]
  %v297 = vld [vmem:[%s1 + $0x744] sm:$0xff]
  %v298 = vld [vmem:[%s1 + $0x74c] sm:$0xff]
  %v299 = vld [vmem:[%s1 + $0x754] sm:$0xf]
  %v300 = vld [vmem:[%s1 + $0x758] sm:$0xff]
  %v301 = vld [vmem:[%s1 + $0x760] sm:$0xff]
  %v302 = vld [vmem:[%s1 + $0x768] sm:$0xf]
  %v303 = vld [vmem:[%s1 + $0x76c] sm:$0xff]
  %v304 = vld [vmem:[%s1 + $0x774] sm:$0xff]
  %v305 = vld [vmem:[%s1 + $0x77c] sm:$0xf]
  %v306 = vld [vmem:[%s1 + $0x780] sm:$0xff]
  %v307 = vld [vmem:[%s1 + $0x788] sm:$0xff]
  %v308 = vld [vmem:[%s1 + $0x790] sm:$0xf]
  %v309 = vld [vmem:[%s1 + $0x794] sm:$0xff]
  %v310 = vld [vmem:[%s1 + $0x79c] sm:$0xff]
  %v311 = vld [vmem:[%s1 + $0x7a4] sm:$0xf]
  %v312 = vld [vmem:[%s1 + $0x7a8] sm:$0xff]
  %v313 = vld [vmem:[%s1 + $0x7b0] sm:$0xff]
  %v314 = vld [vmem:[%s1 + $0x7b8] sm:$0xf]
  %v315 = vld [vmem:[%s1 + $0x7bc] sm:$0xff]
  %v316 = vld [vmem:[%s1 + $0x7c4] sm:$0xff]
  %v317 = vld [vmem:[%s1 + $0x7cc] sm:$0xf]
  %v318 = vld [vmem:[%s1 + $0x7d0] sm:$0xff]
  %v319 = vld [vmem:[%s1 + $0x7d8] sm:$0xff]
  %v320 = vld [vmem:[%s1 + $0x7e0] sm:$0xf]
  %v321 = vld [vmem:[%s1 + $0x7e4] sm:$0xff]
  %v322 = vld [vmem:[%s1 + $0x7ec] sm:$0xff]
  %v323 = vld [vmem:[%s1 + $0x7f4] sm:$0xf]
  %v324 = vld [vmem:[%s1 + $0x7f8] sm:$0xff]
  %v325 = vld [vmem:[%s1 + $0x800] sm:$0xff]
  %v326 = vld [vmem:[%s1 + $0x808] sm:$0xf]
  %v327 = vld [vmem:[%s1 + $0x80c] sm:$0xff]
  %v328 = vld [vmem:[%s1 + $0x814] sm:$0xff]
  %v329 = vld [vmem:[%s1 + $0x81c] sm:$0xf]
  %v330 = vld [vmem:[%s1 + $0x820] sm:$0xff]
  %v331 = vld [vmem:[%s1 + $0x828] sm:$0xff]
  %v332 = vld [vmem:[%s1 + $0x830] sm:$0xf]
  %v333 = vld [vmem:[%s1 + $0x834] sm:$0xff]
  %v334 = vld [vmem:[%s1 + $0x83c] sm:$0xff]
  %v335 = vld [vmem:[%s1 + $0x844] sm:$0xf]
  %v336 = vld [vmem:[%s1 + $0x848] sm:$0xff]
  %v337 = vld [vmem:[%s1 + $0x850] sm:$0xff]
  %v338 = vld [vmem:[%s1 + $0x858] sm:$0xf]
  %v339 = vld [vmem:[%s1 + $0x85c] sm:$0xff]
  %v340 = vld [vmem:[%s1 + $0x864] sm:$0xff]
  %v341 = vld [vmem:[%s1 + $0x86c] sm:$0xf]
  %v342 = vld [vmem:[%s1 + $0x870] sm:$0xff]
  %v343 = vld [vmem:[%s1 + $0x878] sm:$0xff]
  %v344 = vld [vmem:[%s1 + $0x880] sm:$0xf]
  %v345 = vld [vmem:[%s1 + $0x884] sm:$0xff]
  %v346 = vld [vmem:[%s1 + $0x88c] sm:$0xff]
  %v347 = vld [vmem:[%s1 + $0x894] sm:$0xf]
  %v348 = vld [vmem:[%s1 + $0x898] sm:$0xff]
  %v349 = vld [vmem:[%s1 + $0x8a0] sm:$0xff]
  %v350 = vld [vmem:[%s1 + $0x8a8] sm:$0xf]
  %v351 = vld [vmem:[%s1 + $0x8ac] sm:$0xff]
  %v352 = vld [vmem:[%s1 + $0x8b4] sm:$0xff]
  %v353 = vld [vmem:[%s1 + $0x8bc] sm:$0xf]
  %v354 = vld [vmem:[%s2] sm:$0x1f]
  %v356 = vperm.slane %v354, 0
  %v357 = vperm.slane %v354, 1
  %v358 = vperm.slane %v354, 2
  %v359 = vperm.slane %v354, 3
  %v360 = vperm.slane %v354, 4
  %v370 = vunpack.c.l.b16 %v14
  %v371 = vunpack.c.h.b16 %v14
  %v372 = vunpack.c.l.b16 %v15
  %v373 = vunpack.c.h.b16 %v15
  %v374 = vunpack.c.l.b16 %v16
  %v375 = vunpack.c.h.b16 %v16
  %v376 = vunpack.c.l.b16 %v17
  %v377 = vpack.c.b16 %v370, %v370
  %v378 = vpack.c.b16 %v371, %v371
  %v379 = vpack.c.b16 %v372, %v372
  %v380 = vpack.c.b16 %v373, %v373
  %v381 = vpack.c.b16 %v374, %v374
  %v382 = vpack.c.b16 %v375, %v375
  %v383 = vpack.c.b16 %v376, %v376
  %v727 = vunpack.c.l.b16 %v18
  %v728 = vunpack.c.h.b16 %v18
  %v729 = vunpack.c.l.b16 %v19
  %v730 = vunpack.c.h.b16 %v19
  %v731 = vunpack.c.l.b16 %v20
  %v732 = vunpack.c.l.b16 %v21
  %v733 = vunpack.c.h.b16 %v21
  %v734 = vunpack.c.l.b16 %v22
  %v735 = vunpack.c.h.b16 %v22
  %v736 = vunpack.c.l.b16 %v23
  %v737 = vunpack.c.l.b16 %v24
  %v738 = vunpack.c.h.b16 %v24
  %v739 = vunpack.c.l.b16 %v25
  %v740 = vunpack.c.h.b16 %v25
  %v741 = vunpack.c.l.b16 %v26
  %v742 = vunpack.c.l.b16 %v27
  %v743 = vunpack.c.h.b16 %v27
  %v744 = vunpack.c.l.b16 %v28
  %v745 = vunpack.c.h.b16 %v28
  %v746 = vunpack.c.l.b16 %v29
  %v747 = vunpack.c.l.b16 %v30
  %v748 = vunpack.c.h.b16 %v30
  %v749 = vunpack.c.l.b16 %v31
  %v750 = vunpack.c.h.b16 %v31
  %v751 = vunpack.c.l.b16 %v32
  %v752 = vunpack.c.l.b16 %v33
  %v753 = vunpack.c.h.b16 %v33
  %v754 = vunpack.c.l.b16 %v34
  %v755 = vunpack.c.h.b16 %v34
  %v756 = vunpack.c.l.b16 %v35
  %v757 = vunpack.c.l.b16 %v36
  %v758 = vunpack.c.h.b16 %v36
  %v759 = vunpack.c.l.b16 %v37
  %v760 = vunpack.c.h.b16 %v37
  %v761 = vunpack.c.l.b16 %v38
  %v762 = vunpack.c.l.b16 %v39
  %v763 = vunpack.c.h.b16 %v39
  %v764 = vunpack.c.l.b16 %v40
  %v765 = vunpack.c.h.b16 %v40
  %v766 = vunpack.c.l.b16 %v41
  %v767 = vunpack.c.l.b16 %v42
  %v768 = vunpack.c.h.b16 %v42
  %v769 = vunpack.c.l.b16 %v43
  %v770 = vunpack.c.h.b16 %v43
  %v771 = vunpack.c.l.b16 %v44
  %v772 = vunpack.c.l.b16 %v45
  %v773 = vunpack.c.h.b16 %v45
  %v774 = vunpack.c.l.b16 %v46
  %v775 = vunpack.c.h.b16 %v46
  %v776 = vunpack.c.l.b16 %v47
  %v777 = vunpack.c.l.b16 %v48
  %v778 = vunpack.c.h.b16 %v48
  %v779 = vunpack.c.l.b16 %v49
  %v780 = vunpack.c.h.b16 %v49
  %v781 = vunpack.c.l.b16 %v50
  %v782 = vunpack.c.l.b16 %v51
  %v783 = vunpack.c.h.b16 %v51
  %v784 = vunpack.c.l.b16 %v52
  %v785 = vunpack.c.h.b16 %v52
  %v786 = vunpack.c.l.b16 %v53
  %v787 = vunpack.c.l.b16 %v54
  %v788 = vunpack.c.h.b16 %v54
  %v789 = vunpack.c.l.b16 %v55
  %v790 = vunpack.c.h.b16 %v55
  %v791 = vunpack.c.l.b16 %v56
  %v792 = vunpack.c.l.b16 %v57
  %v793 = vunpack.c.h.b16 %v57
  %v794 = vunpack.c.l.b16 %v58
  %v795 = vunpack.c.h.b16 %v58
  %v796 = vunpack.c.l.b16 %v59
  %v797 = vunpack.c.l.b16 %v60
  %v798 = vunpack.c.h.b16 %v60
  %v799 = vunpack.c.l.b16 %v61
  %v800 = vunpack.c.h.b16 %v61
  %v801 = vunpack.c.l.b16 %v62
  %v802 = vunpack.c.l.b16 %v63
  %v803 = vunpack.c.h.b16 %v63
  %v804 = vunpack.c.l.b16 %v64
  %v805 = vunpack.c.h.b16 %v64
  %v806 = vunpack.c.l.b16 %v65
  %v807 = vunpack.c.l.b16 %v66
  %v808 = vunpack.c.h.b16 %v66
  %v809 = vunpack.c.l.b16 %v67
  %v810 = vunpack.c.h.b16 %v67
  %v811 = vunpack.c.l.b16 %v68
  %v812 = vunpack.c.l.b16 %v69
  %v813 = vunpack.c.h.b16 %v69
  %v814 = vunpack.c.l.b16 %v70
  %v815 = vunpack.c.h.b16 %v70
  %v816 = vunpack.c.l.b16 %v71
  %v817 = vunpack.c.l.b16 %v72
  %v818 = vunpack.c.h.b16 %v72
  %v819 = vunpack.c.l.b16 %v73
  %v820 = vunpack.c.h.b16 %v73
  %v821 = vunpack.c.l.b16 %v74
  %v822 = vunpack.c.l.b16 %v75
  %v823 = vunpack.c.h.b16 %v75
  %v824 = vunpack.c.l.b16 %v76
  %v825 = vunpack.c.h.b16 %v76
  %v826 = vunpack.c.l.b16 %v77
  %v827 = vunpack.c.l.b16 %v78
  %v828 = vunpack.c.h.b16 %v78
  %v829 = vunpack.c.l.b16 %v79
  %v830 = vunpack.c.h.b16 %v79
  %v831 = vunpack.c.l.b16 %v80
  %v832 = vunpack.c.l.b16 %v81
  %v833 = vunpack.c.h.b16 %v81
  %v834 = vunpack.c.l.b16 %v82
  %v835 = vunpack.c.h.b16 %v82
  %v836 = vunpack.c.l.b16 %v83
  %v837 = vunpack.c.l.b16 %v84
  %v838 = vunpack.c.h.b16 %v84
  %v839 = vunpack.c.l.b16 %v85
  %v840 = vunpack.c.h.b16 %v85
  %v841 = vunpack.c.l.b16 %v86
  %v842 = vunpack.c.l.b16 %v87
  %v843 = vunpack.c.h.b16 %v87
  %v844 = vunpack.c.l.b16 %v88
  %v845 = vunpack.c.h.b16 %v88
  %v846 = vunpack.c.l.b16 %v89
  %v847 = vunpack.c.l.b16 %v90
  %v848 = vunpack.c.h.b16 %v90
  %v849 = vunpack.c.l.b16 %v91
  %v850 = vunpack.c.h.b16 %v91
  %v851 = vunpack.c.l.b16 %v92
  %v852 = vunpack.c.l.b16 %v93
  %v853 = vunpack.c.h.b16 %v93
  %v854 = vunpack.c.l.b16 %v94
  %v855 = vunpack.c.h.b16 %v94
  %v856 = vunpack.c.l.b16 %v95
  %v857 = vunpack.c.l.b16 %v96
  %v858 = vunpack.c.h.b16 %v96
  %v859 = vunpack.c.l.b16 %v97
  %v860 = vunpack.c.h.b16 %v97
  %v861 = vunpack.c.l.b16 %v98
  %v862 = vunpack.c.l.b16 %v99
  %v863 = vunpack.c.h.b16 %v99
  %v864 = vunpack.c.l.b16 %v100
  %v865 = vunpack.c.h.b16 %v100
  %v866 = vunpack.c.l.b16 %v101
  %v867 = vunpack.c.l.b16 %v102
  %v868 = vunpack.c.h.b16 %v102
  %v869 = vunpack.c.l.b16 %v103
  %v870 = vunpack.c.h.b16 %v103
  %v871 = vunpack.c.l.b16 %v104
  %v872 = vunpack.c.l.b16 %v105
  %v873 = vunpack.c.h.b16 %v105
  %v874 = vunpack.c.l.b16 %v106
  %v875 = vunpack.c.h.b16 %v106
  %v876 = vunpack.c.l.b16 %v107
  %v877 = vunpack.c.l.b16 %v108
  %v878 = vunpack.c.h.b16 %v108
  %v879 = vunpack.c.l.b16 %v109
  %v880 = vunpack.c.h.b16 %v109
  %v881 = vunpack.c.l.b16 %v110
  %v882 = vunpack.c.l.b16 %v111
  %v883 = vunpack.c.h.b16 %v111
  %v884 = vunpack.c.l.b16 %v112
  %v885 = vunpack.c.h.b16 %v112
  %v886 = vunpack.c.l.b16 %v113
  %v887 = vunpack.c.l.b16 %v114
  %v888 = vunpack.c.h.b16 %v114
  %v889 = vunpack.c.l.b16 %v115
  %v890 = vunpack.c.h.b16 %v115
  %v891 = vunpack.c.l.b16 %v116
  %v892 = vunpack.c.l.b16 %v117
  %v893 = vunpack.c.h.b16 %v117
  %v894 = vunpack.c.l.b16 %v118
  %v895 = vunpack.c.h.b16 %v118
  %v896 = vunpack.c.l.b16 %v119
  %v897 = vunpack.c.l.b16 %v120
  %v898 = vunpack.c.h.b16 %v120
  %v899 = vunpack.c.l.b16 %v121
  %v900 = vunpack.c.h.b16 %v121
  %v901 = vunpack.c.l.b16 %v122
  %v902 = vunpack.c.l.b16 %v123
  %v903 = vunpack.c.h.b16 %v123
  %v904 = vunpack.c.l.b16 %v124
  %v905 = vunpack.c.h.b16 %v124
  %v906 = vunpack.c.l.b16 %v125
  %v907 = vunpack.c.l.b16 %v126
  %v908 = vunpack.c.h.b16 %v126
  %v909 = vunpack.c.l.b16 %v127
  %v910 = vunpack.c.h.b16 %v127
  %v911 = vunpack.c.l.b16 %v128
  %v912 = vunpack.c.l.b16 %v129
  %v913 = vunpack.c.h.b16 %v129
  %v914 = vunpack.c.l.b16 %v130
  %v915 = vunpack.c.h.b16 %v130
  %v916 = vunpack.c.l.b16 %v131
  %v917 = vunpack.c.l.b16 %v132
  %v918 = vunpack.c.h.b16 %v132
  %v919 = vunpack.c.l.b16 %v133
  %v920 = vunpack.c.h.b16 %v133
  %v921 = vunpack.c.l.b16 %v134
  %v922 = vunpack.c.l.b16 %v135
  %v923 = vunpack.c.h.b16 %v135
  %v924 = vunpack.c.l.b16 %v136
  %v925 = vunpack.c.h.b16 %v136
  %v926 = vunpack.c.l.b16 %v137
  %v927 = vunpack.c.l.b16 %v138
  %v928 = vunpack.c.h.b16 %v138
  %v929 = vunpack.c.l.b16 %v139
  %v930 = vunpack.c.h.b16 %v139
  %v931 = vunpack.c.l.b16 %v140
  %v932 = vunpack.c.l.b16 %v141
  %v933 = vunpack.c.h.b16 %v141
  %v934 = vunpack.c.l.b16 %v142
  %v935 = vunpack.c.h.b16 %v142
  %v936 = vunpack.c.l.b16 %v143
  %v937 = vunpack.c.l.b16 %v144
  %v938 = vunpack.c.h.b16 %v144
  %v939 = vunpack.c.l.b16 %v145
  %v940 = vunpack.c.h.b16 %v145
  %v941 = vunpack.c.l.b16 %v146
  %v942 = vunpack.c.l.b16 %v147
  %v943 = vunpack.c.h.b16 %v147
  %v944 = vunpack.c.l.b16 %v148
  %v945 = vunpack.c.h.b16 %v148
  %v946 = vunpack.c.l.b16 %v149
  %v947 = vunpack.c.l.b16 %v150
  %v948 = vunpack.c.h.b16 %v150
  %v949 = vunpack.c.l.b16 %v151
  %v950 = vunpack.c.h.b16 %v151
  %v951 = vunpack.c.l.b16 %v152
  %v952 = vunpack.c.l.b16 %v153
  %v953 = vunpack.c.h.b16 %v153
  %v954 = vunpack.c.l.b16 %v154
  %v955 = vunpack.c.h.b16 %v154
  %v956 = vunpack.c.l.b16 %v155
  %v957 = vunpack.c.l.b16 %v156
  %v958 = vunpack.c.h.b16 %v156
  %v959 = vunpack.c.l.b16 %v157
  %v960 = vunpack.c.h.b16 %v157
  %v961 = vunpack.c.l.b16 %v158
  %v962 = vunpack.c.l.b16 %v159
  %v963 = vunpack.c.h.b16 %v159
  %v964 = vunpack.c.l.b16 %v160
  %v965 = vunpack.c.h.b16 %v160
  %v966 = vunpack.c.l.b16 %v161
  %v967 = vunpack.c.l.b16 %v162
  %v968 = vunpack.c.h.b16 %v162
  %v969 = vunpack.c.l.b16 %v163
  %v970 = vunpack.c.h.b16 %v163
  %v971 = vunpack.c.l.b16 %v164
  %v972 = vunpack.c.l.b16 %v165
  %v973 = vunpack.c.h.b16 %v165
  %v974 = vunpack.c.l.b16 %v166
  %v975 = vunpack.c.h.b16 %v166
  %v976 = vunpack.c.l.b16 %v167
  %v977 = vunpack.c.l.b16 %v168
  %v978 = vunpack.c.h.b16 %v168
  %v979 = vunpack.c.l.b16 %v169
  %v980 = vunpack.c.h.b16 %v169
  %v981 = vunpack.c.l.b16 %v170
  %v982 = vunpack.c.l.b16 %v171
  %v983 = vunpack.c.h.b16 %v171
  %v984 = vunpack.c.l.b16 %v172
  %v985 = vunpack.c.h.b16 %v172
  %v986 = vunpack.c.l.b16 %v173
  %v987 = vunpack.c.l.b16 %v174
  %v988 = vunpack.c.h.b16 %v174
  %v989 = vunpack.c.l.b16 %v175
  %v990 = vunpack.c.h.b16 %v175
  %v991 = vunpack.c.l.b16 %v176
  %v992 = vunpack.c.l.b16 %v177
  %v993 = vunpack.c.h.b16 %v177
  %v994 = vunpack.c.l.b16 %v178
  %v995 = vunpack.c.h.b16 %v178
  %v996 = vunpack.c.l.b16 %v179
  %v997 = vunpack.c.l.b16 %v180
  %v998 = vunpack.c.h.b16 %v180
  %v999 = vunpack.c.l.b16 %v181
  %v1000 = vunpack.c.h.b16 %v181
  %v1001 = vunpack.c.l.b16 %v182
  %v1002 = vunpack.c.l.b16 %v183
  %v1003 = vunpack.c.h.b16 %v183
  %v1004 = vunpack.c.l.b16 %v184
  %v1005 = vunpack.c.h.b16 %v184
  %v1006 = vunpack.c.l.b16 %v185
  %v1007 = vunpack.c.l.b16 %v186
  %v1008 = vunpack.c.h.b16 %v186
  %v1009 = vunpack.c.l.b16 %v187
  %v1010 = vunpack.c.h.b16 %v187
  %v1011 = vunpack.c.l.b16 %v188
  %v1012 = vunpack.c.l.b16 %v189
  %v1013 = vunpack.c.h.b16 %v189
  %v1014 = vunpack.c.l.b16 %v190
  %v1015 = vunpack.c.h.b16 %v190
  %v1016 = vunpack.c.l.b16 %v191
  %v1017 = vunpack.c.l.b16 %v192
  %v1018 = vunpack.c.h.b16 %v192
  %v1019 = vunpack.c.l.b16 %v193
  %v1020 = vunpack.c.h.b16 %v193
  %v1021 = vunpack.c.l.b16 %v194
  %v1022 = vunpack.c.l.b16 %v195
  %v1023 = vunpack.c.h.b16 %v195
  %v1024 = vunpack.c.l.b16 %v196
  %v1025 = vunpack.c.h.b16 %v196
  %v1026 = vunpack.c.l.b16 %v197
  %v1027 = vunpack.c.l.b16 %v198
  %v1028 = vunpack.c.h.b16 %v198
  %v1029 = vunpack.c.l.b16 %v199
  %v1030 = vunpack.c.h.b16 %v199
  %v1031 = vunpack.c.l.b16 %v200
  %v1032 = vunpack.c.l.b16 %v201
  %v1033 = vunpack.c.h.b16 %v201
  %v1034 = vunpack.c.l.b16 %v202
  %v1035 = vunpack.c.h.b16 %v202
  %v1036 = vunpack.c.l.b16 %v203
  %v1037 = vunpack.c.l.b16 %v204
  %v1038 = vunpack.c.h.b16 %v204
  %v1039 = vunpack.c.l.b16 %v205
  %v1040 = vunpack.c.h.b16 %v205
  %v1041 = vunpack.c.l.b16 %v206
  %v1042 = vunpack.c.l.b16 %v207
  %v1043 = vunpack.c.h.b16 %v207
  %v1044 = vunpack.c.l.b16 %v208
  %v1045 = vunpack.c.h.b16 %v208
  %v1046 = vunpack.c.l.b16 %v209
  %v1047 = vunpack.c.l.b16 %v210
  %v1048 = vunpack.c.h.b16 %v210
  %v1049 = vunpack.c.l.b16 %v211
  %v1050 = vunpack.c.h.b16 %v211
  %v1051 = vunpack.c.l.b16 %v212
  %v1052 = vunpack.c.l.b16 %v213
  %v1053 = vunpack.c.h.b16 %v213
  %v1054 = vunpack.c.l.b16 %v214
  %v1055 = vunpack.c.h.b16 %v214
  %v1056 = vunpack.c.l.b16 %v215
  %v1057 = vunpack.c.l.b16 %v216
  %v1058 = vunpack.c.h.b16 %v216
  %v1059 = vunpack.c.l.b16 %v217
  %v1060 = vunpack.c.h.b16 %v217
  %v1061 = vunpack.c.l.b16 %v218
  %v1062 = vunpack.c.l.b16 %v219
  %v1063 = vunpack.c.h.b16 %v219
  %v1064 = vunpack.c.l.b16 %v220
  %v1065 = vunpack.c.h.b16 %v220
  %v1066 = vunpack.c.l.b16 %v221
  %v1067 = vunpack.c.l.b16 %v222
  %v1068 = vunpack.c.h.b16 %v222
  %v1069 = vunpack.c.l.b16 %v223
  %v1070 = vunpack.c.h.b16 %v223
  %v1071 = vunpack.c.l.b16 %v224
  %v1072 = vunpack.c.l.b16 %v225
  %v1073 = vunpack.c.h.b16 %v225
  %v1074 = vunpack.c.l.b16 %v226
  %v1075 = vunpack.c.h.b16 %v226
  %v1076 = vunpack.c.l.b16 %v227
  %v1077 = vunpack.c.l.b16 %v228
  %v1078 = vunpack.c.h.b16 %v228
  %v1079 = vunpack.c.l.b16 %v229
  %v1080 = vunpack.c.h.b16 %v229
  %v1081 = vunpack.c.l.b16 %v230
  %v1082 = vunpack.c.l.b16 %v231
  %v1083 = vunpack.c.h.b16 %v231
  %v1084 = vunpack.c.l.b16 %v232
  %v1085 = vunpack.c.h.b16 %v232
  %v1086 = vunpack.c.l.b16 %v233
  %v1087 = vunpack.c.l.b16 %v234
  %v1088 = vunpack.c.h.b16 %v234
  %v1089 = vunpack.c.l.b16 %v235
  %v1090 = vunpack.c.h.b16 %v235
  %v1091 = vunpack.c.l.b16 %v236
  %v1092 = vunpack.c.l.b16 %v237
  %v1093 = vunpack.c.h.b16 %v237
  %v1094 = vunpack.c.l.b16 %v238
  %v1095 = vunpack.c.h.b16 %v238
  %v1096 = vunpack.c.l.b16 %v239
  %v1097 = vunpack.c.l.b16 %v240
  %v1098 = vunpack.c.h.b16 %v240
  %v1099 = vunpack.c.l.b16 %v241
  %v1100 = vunpack.c.h.b16 %v241
  %v1101 = vunpack.c.l.b16 %v242
  %v1102 = vunpack.c.l.b16 %v243
  %v1103 = vunpack.c.h.b16 %v243
  %v1104 = vunpack.c.l.b16 %v244
  %v1105 = vunpack.c.h.b16 %v244
  %v1106 = vunpack.c.l.b16 %v245
  %v1107 = vunpack.c.l.b16 %v246
  %v1108 = vunpack.c.h.b16 %v246
  %v1109 = vunpack.c.l.b16 %v247
  %v1110 = vunpack.c.h.b16 %v247
  %v1111 = vunpack.c.l.b16 %v248
  %v1112 = vunpack.c.l.b16 %v249
  %v1113 = vunpack.c.h.b16 %v249
  %v1114 = vunpack.c.l.b16 %v250
  %v1115 = vunpack.c.h.b16 %v250
  %v1116 = vunpack.c.l.b16 %v251
  %v1117 = vunpack.c.l.b16 %v252
  %v1118 = vunpack.c.h.b16 %v252
  %v1119 = vunpack.c.l.b16 %v253
  %v1120 = vunpack.c.h.b16 %v253
  %v1121 = vunpack.c.l.b16 %v254
  %v1122 = vunpack.c.l.b16 %v255
  %v1123 = vunpack.c.h.b16 %v255
  %v1124 = vunpack.c.l.b16 %v256
  %v1125 = vunpack.c.h.b16 %v256
  %v1126 = vunpack.c.l.b16 %v257
  %v1127 = vunpack.c.l.b16 %v258
  %v1128 = vunpack.c.h.b16 %v258
  %v1129 = vunpack.c.l.b16 %v259
  %v1130 = vunpack.c.h.b16 %v259
  %v1131 = vunpack.c.l.b16 %v260
  %v1132 = vunpack.c.l.b16 %v261
  %v1133 = vunpack.c.h.b16 %v261
  %v1134 = vunpack.c.l.b16 %v262
  %v1135 = vunpack.c.h.b16 %v262
  %v1136 = vunpack.c.l.b16 %v263
  %v1137 = vunpack.c.l.b16 %v264
  %v1138 = vunpack.c.h.b16 %v264
  %v1139 = vunpack.c.l.b16 %v265
  %v1140 = vunpack.c.h.b16 %v265
  %v1141 = vunpack.c.l.b16 %v266
  %v1142 = vunpack.c.l.b16 %v267
  %v1143 = vunpack.c.h.b16 %v267
  %v1144 = vunpack.c.l.b16 %v268
  %v1145 = vunpack.c.h.b16 %v268
  %v1146 = vunpack.c.l.b16 %v269
  %v1147 = vunpack.c.l.b16 %v270
  %v1148 = vunpack.c.h.b16 %v270
  %v1149 = vunpack.c.l.b16 %v271
  %v1150 = vunpack.c.h.b16 %v271
  %v1151 = vunpack.c.l.b16 %v272
  %v1152 = vunpack.c.l.b16 %v273
  %v1153 = vunpack.c.h.b16 %v273
  %v1154 = vunpack.c.l.b16 %v274
  %v1155 = vunpack.c.h.b16 %v274
  %v1156 = vunpack.c.l.b16 %v275
  %v1157 = vunpack.c.l.b16 %v276
  %v1158 = vunpack.c.h.b16 %v276
  %v1159 = vunpack.c.l.b16 %v277
  %v1160 = vunpack.c.h.b16 %v277
  %v1161 = vunpack.c.l.b16 %v278
  %v1162 = vunpack.c.l.b16 %v279
  %v1163 = vunpack.c.h.b16 %v279
  %v1164 = vunpack.c.l.b16 %v280
  %v1165 = vunpack.c.h.b16 %v280
  %v1166 = vunpack.c.l.b16 %v281
  %v1167 = vunpack.c.l.b16 %v282
  %v1168 = vunpack.c.h.b16 %v282
  %v1169 = vunpack.c.l.b16 %v283
  %v1170 = vunpack.c.h.b16 %v283
  %v1171 = vunpack.c.l.b16 %v284
  %v1172 = vunpack.c.l.b16 %v285
  %v1173 = vunpack.c.h.b16 %v285
  %v1174 = vunpack.c.l.b16 %v286
  %v1175 = vunpack.c.h.b16 %v286
  %v1176 = vunpack.c.l.b16 %v287
  %v1177 = vunpack.c.l.b16 %v288
  %v1178 = vunpack.c.h.b16 %v288
  %v1179 = vunpack.c.l.b16 %v289
  %v1180 = vunpack.c.h.b16 %v289
  %v1181 = vunpack.c.l.b16 %v290
  %v1182 = vunpack.c.l.b16 %v291
  %v1183 = vunpack.c.h.b16 %v291
  %v1184 = vunpack.c.l.b16 %v292
  %v1185 = vunpack.c.h.b16 %v292
  %v1186 = vunpack.c.l.b16 %v293
  %v1187 = vunpack.c.l.b16 %v294
  %v1188 = vunpack.c.h.b16 %v294
  %v1189 = vunpack.c.l.b16 %v295
  %v1190 = vunpack.c.h.b16 %v295
  %v1191 = vunpack.c.l.b16 %v296
  %v1192 = vunpack.c.l.b16 %v297
  %v1193 = vunpack.c.h.b16 %v297
  %v1194 = vunpack.c.l.b16 %v298
  %v1195 = vunpack.c.h.b16 %v298
  %v1196 = vunpack.c.l.b16 %v299
  %v1197 = vunpack.c.l.b16 %v300
  %v1198 = vunpack.c.h.b16 %v300
  %v1199 = vunpack.c.l.b16 %v301
  %v1200 = vunpack.c.h.b16 %v301
  %v1201 = vunpack.c.l.b16 %v302
  %v1202 = vunpack.c.l.b16 %v303
  %v1203 = vunpack.c.h.b16 %v303
  %v1204 = vunpack.c.l.b16 %v304
  %v1205 = vunpack.c.h.b16 %v304
  %v1206 = vunpack.c.l.b16 %v305
  %v1207 = vunpack.c.l.b16 %v306
  %v1208 = vunpack.c.h.b16 %v306
  %v1209 = vunpack.c.l.b16 %v307
  %v1210 = vunpack.c.h.b16 %v307
  %v1211 = vunpack.c.l.b16 %v308
  %v1212 = vunpack.c.l.b16 %v309
  %v1213 = vunpack.c.h.b16 %v309
  %v1214 = vunpack.c.l.b16 %v310
  %v1215 = vunpack.c.h.b16 %v310
  %v1216 = vunpack.c.l.b16 %v311
  %v1217 = vunpack.c.l.b16 %v312
  %v1218 = vunpack.c.h.b16 %v312
  %v1219 = vunpack.c.l.b16 %v313
  %v1220 = vunpack.c.h.b16 %v313
  %v1221 = vunpack.c.l.b16 %v314
  %v1222 = vunpack.c.l.b16 %v315
  %v1223 = vunpack.c.h.b16 %v315
  %v1224 = vunpack.c.l.b16 %v316
  %v1225 = vunpack.c.h.b16 %v316
  %v1226 = vunpack.c.l.b16 %v317
  %v1227 = vunpack.c.l.b16 %v318
  %v1228 = vunpack.c.h.b16 %v318
  %v1229 = vunpack.c.l.b16 %v319
  %v1230 = vunpack.c.h.b16 %v319
  %v1231 = vunpack.c.l.b16 %v320
  %v1232 = vunpack.c.l.b16 %v321
  %v1233 = vunpack.c.h.b16 %v321
  %v1234 = vunpack.c.l.b16 %v322
  %v1235 = vunpack.c.h.b16 %v322
  %v1236 = vunpack.c.l.b16 %v323
  %v1237 = vunpack.c.l.b16 %v324
  %v1238 = vunpack.c.h.b16 %v324
  %v1239 = vunpack.c.l.b16 %v325
  %v1240 = vunpack.c.h.b16 %v325
  %v1241 = vunpack.c.l.b16 %v326
  %v1242 = vunpack.c.l.b16 %v327
  %v1243 = vunpack.c.h.b16 %v327
  %v1244 = vunpack.c.l.b16 %v328
  %v1245 = vunpack.c.h.b16 %v328
  %v1246 = vunpack.c.l.b16 %v329
  %v1247 = vunpack.c.l.b16 %v330
  %v1248 = vunpack.c.h.b16 %v330
  %v1249 = vunpack.c.l.b16 %v331
  %v1250 = vunpack.c.h.b16 %v331
  %v1251 = vunpack.c.l.b16 %v332
  %v1252 = vunpack.c.l.b16 %v333
  %v1253 = vunpack.c.h.b16 %v333
  %v1254 = vunpack.c.l.b16 %v334
  %v1255 = vunpack.c.h.b16 %v334
  %v1256 = vunpack.c.l.b16 %v335
  %v1257 = vunpack.c.l.b16 %v336
  %v1258 = vunpack.c.h.b16 %v336
  %v1259 = vunpack.c.l.b16 %v337
  %v1260 = vunpack.c.h.b16 %v337
  %v1261 = vunpack.c.l.b16 %v338
  %v1262 = vunpack.c.l.b16 %v339
  %v1263 = vunpack.c.h.b16 %v339
  %v1264 = vunpack.c.l.b16 %v340
  %v1265 = vunpack.c.h.b16 %v340
  %v1266 = vunpack.c.l.b16 %v341
  %v1267 = vunpack.c.l.b16 %v342
  %v1268 = vunpack.c.h.b16 %v342
  %v1269 = vunpack.c.l.b16 %v343
  %v1270 = vunpack.c.h.b16 %v343
  %v1271 = vunpack.c.l.b16 %v344
  %v1272 = vunpack.c.l.b16 %v345
  %v1273 = vunpack.c.h.b16 %v345
  %v1274 = vunpack.c.l.b16 %v346
  %v1275 = vunpack.c.h.b16 %v346
  %v1276 = vunpack.c.l.b16 %v347
  %v1277 = vunpack.c.l.b16 %v348
  %v1278 = vunpack.c.h.b16 %v348
  %v1279 = vunpack.c.l.b16 %v349
  %v1280 = vunpack.c.h.b16 %v349
  %v1281 = vunpack.c.l.b16 %v350
  %v1282 = vunpack.c.l.b16 %v351
  %v1283 = vunpack.c.h.b16 %v351
  %v1284 = vunpack.c.l.b16 %v352
  %v1285 = vunpack.c.h.b16 %v352
  %v1286 = vunpack.c.l.b16 %v353
  %v1287 = vpack.c.b16 %v732, %v727
  %v1288 = vpack.c.b16 %v733, %v728
  %v1289 = vpack.c.b16 %v734, %v729
  %v1290 = vpack.c.b16 %v735, %v730
  %v1291 = vpack.c.b16 %v736, %v731
  %v1292 = vpack.c.b16 %v742, %v737
  %v1293 = vpack.c.b16 %v743, %v738
  %v1294 = vpack.c.b16 %v744, %v739
  %v1295 = vpack.c.b16 %v745, %v740
  %v1296 = vpack.c.b16 %v746, %v741
  %v1297 = vpack.c.b16 %v752, %v747
  %v1298 = vpack.c.b16 %v753, %v748
  %v1299 = vpack.c.b16 %v754, %v749
  %v1300 = vpack.c.b16 %v755, %v750
  %v1301 = vpack.c.b16 %v756, %v751
  %v1302 = vpack.c.b16 %v762, %v757
  %v1303 = vpack.c.b16 %v763, %v758
  %v1304 = vpack.c.b16 %v764, %v759
  %v1305 = vpack.c.b16 %v765, %v760
  %v1306 = vpack.c.b16 %v766, %v761
  %v1307 = vpack.c.b16 %v772, %v767
  %v1308 = vpack.c.b16 %v773, %v768
  %v1309 = vpack.c.b16 %v774, %v769
  %v1310 = vpack.c.b16 %v775, %v770
  %v1311 = vpack.c.b16 %v776, %v771
  %v1312 = vpack.c.b16 %v782, %v777
  %v1313 = vpack.c.b16 %v783, %v778
  %v1314 = vpack.c.b16 %v784, %v779
  %v1315 = vpack.c.b16 %v785, %v780
  %v1316 = vpack.c.b16 %v786, %v781
  %v1317 = vpack.c.b16 %v792, %v787
  %v1318 = vpack.c.b16 %v793, %v788
  %v1319 = vpack.c.b16 %v794, %v789
  %v1320 = vpack.c.b16 %v795, %v790
  %v1321 = vpack.c.b16 %v796, %v791
  %v1322 = vpack.c.b16 %v802, %v797
  %v1323 = vpack.c.b16 %v803, %v798
  %v1324 = vpack.c.b16 %v804, %v799
  %v1325 = vpack.c.b16 %v805, %v800
  %v1326 = vpack.c.b16 %v806, %v801
  %v1327 = vpack.c.b16 %v812, %v807
  %v1328 = vpack.c.b16 %v813, %v808
  %v1329 = vpack.c.b16 %v814, %v809
  %v1330 = vpack.c.b16 %v815, %v810
  %v1331 = vpack.c.b16 %v816, %v811
  %v1332 = vpack.c.b16 %v822, %v817
  %v1333 = vpack.c.b16 %v823, %v818
  %v1334 = vpack.c.b16 %v824, %v819
  %v1335 = vpack.c.b16 %v825, %v820
  %v1336 = vpack.c.b16 %v826, %v821
  %v1337 = vpack.c.b16 %v832, %v827
  %v1338 = vpack.c.b16 %v833, %v828
  %v1339 = vpack.c.b16 %v834, %v829
  %v1340 = vpack.c.b16 %v835, %v830
  %v1341 = vpack.c.b16 %v836, %v831
  %v1342 = vpack.c.b16 %v842, %v837
  %v1343 = vpack.c.b16 %v843, %v838
  %v1344 = vpack.c.b16 %v844, %v839
  %v1345 = vpack.c.b16 %v845, %v840
  %v1346 = vpack.c.b16 %v846, %v841
  %v1347 = vpack.c.b16 %v852, %v847
  %v1348 = vpack.c.b16 %v853, %v848
  %v1349 = vpack.c.b16 %v854, %v849
  %v1350 = vpack.c.b16 %v855, %v850
  %v1351 = vpack.c.b16 %v856, %v851
  %v1352 = vpack.c.b16 %v862, %v857
  %v1353 = vpack.c.b16 %v863, %v858
  %v1354 = vpack.c.b16 %v864, %v859
  %v1355 = vpack.c.b16 %v865, %v860
  %v1356 = vpack.c.b16 %v866, %v861
  %v1357 = vpack.c.b16 %v872, %v867
  %v1358 = vpack.c.b16 %v873, %v868
  %v1359 = vpack.c.b16 %v874, %v869
  %v1360 = vpack.c.b16 %v875, %v870
  %v1361 = vpack.c.b16 %v876, %v871
  %v1362 = vpack.c.b16 %v882, %v877
  %v1363 = vpack.c.b16 %v883, %v878
  %v1364 = vpack.c.b16 %v884, %v879
  %v1365 = vpack.c.b16 %v885, %v880
  %v1366 = vpack.c.b16 %v886, %v881
  %v1367 = vpack.c.b16 %v892, %v887
  %v1368 = vpack.c.b16 %v893, %v888
  %v1369 = vpack.c.b16 %v894, %v889
  %v1370 = vpack.c.b16 %v895, %v890
  %v1371 = vpack.c.b16 %v896, %v891
  %v1372 = vpack.c.b16 %v902, %v897
  %v1373 = vpack.c.b16 %v903, %v898
  %v1374 = vpack.c.b16 %v904, %v899
  %v1375 = vpack.c.b16 %v905, %v900
  %v1376 = vpack.c.b16 %v906, %v901
  %v1377 = vpack.c.b16 %v912, %v907
  %v1378 = vpack.c.b16 %v913, %v908
  %v1379 = vpack.c.b16 %v914, %v909
  %v1380 = vpack.c.b16 %v915, %v910
  %v1381 = vpack.c.b16 %v916, %v911
  %v1382 = vpack.c.b16 %v922, %v917
  %v1383 = vpack.c.b16 %v923, %v918
  %v1384 = vpack.c.b16 %v924, %v919
  %v1385 = vpack.c.b16 %v925, %v920
  %v1386 = vpack.c.b16 %v926, %v921
  %v1387 = vpack.c.b16 %v932, %v927
  %v1388 = vpack.c.b16 %v933, %v928
  %v1389 = vpack.c.b16 %v934, %v929
  %v1390 = vpack.c.b16 %v935, %v930
  %v1391 = vpack.c.b16 %v936, %v931
  %v1392 = vpack.c.b16 %v942, %v937
  %v1393 = vpack.c.b16 %v943, %v938
  %v1394 = vpack.c.b16 %v944, %v939
  %v1395 = vpack.c.b16 %v945, %v940
  %v1396 = vpack.c.b16 %v946, %v941
  %v1397 = vpack.c.b16 %v952, %v947
  %v1398 = vpack.c.b16 %v953, %v948
  %v1399 = vpack.c.b16 %v954, %v949
  %v1400 = vpack.c.b16 %v955, %v950
  %v1401 = vpack.c.b16 %v956, %v951
  %v1402 = vpack.c.b16 %v962, %v957
  %v1403 = vpack.c.b16 %v963, %v958
  %v1404 = vpack.c.b16 %v964, %v959
  %v1405 = vpack.c.b16 %v965, %v960
  %v1406 = vpack.c.b16 %v966, %v961
  %v1407 = vpack.c.b16 %v972, %v967
  %v1408 = vpack.c.b16 %v973, %v968
  %v1409 = vpack.c.b16 %v974, %v969
  %v1410 = vpack.c.b16 %v975, %v970
  %v1411 = vpack.c.b16 %v976, %v971
  %v1412 = vpack.c.b16 %v982, %v977
  %v1413 = vpack.c.b16 %v983, %v978
  %v1414 = vpack.c.b16 %v984, %v979
  %v1415 = vpack.c.b16 %v985, %v980
  %v1416 = vpack.c.b16 %v986, %v981
  %v1417 = vpack.c.b16 %v992, %v987
  %v1418 = vpack.c.b16 %v993, %v988
  %v1419 = vpack.c.b16 %v994, %v989
  %v1420 = vpack.c.b16 %v995, %v990
  %v1421 = vpack.c.b16 %v996, %v991
  %v1422 = vpack.c.b16 %v1002, %v997
  %v1423 = vpack.c.b16 %v1003, %v998
  %v1424 = vpack.c.b16 %v1004, %v999
  %v1425 = vpack.c.b16 %v1005, %v1000
  %v1426 = vpack.c.b16 %v1006, %v1001
  %v1427 = vpack.c.b16 %v1012, %v1007
  %v1428 = vpack.c.b16 %v1013, %v1008
  %v1429 = vpack.c.b16 %v1014, %v1009
  %v1430 = vpack.c.b16 %v1015, %v1010
  %v1431 = vpack.c.b16 %v1016, %v1011
  %v1432 = vpack.c.b16 %v1022, %v1017
  %v1433 = vpack.c.b16 %v1023, %v1018
  %v1434 = vpack.c.b16 %v1024, %v1019
  %v1435 = vpack.c.b16 %v1025, %v1020
  %v1436 = vpack.c.b16 %v1026, %v1021
  %v1437 = vpack.c.b16 %v1032, %v1027
  %v1438 = vpack.c.b16 %v1033, %v1028
  %v1439 = vpack.c.b16 %v1034, %v1029
  %v1440 = vpack.c.b16 %v1035, %v1030
  %v1441 = vpack.c.b16 %v1036, %v1031
  %v1442 = vpack.c.b16 %v1042, %v1037
  %v1443 = vpack.c.b16 %v1043, %v1038
  %v1444 = vpack.c.b16 %v1044, %v1039
  %v1445 = vpack.c.b16 %v1045, %v1040
  %v1446 = vpack.c.b16 %v1046, %v1041
  %v1447 = vpack.c.b16 %v1052, %v1047
  %v1448 = vpack.c.b16 %v1053, %v1048
  %v1449 = vpack.c.b16 %v1054, %v1049
  %v1450 = vpack.c.b16 %v1055, %v1050
  %v1451 = vpack.c.b16 %v1056, %v1051
  %v1452 = vpack.c.b16 %v1062, %v1057
  %v1453 = vpack.c.b16 %v1063, %v1058
  %v1454 = vpack.c.b16 %v1064, %v1059
  %v1455 = vpack.c.b16 %v1065, %v1060
  %v1456 = vpack.c.b16 %v1066, %v1061
  %v1457 = vpack.c.b16 %v1072, %v1067
  %v1458 = vpack.c.b16 %v1073, %v1068
  %v1459 = vpack.c.b16 %v1074, %v1069
  %v1460 = vpack.c.b16 %v1075, %v1070
  %v1461 = vpack.c.b16 %v1076, %v1071
  %v1462 = vpack.c.b16 %v1082, %v1077
  %v1463 = vpack.c.b16 %v1083, %v1078
  %v1464 = vpack.c.b16 %v1084, %v1079
  %v1465 = vpack.c.b16 %v1085, %v1080
  %v1466 = vpack.c.b16 %v1086, %v1081
  %v1467 = vpack.c.b16 %v1092, %v1087
  %v1468 = vpack.c.b16 %v1093, %v1088
  %v1469 = vpack.c.b16 %v1094, %v1089
  %v1470 = vpack.c.b16 %v1095, %v1090
  %v1471 = vpack.c.b16 %v1096, %v1091
  %v1472 = vpack.c.b16 %v1102, %v1097
  %v1473 = vpack.c.b16 %v1103, %v1098
  %v1474 = vpack.c.b16 %v1104, %v1099
  %v1475 = vpack.c.b16 %v1105, %v1100
  %v1476 = vpack.c.b16 %v1106, %v1101
  %v1477 = vpack.c.b16 %v1112, %v1107
  %v1478 = vpack.c.b16 %v1113, %v1108
  %v1479 = vpack.c.b16 %v1114, %v1109
  %v1480 = vpack.c.b16 %v1115, %v1110
  %v1481 = vpack.c.b16 %v1116, %v1111
  %v1482 = vpack.c.b16 %v1122, %v1117
  %v1483 = vpack.c.b16 %v1123, %v1118
  %v1484 = vpack.c.b16 %v1124, %v1119
  %v1485 = vpack.c.b16 %v1125, %v1120
  %v1486 = vpack.c.b16 %v1126, %v1121
  %v1487 = vpack.c.b16 %v1132, %v1127
  %v1488 = vpack.c.b16 %v1133, %v1128
  %v1489 = vpack.c.b16 %v1134, %v1129
  %v1490 = vpack.c.b16 %v1135, %v1130
  %v1491 = vpack.c.b16 %v1136, %v1131
  %v1492 = vpack.c.b16 %v1142, %v1137
  %v1493 = vpack.c.b16 %v1143, %v1138
  %v1494 = vpack.c.b16 %v1144, %v1139
  %v1495 = vpack.c.b16 %v1145, %v1140
  %v1496 = vpack.c.b16 %v1146, %v1141
  %v1497 = vpack.c.b16 %v1152, %v1147
  %v1498 = vpack.c.b16 %v1153, %v1148
  %v1499 = vpack.c.b16 %v1154, %v1149
  %v1500 = vpack.c.b16 %v1155, %v1150
  %v1501 = vpack.c.b16 %v1156, %v1151
  %v1502 = vpack.c.b16 %v1162, %v1157
  %v1503 = vpack.c.b16 %v1163, %v1158
  %v1504 = vpack.c.b16 %v1164, %v1159
  %v1505 = vpack.c.b16 %v1165, %v1160
  %v1506 = vpack.c.b16 %v1166, %v1161
  %v1507 = vpack.c.b16 %v1172, %v1167
  %v1508 = vpack.c.b16 %v1173, %v1168
  %v1509 = vpack.c.b16 %v1174, %v1169
  %v1510 = vpack.c.b16 %v1175, %v1170
  %v1511 = vpack.c.b16 %v1176, %v1171
  %v1512 = vpack.c.b16 %v1182, %v1177
  %v1513 = vpack.c.b16 %v1183, %v1178
  %v1514 = vpack.c.b16 %v1184, %v1179
  %v1515 = vpack.c.b16 %v1185, %v1180
  %v1516 = vpack.c.b16 %v1186, %v1181
  %v1517 = vpack.c.b16 %v1192, %v1187
  %v1518 = vpack.c.b16 %v1193, %v1188
  %v1519 = vpack.c.b16 %v1194, %v1189
  %v1520 = vpack.c.b16 %v1195, %v1190
  %v1521 = vpack.c.b16 %v1196, %v1191
  %v1522 = vpack.c.b16 %v1202, %v1197
  %v1523 = vpack.c.b16 %v1203, %v1198
  %v1524 = vpack.c.b16 %v1204, %v1199
  %v1525 = vpack.c.b16 %v1205, %v1200
  %v1526 = vpack.c.b16 %v1206, %v1201
  %v1527 = vpack.c.b16 %v1212, %v1207
  %v1528 = vpack.c.b16 %v1213, %v1208
  %v1529 = vpack.c.b16 %v1214, %v1209
  %v1530 = vpack.c.b16 %v1215, %v1210
  %v1531 = vpack.c.b16 %v1216, %v1211
  %v1532 = vpack.c.b16 %v1222, %v1217
  %v1533 = vpack.c.b16 %v1223, %v1218
  %v1534 = vpack.c.b16 %v1224, %v1219
  %v1535 = vpack.c.b16 %v1225, %v1220
  %v1536 = vpack.c.b16 %v1226, %v1221
  %v1537 = vpack.c.b16 %v1232, %v1227
  %v1538 = vpack.c.b16 %v1233, %v1228
  %v1539 = vpack.c.b16 %v1234, %v1229
  %v1540 = vpack.c.b16 %v1235, %v1230
  %v1541 = vpack.c.b16 %v1236, %v1231
  %v1542 = vpack.c.b16 %v1242, %v1237
  %v1543 = vpack.c.b16 %v1243, %v1238
  %v1544 = vpack.c.b16 %v1244, %v1239
  %v1545 = vpack.c.b16 %v1245, %v1240
  %v1546 = vpack.c.b16 %v1246, %v1241
  %v1547 = vpack.c.b16 %v1252, %v1247
  %v1548 = vpack.c.b16 %v1253, %v1248
  %v1549 = vpack.c.b16 %v1254, %v1249
  %v1550 = vpack.c.b16 %v1255, %v1250
  %v1551 = vpack.c.b16 %v1256, %v1251
  %v1552 = vpack.c.b16 %v1262, %v1257
  %v1553 = vpack.c.b16 %v1263, %v1258
  %v1554 = vpack.c.b16 %v1264, %v1259
  %v1555 = vpack.c.b16 %v1265, %v1260
  %v1556 = vpack.c.b16 %v1266, %v1261
  %v1557 = vpack.c.b16 %v1272, %v1267
  %v1558 = vpack.c.b16 %v1273, %v1268
  %v1559 = vpack.c.b16 %v1274, %v1269
  %v1560 = vpack.c.b16 %v1275, %v1270
  %v1561 = vpack.c.b16 %v1276, %v1271
  %v1562 = vpack.c.b16 %v1282, %v1277
  %v1563 = vpack.c.b16 %v1283, %v1278
  %v1564 = vpack.c.b16 %v1284, %v1279
  %v1565 = vpack.c.b16 %v1285, %v1280
  %v1566 = vpack.c.b16 %v1286, %v1281
  %1847 = vmatpush.bf16.msra.mxu0 %v1322
  %1848 = vmatpush.bf16.msra.mxu0 %v1317
  %1849 = vmatpush.bf16.msra.mxu0 %v1312
  %1850 = vmatpush.bf16.msra.mxu0 %v1307
  %1851 = vmatpush.bf16.msra.mxu0 %v1302
  %1852 = vmatpush.bf16.msra.mxu0 %v1297
  %1853 = vmatpush.bf16.msra.mxu0 %v1292
  %1854 = vmatpush.bf16.msra.mxu0 %v1287
  %1855 = vmatmul.bf16.gmra.mxu0 %v377
  %v1856 = vpop.f32.mrf.mxu0
  %v1857 = vadd.f32 %v356, %v1856
  %v1858 = vpop.f32.mrf.mxu0
  %1859 = vdwg.mxu0
  %1860 = vmatpush.bf16.msra.mxu0 %v1362
  %1861 = vmatpush.bf16.msra.mxu0 %v1357
  %1862 = vmatpush.bf16.msra.mxu0 %v1352
  %1863 = vmatpush.bf16.msra.mxu0 %v1347
  %1864 = vmatpush.bf16.msra.mxu0 %v1342
  %1865 = vmatpush.bf16.msra.mxu0 %v1337
  %1866 = vmatpush.bf16.msra.mxu0 %v1332
  %1867 = vmatpush.bf16.msra.mxu0 %v1327
  %1868 = vmatmul.bf16.gmra.mxu0 %v378
  %v1869 = vpop.f32.mrf.mxu0
  %v1870 = vadd.f32 %v1857, %v1869
  %v1871 = vpop.f32.mrf.mxu0
  %1872 = vdwg.mxu0
  %1873 = vmatpush.bf16.msra.mxu0 %v1402
  %1874 = vmatpush.bf16.msra.mxu0 %v1397
  %1875 = vmatpush.bf16.msra.mxu0 %v1392
  %1876 = vmatpush.bf16.msra.mxu0 %v1387
  %1877 = vmatpush.bf16.msra.mxu0 %v1382
  %1878 = vmatpush.bf16.msra.mxu0 %v1377
  %1879 = vmatpush.bf16.msra.mxu0 %v1372
  %1880 = vmatpush.bf16.msra.mxu0 %v1367
  %1881 = vmatmul.bf16.gmra.mxu0 %v379
  %v1882 = vpop.f32.mrf.mxu0
  %v1883 = vadd.f32 %v1870, %v1882
  %v1884 = vpop.f32.mrf.mxu0
  %1885 = vdwg.mxu0
  %1886 = vmatpush.bf16.msra.mxu0 %v1442
  %1887 = vmatpush.bf16.msra.mxu0 %v1437
  %1888 = vmatpush.bf16.msra.mxu0 %v1432
  %1889 = vmatpush.bf16.msra.mxu0 %v1427
  %1890 = vmatpush.bf16.msra.mxu0 %v1422
  %1891 = vmatpush.bf16.msra.mxu0 %v1417
  %1892 = vmatpush.bf16.msra.mxu0 %v1412
  %1893 = vmatpush.bf16.msra.mxu0 %v1407
  %1894 = vmatmul.bf16.gmra.mxu0 %v380
  %v1895 = vpop.f32.mrf.mxu0
  %v1896 = vadd.f32 %v1883, %v1895
  %v1897 = vpop.f32.mrf.mxu0
  %1898 = vdwg.mxu0
  %1899 = vmatpush.bf16.msra.mxu0 %v1482
  %1900 = vmatpush.bf16.msra.mxu0 %v1477
  %1901 = vmatpush.bf16.msra.mxu0 %v1472
  %1902 = vmatpush.bf16.msra.mxu0 %v1467
  %1903 = vmatpush.bf16.msra.mxu0 %v1462
  %1904 = vmatpush.bf16.msra.mxu0 %v1457
  %1905 = vmatpush.bf16.msra.mxu0 %v1452
  %1906 = vmatpush.bf16.msra.mxu0 %v1447
  %1907 = vmatmul.bf16.gmra.mxu0 %v381
  %v1908 = vpop.f32.mrf.mxu0
  %v1909 = vadd.f32 %v1896, %v1908
  %v1910 = vpop.f32.mrf.mxu0
  %1911 = vdwg.mxu0
  %1912 = vmatpush.bf16.msra.mxu0 %v1522
  %1913 = vmatpush.bf16.msra.mxu0 %v1517
  %1914 = vmatpush.bf16.msra.mxu0 %v1512
  %1915 = vmatpush.bf16.msra.mxu0 %v1507
  %1916 = vmatpush.bf16.msra.mxu0 %v1502
  %1917 = vmatpush.bf16.msra.mxu0 %v1497
  %1918 = vmatpush.bf16.msra.mxu0 %v1492
  %1919 = vmatpush.bf16.msra.mxu0 %v1487
  %1920 = vmatmul.bf16.gmra.mxu0 %v382
  %v1921 = vpop.f32.mrf.mxu0
  %v1922 = vadd.f32 %v1909, %v1921
  %v1923 = vpop.f32.mrf.mxu0
  %1924 = vdwg.mxu0
  %1925 = vmatpush.bf16.msra.mxu0 %v1562
  %1926 = vmatpush.bf16.msra.mxu0 %v1557
  %1927 = vmatpush.bf16.msra.mxu0 %v1552
  %1928 = vmatpush.bf16.msra.mxu0 %v1547
  %1929 = vmatpush.bf16.msra.mxu0 %v1542
  %1930 = vmatpush.bf16.msra.mxu0 %v1537
  %1931 = vmatpush.bf16.msra.mxu0 %v1532
  %1932 = vmatpush.bf16.msra.mxu0 %v1527
  %1933 = vmatmul.bf16.gmra.mxu0 %v383
  %v1934 = vpop.f32.mrf.mxu0
  %v1935 = vadd.f32 %v1922, %v1934
  %v1936 = vpop.f32.mrf.mxu0
  %1937 = vdwg.mxu0
  %1938 = vmatpush.bf16.msra.mxu0 %v1323
  %1939 = vmatpush.bf16.msra.mxu0 %v1318
  %1940 = vmatpush.bf16.msra.mxu0 %v1313
  %1941 = vmatpush.bf16.msra.mxu0 %v1308
  %1942 = vmatpush.bf16.msra.mxu0 %v1303
  %1943 = vmatpush.bf16.msra.mxu0 %v1298
  %1944 = vmatpush.bf16.msra.mxu0 %v1293
  %1945 = vmatpush.bf16.msra.mxu0 %v1288
  %1946 = vmatmul.bf16.gmra.mxu0 %v377
  %v1947 = vpop.f32.mrf.mxu0
  %v1948 = vadd.f32 %v357, %v1947
  %v1949 = vpop.f32.mrf.mxu0
  %1950 = vdwg.mxu0
  %1951 = vmatpush.bf16.msra.mxu0 %v1363
  %1952 = vmatpush.bf16.msra.mxu0 %v1358
  %1953 = vmatpush.bf16.msra.mxu0 %v1353
  %1954 = vmatpush.bf16.msra.mxu0 %v1348
  %1955 = vmatpush.bf16.msra.mxu0 %v1343
  %1956 = vmatpush.bf16.msra.mxu0 %v1338
  %1957 = vmatpush.bf16.msra.mxu0 %v1333
  %1958 = vmatpush.bf16.msra.mxu0 %v1328
  %1959 = vmatmul.bf16.gmra.mxu0 %v378
  %v1960 = vpop.f32.mrf.mxu0
  %v1961 = vadd.f32 %v1948, %v1960
  %v1962 = vpop.f32.mrf.mxu0
  %1963 = vdwg.mxu0
  %1964 = vmatpush.bf16.msra.mxu0 %v1403
  %1965 = vmatpush.bf16.msra.mxu0 %v1398
  %1966 = vmatpush.bf16.msra.mxu0 %v1393
  %1967 = vmatpush.bf16.msra.mxu0 %v1388
  %1968 = vmatpush.bf16.msra.mxu0 %v1383
  %1969 = vmatpush.bf16.msra.mxu0 %v1378
  %1970 = vmatpush.bf16.msra.mxu0 %v1373
  %1971 = vmatpush.bf16.msra.mxu0 %v1368
  %1972 = vmatmul.bf16.gmra.mxu0 %v379
  %v1973 = vpop.f32.mrf.mxu0
  %v1974 = vadd.f32 %v1961, %v1973
  %v1975 = vpop.f32.mrf.mxu0
  %1976 = vdwg.mxu0
  %1977 = vmatpush.bf16.msra.mxu0 %v1443
  %1978 = vmatpush.bf16.msra.mxu0 %v1438
  %1979 = vmatpush.bf16.msra.mxu0 %v1433
  %1980 = vmatpush.bf16.msra.mxu0 %v1428
  %1981 = vmatpush.bf16.msra.mxu0 %v1423
  %1982 = vmatpush.bf16.msra.mxu0 %v1418
  %1983 = vmatpush.bf16.msra.mxu0 %v1413
  %1984 = vmatpush.bf16.msra.mxu0 %v1408
  %1985 = vmatmul.bf16.gmra.mxu0 %v380
  %v1986 = vpop.f32.mrf.mxu0
  %v1987 = vadd.f32 %v1974, %v1986
  %v1988 = vpop.f32.mrf.mxu0
  %1989 = vdwg.mxu0
  %1990 = vmatpush.bf16.msra.mxu0 %v1483
  %1991 = vmatpush.bf16.msra.mxu0 %v1478
  %1992 = vmatpush.bf16.msra.mxu0 %v1473
  %1993 = vmatpush.bf16.msra.mxu0 %v1468
  %1994 = vmatpush.bf16.msra.mxu0 %v1463
  %1995 = vmatpush.bf16.msra.mxu0 %v1458
  %1996 = vmatpush.bf16.msra.mxu0 %v1453
  %1997 = vmatpush.bf16.msra.mxu0 %v1448
  %1998 = vmatmul.bf16.gmra.mxu0 %v381
  %v1999 = vpop.f32.mrf.mxu0
  %v2000 = vadd.f32 %v1987, %v1999
  %v2001 = vpop.f32.mrf.mxu0
  %2002 = vdwg.mxu0
  %2003 = vmatpush.bf16.msra.mxu0 %v1523
  %2004 = vmatpush.bf16.msra.mxu0 %v1518
  %2005 = vmatpush.bf16.msra.mxu0 %v1513
  %2006 = vmatpush.bf16.msra.mxu0 %v1508
  %2007 = vmatpush.bf16.msra.mxu0 %v1503
  %2008 = vmatpush.bf16.msra.mxu0 %v1498
  %2009 = vmatpush.bf16.msra.mxu0 %v1493
  %2010 = vmatpush.bf16.msra.mxu0 %v1488
  %2011 = vmatmul.bf16.gmra.mxu0 %v382
  %v2012 = vpop.f32.mrf.mxu0
  %v2013 = vadd.f32 %v2000, %v2012
  %v2014 = vpop.f32.mrf.mxu0
  %2015 = vdwg.mxu0
  %2016 = vmatpush.bf16.msra.mxu0 %v1563
  %2017 = vmatpush.bf16.msra.mxu0 %v1558
  %2018 = vmatpush.bf16.msra.mxu0 %v1553
  %2019 = vmatpush.bf16.msra.mxu0 %v1548
  %2020 = vmatpush.bf16.msra.mxu0 %v1543
  %2021 = vmatpush.bf16.msra.mxu0 %v1538
  %2022 = vmatpush.bf16.msra.mxu0 %v1533
  %2023 = vmatpush.bf16.msra.mxu0 %v1528
  %2024 = vmatmul.bf16.gmra.mxu0 %v383
  %v2025 = vpop.f32.mrf.mxu0
  %v2026 = vadd.f32 %v2013, %v2025
  %v2027 = vpop.f32.mrf.mxu0
  %2028 = vdwg.mxu0
  %2029 = vmatpush.bf16.msra.mxu0 %v1324
  %2030 = vmatpush.bf16.msra.mxu0 %v1319
  %2031 = vmatpush.bf16.msra.mxu0 %v1314
  %2032 = vmatpush.bf16.msra.mxu0 %v1309
  %2033 = vmatpush.bf16.msra.mxu0 %v1304
  %2034 = vmatpush.bf16.msra.mxu0 %v1299
  %2035 = vmatpush.bf16.msra.mxu0 %v1294
  %2036 = vmatpush.bf16.msra.mxu0 %v1289
  %2037 = vmatmul.bf16.gmra.mxu0 %v377
  %v2038 = vpop.f32.mrf.mxu0
  %v2039 = vadd.f32 %v358, %v2038
  %v2040 = vpop.f32.mrf.mxu0
  %2041 = vdwg.mxu0
  %2042 = vmatpush.bf16.msra.mxu0 %v1364
  %2043 = vmatpush.bf16.msra.mxu0 %v1359
  %2044 = vmatpush.bf16.msra.mxu0 %v1354
  %2045 = vmatpush.bf16.msra.mxu0 %v1349
  %2046 = vmatpush.bf16.msra.mxu0 %v1344
  %2047 = vmatpush.bf16.msra.mxu0 %v1339
  %2048 = vmatpush.bf16.msra.mxu0 %v1334
  %2049 = vmatpush.bf16.msra.mxu0 %v1329
  %2050 = vmatmul.bf16.gmra.mxu0 %v378
  %v2051 = vpop.f32.mrf.mxu0
  %v2052 = vadd.f32 %v2039, %v2051
  %v2053 = vpop.f32.mrf.mxu0
  %2054 = vdwg.mxu0
  %2055 = vmatpush.bf16.msra.mxu0 %v1404
  %2056 = vmatpush.bf16.msra.mxu0 %v1399
  %2057 = vmatpush.bf16.msra.mxu0 %v1394
  %2058 = vmatpush.bf16.msra.mxu0 %v1389
  %2059 = vmatpush.bf16.msra.mxu0 %v1384
  %2060 = vmatpush.bf16.msra.mxu0 %v1379
  %2061 = vmatpush.bf16.msra.mxu0 %v1374
  %2062 = vmatpush.bf16.msra.mxu0 %v1369
  %2063 = vmatmul.bf16.gmra.mxu0 %v379
  %v2064 = vpop.f32.mrf.mxu0
  %v2065 = vadd.f32 %v2052, %v2064
  %v2066 = vpop.f32.mrf.mxu0
  %2067 = vdwg.mxu0
  %2068 = vmatpush.bf16.msra.mxu0 %v1444
  %2069 = vmatpush.bf16.msra.mxu0 %v1439
  %2070 = vmatpush.bf16.msra.mxu0 %v1434
  %2071 = vmatpush.bf16.msra.mxu0 %v1429
  %2072 = vmatpush.bf16.msra.mxu0 %v1424
  %2073 = vmatpush.bf16.msra.mxu0 %v1419
  %2074 = vmatpush.bf16.msra.mxu0 %v1414
  %2075 = vmatpush.bf16.msra.mxu0 %v1409
  %2076 = vmatmul.bf16.gmra.mxu0 %v380
  %v2077 = vpop.f32.mrf.mxu0
  %v2078 = vadd.f32 %v2065, %v2077
  %v2079 = vpop.f32.mrf.mxu0
  %2080 = vdwg.mxu0
  %2081 = vmatpush.bf16.msra.mxu0 %v1484
  %2082 = vmatpush.bf16.msra.mxu0 %v1479
  %2083 = vmatpush.bf16.msra.mxu0 %v1474
  %2084 = vmatpush.bf16.msra.mxu0 %v1469
  %2085 = vmatpush.bf16.msra.mxu0 %v1464
  %2086 = vmatpush.bf16.msra.mxu0 %v1459
  %2087 = vmatpush.bf16.msra.mxu0 %v1454
  %2088 = vmatpush.bf16.msra.mxu0 %v1449
  %2089 = vmatmul.bf16.gmra.mxu0 %v381
  %v2090 = vpop.f32.mrf.mxu0
  %v2091 = vadd.f32 %v2078, %v2090
  %v2092 = vpop.f32.mrf.mxu0
  %2093 = vdwg.mxu0
  %2094 = vmatpush.bf16.msra.mxu0 %v1524
  %2095 = vmatpush.bf16.msra.mxu0 %v1519
  %2096 = vmatpush.bf16.msra.mxu0 %v1514
  %2097 = vmatpush.bf16.msra.mxu0 %v1509
  %2098 = vmatpush.bf16.msra.mxu0 %v1504
  %2099 = vmatpush.bf16.msra.mxu0 %v1499
  %2100 = vmatpush.bf16.msra.mxu0 %v1494
  %2101 = vmatpush.bf16.msra.mxu0 %v1489
  %2102 = vmatmul.bf16.gmra.mxu0 %v382
  %v2103 = vpop.f32.mrf.mxu0
  %v2104 = vadd.f32 %v2091, %v2103
  %v2105 = vpop.f32.mrf.mxu0
  %2106 = vdwg.mxu0
  %2107 = vmatpush.bf16.msra.mxu0 %v1564
  %2108 = vmatpush.bf16.msra.mxu0 %v1559
  %2109 = vmatpush.bf16.msra.mxu0 %v1554
  %2110 = vmatpush.bf16.msra.mxu0 %v1549
  %2111 = vmatpush.bf16.msra.mxu0 %v1544
  %2112 = vmatpush.bf16.msra.mxu0 %v1539
  %2113 = vmatpush.bf16.msra.mxu0 %v1534
  %2114 = vmatpush.bf16.msra.mxu0 %v1529
  %2115 = vmatmul.bf16.gmra.mxu0 %v383
  %v2116 = vpop.f32.mrf.mxu0
  %v2117 = vadd.f32 %v2104, %v2116
  %v2118 = vpop.f32.mrf.mxu0
  %2119 = vdwg.mxu0
  %2120 = vmatpush.bf16.msra.mxu0 %v1325
  %2121 = vmatpush.bf16.msra.mxu0 %v1320
  %2122 = vmatpush.bf16.msra.mxu0 %v1315
  %2123 = vmatpush.bf16.msra.mxu0 %v1310
  %2124 = vmatpush.bf16.msra.mxu0 %v1305
  %2125 = vmatpush.bf16.msra.mxu0 %v1300
  %2126 = vmatpush.bf16.msra.mxu0 %v1295
  %2127 = vmatpush.bf16.msra.mxu0 %v1290
  %2128 = vmatmul.bf16.gmra.mxu0 %v377
  %v2129 = vpop.f32.mrf.mxu0
  %v2130 = vadd.f32 %v359, %v2129
  %v2131 = vpop.f32.mrf.mxu0
  %2132 = vdwg.mxu0
  %2133 = vmatpush.bf16.msra.mxu0 %v1365
  %2134 = vmatpush.bf16.msra.mxu0 %v1360
  %2135 = vmatpush.bf16.msra.mxu0 %v1355
  %2136 = vmatpush.bf16.msra.mxu0 %v1350
  %2137 = vmatpush.bf16.msra.mxu0 %v1345
  %2138 = vmatpush.bf16.msra.mxu0 %v1340
  %2139 = vmatpush.bf16.msra.mxu0 %v1335
  %2140 = vmatpush.bf16.msra.mxu0 %v1330
  %2141 = vmatmul.bf16.gmra.mxu0 %v378
  %v2142 = vpop.f32.mrf.mxu0
  %v2143 = vadd.f32 %v2130, %v2142
  %v2144 = vpop.f32.mrf.mxu0
  %2145 = vdwg.mxu0
  %2146 = vmatpush.bf16.msra.mxu0 %v1405
  %2147 = vmatpush.bf16.msra.mxu0 %v1400
  %2148 = vmatpush.bf16.msra.mxu0 %v1395
  %2149 = vmatpush.bf16.msra.mxu0 %v1390
  %2150 = vmatpush.bf16.msra.mxu0 %v1385
  %2151 = vmatpush.bf16.msra.mxu0 %v1380
  %2152 = vmatpush.bf16.msra.mxu0 %v1375
  %2153 = vmatpush.bf16.msra.mxu0 %v1370
  %2154 = vmatmul.bf16.gmra.mxu0 %v379
  %v2155 = vpop.f32.mrf.mxu0
  %v2156 = vadd.f32 %v2143, %v2155
  %v2157 = vpop.f32.mrf.mxu0
  %2158 = vdwg.mxu0
  %2159 = vmatpush.bf16.msra.mxu0 %v1445
  %2160 = vmatpush.bf16.msra.mxu0 %v1440
  %2161 = vmatpush.bf16.msra.mxu0 %v1435
  %2162 = vmatpush.bf16.msra.mxu0 %v1430
  %2163 = vmatpush.bf16.msra.mxu0 %v1425
  %2164 = vmatpush.bf16.msra.mxu0 %v1420
  %2165 = vmatpush.bf16.msra.mxu0 %v1415
  %2166 = vmatpush.bf16.msra.mxu0 %v1410
  %2167 = vmatmul.bf16.gmra.mxu0 %v380
  %v2168 = vpop.f32.mrf.mxu0
  %v2169 = vadd.f32 %v2156, %v2168
  %v2170 = vpop.f32.mrf.mxu0
  %2171 = vdwg.mxu0
  %2172 = vmatpush.bf16.msra.mxu0 %v1485
  %2173 = vmatpush.bf16.msra.mxu0 %v1480
  %2174 = vmatpush.bf16.msra.mxu0 %v1475
  %2175 = vmatpush.bf16.msra.mxu0 %v1470
  %2176 = vmatpush.bf16.msra.mxu0 %v1465
  %2177 = vmatpush.bf16.msra.mxu0 %v1460
  %2178 = vmatpush.bf16.msra.mxu0 %v1455
  %2179 = vmatpush.bf16.msra.mxu0 %v1450
  %2180 = vmatmul.bf16.gmra.mxu0 %v381
  %v2181 = vpop.f32.mrf.mxu0
  %v2182 = vadd.f32 %v2169, %v2181
  %v2183 = vpop.f32.mrf.mxu0
  %2184 = vdwg.mxu0
  %2185 = vmatpush.bf16.msra.mxu0 %v1525
  %2186 = vmatpush.bf16.msra.mxu0 %v1520
  %2187 = vmatpush.bf16.msra.mxu0 %v1515
  %2188 = vmatpush.bf16.msra.mxu0 %v1510
  %2189 = vmatpush.bf16.msra.mxu0 %v1505
  %2190 = vmatpush.bf16.msra.mxu0 %v1500
  %2191 = vmatpush.bf16.msra.mxu0 %v1495
  %2192 = vmatpush.bf16.msra.mxu0 %v1490
  %2193 = vmatmul.bf16.gmra.mxu0 %v382
  %v2194 = vpop.f32.mrf.mxu0
  %v2195 = vadd.f32 %v2182, %v2194
  %v2196 = vpop.f32.mrf.mxu0
  %2197 = vdwg.mxu0
  %2198 = vmatpush.bf16.msra.mxu0 %v1565
  %2199 = vmatpush.bf16.msra.mxu0 %v1560
  %2200 = vmatpush.bf16.msra.mxu0 %v1555
  %2201 = vmatpush.bf16.msra.mxu0 %v1550
  %2202 = vmatpush.bf16.msra.mxu0 %v1545
  %2203 = vmatpush.bf16.msra.mxu0 %v1540
  %2204 = vmatpush.bf16.msra.mxu0 %v1535
  %2205 = vmatpush.bf16.msra.mxu0 %v1530
  %2206 = vmatmul.bf16.gmra.mxu0 %v383
  %v2207 = vpop.f32.mrf.mxu0
  %v2208 = vadd.f32 %v2195, %v2207
  %v2209 = vpop.f32.mrf.mxu0
  %2210 = vdwg.mxu0
  %2211 = vmatpush.bf16.msra.mxu0 %v1326
  %2212 = vmatpush.bf16.msra.mxu0 %v1321
  %2213 = vmatpush.bf16.msra.mxu0 %v1316
  %2214 = vmatpush.bf16.msra.mxu0 %v1311
  %2215 = vmatpush.bf16.msra.mxu0 %v1306
  %2216 = vmatpush.bf16.msra.mxu0 %v1301
  %2217 = vmatpush.bf16.msra.mxu0 %v1296
  %2218 = vmatpush.bf16.msra.mxu0 %v1291
  %2219 = vmatmul.bf16.gmra.mxu0 %v377
  %v2220 = vpop.f32.mrf.mxu0
  %v2221 = vadd.f32 %v360, %v2220
  %v2222 = vpop.f32.mrf.mxu0
  %2223 = vdwg.mxu0
  %2224 = vmatpush.bf16.msra.mxu0 %v1366
  %2225 = vmatpush.bf16.msra.mxu0 %v1361
  %2226 = vmatpush.bf16.msra.mxu0 %v1356
  %2227 = vmatpush.bf16.msra.mxu0 %v1351
  %2228 = vmatpush.bf16.msra.mxu0 %v1346
  %2229 = vmatpush.bf16.msra.mxu0 %v1341
  %2230 = vmatpush.bf16.msra.mxu0 %v1336
  %2231 = vmatpush.bf16.msra.mxu0 %v1331
  %2232 = vmatmul.bf16.gmra.mxu0 %v378
  %v2233 = vpop.f32.mrf.mxu0
  %v2234 = vadd.f32 %v2221, %v2233
  %v2235 = vpop.f32.mrf.mxu0
  %2236 = vdwg.mxu0
  %2237 = vmatpush.bf16.msra.mxu0 %v1406
  %2238 = vmatpush.bf16.msra.mxu0 %v1401
  %2239 = vmatpush.bf16.msra.mxu0 %v1396
  %2240 = vmatpush.bf16.msra.mxu0 %v1391
  %2241 = vmatpush.bf16.msra.mxu0 %v1386
  %2242 = vmatpush.bf16.msra.mxu0 %v1381
  %2243 = vmatpush.bf16.msra.mxu0 %v1376
  %2244 = vmatpush.bf16.msra.mxu0 %v1371
  %2245 = vmatmul.bf16.gmra.mxu0 %v379
  %v2246 = vpop.f32.mrf.mxu0
  %v2247 = vadd.f32 %v2234, %v2246
  %v2248 = vpop.f32.mrf.mxu0
  %2249 = vdwg.mxu0
  %2250 = vmatpush.bf16.msra.mxu0 %v1446
  %2251 = vmatpush.bf16.msra.mxu0 %v1441
  %2252 = vmatpush.bf16.msra.mxu0 %v1436
  %2253 = vmatpush.bf16.msra.mxu0 %v1431
  %2254 = vmatpush.bf16.msra.mxu0 %v1426
  %2255 = vmatpush.bf16.msra.mxu0 %v1421
  %2256 = vmatpush.bf16.msra.mxu0 %v1416
  %2257 = vmatpush.bf16.msra.mxu0 %v1411
  %2258 = vmatmul.bf16.gmra.mxu0 %v380
  %v2259 = vpop.f32.mrf.mxu0
  %v2260 = vadd.f32 %v2247, %v2259
  %v2261 = vpop.f32.mrf.mxu0
  %2262 = vdwg.mxu0
  %2263 = vmatpush.bf16.msra.mxu0 %v1486
  %2264 = vmatpush.bf16.msra.mxu0 %v1481
  %2265 = vmatpush.bf16.msra.mxu0 %v1476
  %2266 = vmatpush.bf16.msra.mxu0 %v1471
  %2267 = vmatpush.bf16.msra.mxu0 %v1466
  %2268 = vmatpush.bf16.msra.mxu0 %v1461
  %2269 = vmatpush.bf16.msra.mxu0 %v1456
  %2270 = vmatpush.bf16.msra.mxu0 %v1451
  %2271 = vmatmul.bf16.gmra.mxu0 %v381
  %v2272 = vpop.f32.mrf.mxu0
  %v2273 = vadd.f32 %v2260, %v2272
  %v2274 = vpop.f32.mrf.mxu0
  %2275 = vdwg.mxu0
  %2276 = vmatpush.bf16.msra.mxu0 %v1526
  %2277 = vmatpush.bf16.msra.mxu0 %v1521
  %2278 = vmatpush.bf16.msra.mxu0 %v1516
  %2279 = vmatpush.bf16.msra.mxu0 %v1511
  %2280 = vmatpush.bf16.msra.mxu0 %v1506
  %2281 = vmatpush.bf16.msra.mxu0 %v1501
  %2282 = vmatpush.bf16.msra.mxu0 %v1496
  %2283 = vmatpush.bf16.msra.mxu0 %v1491
  %2284 = vmatmul.bf16.gmra.mxu0 %v382
  %v2285 = vpop.f32.mrf.mxu0
  %v2286 = vadd.f32 %v2273, %v2285
  %v2287 = vpop.f32.mrf.mxu0
  %2288 = vdwg.mxu0
  %2289 = vmatpush.bf16.msra.mxu0 %v1566
  %2290 = vmatpush.bf16.msra.mxu0 %v1561
  %2291 = vmatpush.bf16.msra.mxu0 %v1556
  %2292 = vmatpush.bf16.msra.mxu0 %v1551
  %2293 = vmatpush.bf16.msra.mxu0 %v1546
  %2294 = vmatpush.bf16.msra.mxu0 %v1541
  %2295 = vmatpush.bf16.msra.mxu0 %v1536
  %2296 = vmatpush.bf16.msra.mxu0 %v1531
  %2297 = vmatmul.bf16.gmra.mxu0 %v383
  %v2298 = vpop.f32.mrf.mxu0
  %v2299 = vadd.f32 %v2286, %v2298
  %v2300 = vpop.f32.mrf.mxu0
  %2301 = vdwg.mxu0
  %v2302 = vmax.f32 %v1935, 0.0
  %v2303 = vmax.f32 %v2026, 0.0
  %v2304 = vmax.f32 %v2117, 0.0
  %v2305 = vmax.f32 %v2208, 0.0
  %v2306 = vmax.f32 %v2299, 0.0
  %2307 = vst [vmem:[%s3] sm:$0x3f] %v2302
  %2308 = vst [vmem:[%s3 + $0x8] sm:$0x3f] %v2303
  %2309 = vst [vmem:[%s3 + $0x10] sm:$0x3f] %v2304
  %2310 = vst [vmem:[%s3 + $0x18] sm:$0x3f] %v2305
  %vm2311 = vcmask 95232
  %2312 = vst.msk [vmem:[%s3 + $0x20] sm:$0x3f] %vm2311, %v2306
  // Predicated region
  $region14: #{_lambda_.6} parent=0 // pred_check
    _
  $region15: #{_lambda_.6} parent=0 // pred_check_branch
    %2314 = sbr.rel (0) target = $region17
  $region16: #{_lambda_.6} parent=0 // pred_region
    _
  $region17: #{_lambda_.6} parent=0 // pred_fallthru
    _
  // Predicated region
  $region18: #{_lambda_.6} parent=0 // pred_check
    _
  $region19: #{_lambda_.6} parent=0 // pred_check_branch
    %2316 = sbr.rel (0) target = $region21
  $region20: #{_lambda_.6} parent=0 // pred_region
    _
  $region21: #{_lambda_.6} parent=0 // pred_fallthru
    _

// kernel: _lambda_.7
$region0: #{_lambda_.7}
  #allocation0 [shape = 'u32[]', space=smem, size = 0x4, offset = 0x4, fixed_abs, tag = 'smem constant byte address 0x4 - core index']
  #allocation1 [shape = 'u32[72,128]{1,0:T(1,128)}', space=vmem, size = 0x9000, scoped, tag = 'internal scratch']
  %s0 = inlined_call_operand.vmem [shape: bf16[2,1572], index: 0, kind: input, shape index: {}]
  %s1 = inlined_call_operand.hbm [shape: bf16[1572,2048], index: 1, kind: input, shape index: {}]
  %s2 = inlined_call_operand.hbm [shape: f32[1,2048], index: 2, kind: input, shape index: {}]
  %s3 = inlined_call_operand.vmem [shape: f32[2,2048], index: 3, kind: output, shape index: {}]
  %s4 = sld [smem:[#allocation0]]
  $region53: #{_lambda_.7} parent=0
    _
  %s6 = ssub.s32 1, %s4
  %s7 = scalar_select 0, %s6, %s4
  $region1: #{_lambda_.7} parent=0
    #allocation2 [shape = 'u8[3227648]{0}', space=vmem, size = 0x314000, scoped, tag = 'input window, operand 1']
    #allocation3 [shape = 's32[2]{0}', space=sflag, size = 0x8, scoped, tag = 'scoped memory for _lambda_.7']
    #allocation4 [shape = 'u8[4096]{0}', space=vmem, size = 0x1000, scoped, tag = 'input window, operand 2']
    #allocation5 [shape = 's32[2]{0}', space=sflag, size = 0x8, scoped, tag = 'scoped memory for _lambda_.7']
    %8 = vsyncpa [#allocation3], 0
    %s9 = scalar_lea.sflag [#allocation3], 1
    %10 = vsyncpa %s9, 0
    %11 = vsyncpa [#allocation5], 0
    %s12 = scalar_lea.sflag [#allocation5], 1
    %13 = vsyncpa %s12, 0
    loop: start=0, step=1, limit=6
    $region2: #{_lambda_.7} parent=1 // loop_pre_header
      _
    $region3: #{_lambda_.7} parent=1 // loop_header
      %s15 = sphi 0, %s19
      %p16 = scmp.ge.s32.totalorder %s15, 6
      %s23 = sphi 0, %s23
      %s25 = sphi 0, %s23
      %s26 = sphi 0, %s25
      %s40 = sphi 0, %s26
      %s46 = sphi 0, %s48
      %s49 = sphi 0, %s46
      %s50 = sphi 0, %s49
      %s66 = sphi 0, %s50
      %s72 = sphi 0, %s74
      %s75 = sphi 0, %s72
      %s76 = sphi 0, %s75
      %s92 = sphi 0, %s76
      %s98 = sphi 0, %s100
      %s101 = sphi 0, %s98
      %s102 = sphi 0, %s101
      %s118 = sphi 0, %s102
    $region4: #{_lambda_.7} parent=1 // loop_header_branch
      %18 = sbr.rel (%p16) target = $region8
    $region5: #{_lambda_.7} parent=1 // loop_body
      %s20 = ssub.s32 %s15, 1
      %s21 = ssub.s32 %s15, 2
      %s22 = sadd.s32 %s15, 1
      %s24 = sadd.s32 %s23, 1
      %p27 = scmp.eq.s32.totalorder %s15, 3
      %p28 = scmp.ne.s32.totalorder %s23, %s25
      %p29 = scmp.eq.s32.totalorder %s15, 0
      %p30 = por %p28, %p29
      %p31 = scmp.ne.s32.totalorder %s23, %s25
      %p32 = scmp.eq.s32.totalorder %s20, 3
      %p33 = por %p31, %p32
      %p34 = scmp.ne.s32.totalorder %s25, %s26
      %p35 = scmp.eq.s32.totalorder %s20, 0
      %p36 = por %p34, %p35
      %p37 = scmp.ne.s32.totalorder %s25, %s26
      %p38 = scmp.eq.s32.totalorder %s21, 3
      %p39 = por %p37, %p38
      %p41 = scmp.ne.s32.totalorder %s26, %s40
      %p42 = scmp.eq.s32.totalorder %s21, 0
      %p43 = por %p41, %p42
      %s44 = ssub.s32 %s15, %s22
      %p45 = scmp.eq.s32.totalorder %s44, 0
      %s47 = sadd.s32 %s46, 1
      %s48 = scalar_select %p45, %s46, %s47
      %p51 = pneg %p45
      %p52 = scmp.eq.s32.totalorder %s15, 3
      %p53 = por %p51, %p52
      %p54 = scmp.ne.s32.totalorder %s46, %s49
      %p55 = scmp.eq.s32.totalorder %s15, 0
      %p56 = por %p54, %p55
      %p57 = scmp.ne.s32.totalorder %s46, %s49
      %p58 = scmp.eq.s32.totalorder %s20, 3
      %p59 = por %p57, %p58
      %p60 = scmp.ne.s32.totalorder %s49, %s50
      %p61 = scmp.eq.s32.totalorder %s20, 0
      %p62 = por %p60, %p61
      %p63 = scmp.ne.s32.totalorder %s49, %s50
      %p64 = scmp.eq.s32.totalorder %s21, 3
      %p65 = por %p63, %p64
      %p67 = scmp.ne.s32.totalorder %s50, %s66
      %p68 = scmp.eq.s32.totalorder %s21, 0
      %p69 = por %p67, %p68
      %s70 = ssub.s32 %s15, %s22
      %p71 = scmp.eq.s32.totalorder %s70, 0
      %s73 = sadd.s32 %s72, 1
      %s74 = scalar_select %p71, %s72, %s73
      %p77 = pneg %p71
      %p78 = scmp.eq.s32.totalorder %s15, 3
      %p79 = por %p77, %p78
      %p80 = scmp.ne.s32.totalorder %s72, %s75
      %p81 = scmp.eq.s32.totalorder %s15, 0
      %p82 = por %p80, %p81
      %p83 = scmp.ne.s32.totalorder %s72, %s75
      %p84 = scmp.eq.s32.totalorder %s20, 3
      %p85 = por %p83, %p84
      %p86 = scmp.ne.s32.totalorder %s75, %s76
      %p87 = scmp.eq.s32.totalorder %s20, 0
      %p88 = por %p86, %p87
      %p89 = scmp.ne.s32.totalorder %s75, %s76
      %p90 = scmp.eq.s32.totalorder %s21, 3
      %p91 = por %p89, %p90
      %p93 = scmp.ne.s32.totalorder %s76, %s92
      %p94 = scmp.eq.s32.totalorder %s21, 0
      %p95 = por %p93, %p94
      %s96 = ssub.s32 %s15, %s22
      %p97 = scmp.eq.s32.totalorder %s96, 0
      %s99 = sadd.s32 %s98, 1
      %s100 = scalar_select %p97, %s98, %s99
      %p103 = pneg %p97
      %p104 = scmp.eq.s32.totalorder %s15, 3
      %p105 = por %p103, %p104
      %p106 = scmp.ne.s32.totalorder %s98, %s101
      %p107 = scmp.eq.s32.totalorder %s15, 0
      %p108 = por %p106, %p107
      %p109 = scmp.ne.s32.totalorder %s98, %s101
      %p110 = scmp.eq.s32.totalorder %s20, 3
      %p111 = por %p109, %p110
      %p112 = scmp.ne.s32.totalorder %s101, %s102
      %p113 = scmp.eq.s32.totalorder %s20, 0
      %p114 = por %p112, %p113
      %p115 = scmp.ne.s32.totalorder %s101, %s102
      %p116 = scmp.eq.s32.totalorder %s21, 3
      %p117 = por %p115, %p116
      %p119 = scmp.ne.s32.totalorder %s102, %s118
      %p120 = scmp.eq.s32.totalorder %s21, 0
      %p121 = por %p119, %p120
      %p122 = scmp.le.s32.totalorder 1, %s15
      %p123 = scmp.lt.s32.totalorder %s15, 5
      %p124 = pnand %p122, %p123
      %p125 = pneg %p124
      // Predicated region
      $region9: #{_lambda_.7} parent=5 // pred_check
        _
      $region10: #{_lambda_.7} parent=5 // pred_check_branch
        %127 = sbr.rel (%p124) target = $region12
      $region11: #{_lambda_.7} parent=5 // pred_region
        %s128 = ssub.s32 %s15, 1
        // Predicated region
        $region13: #{_lambda_.7} parent=11 // pred_check
          %p129 = pneg %p36
        $region14: #{_lambda_.7} parent=11 // pred_check_branch
          %131 = sbr.rel (%p129) target = $region16
        $region15: #{_lambda_.7} parent=11 // pred_region
          _
        $region16: #{_lambda_.7} parent=11 // pred_fallthru
          _
      $region12: #{_lambda_.7} parent=5 // pred_fallthru
        _
      %p132 = scmp.lt.s32.totalorder %s15, 4
      // Predicated region
      $region17: #{_lambda_.7} parent=5 // pred_check
        %p133 = pneg %p132
      $region18: #{_lambda_.7} parent=5 // pred_check_branch
        %135 = sbr.rel (%p133) target = $region20
      $region19: #{_lambda_.7} parent=5 // pred_region
        // Predicated region
        $region21: #{_lambda_.7} parent=19 // pred_check
          %p136 = pneg %p56
        $region22: #{_lambda_.7} parent=19 // pred_check_branch
          %138 = sbr.rel (%p136) target = $region24
        $region23: #{_lambda_.7} parent=19 // pred_region
          %s139 = sand.u32 %s46, 1
          %s140 = scalar_lea.sflag [#allocation3], %s139
          %s141 = sand.u32 %s46, 1
          %s142 = smul.addr %s141, 3152
          %s143 = scalar_lea.vmem [#allocation2], %s142
          %s144 = smul.u32 4, %s15
          %146 = vsyncadd %s140, 0
          %s147 = smul.addr %s144, 4
          %s148 = scalar_lea.hbm %s1, %s147
          %s149 = sshll.u32 %s148, 4
          %s150 = int_to_ptr.hbm [resolvable:$true] %s149
          %s151 = sshll.u32 %s143, 4
          %s152 = int_to_ptr.vmem [resolvable:$true] %s151
          %157 = dma.hbm_to_vmem [thread:$0]  %s150, 50432, %s152, %s140, 1024, 256, 16
        $region24: #{_lambda_.7} parent=19 // pred_fallthru
          _
        // Predicated region
        $region25: #{_lambda_.7} parent=19 // pred_check
          %p158 = pneg %p82
        $region26: #{_lambda_.7} parent=19 // pred_check_branch
          %160 = sbr.rel (%p158) target = $region28
        $region27: #{_lambda_.7} parent=19 // pred_region
          %s161 = sand.u32 %s72, 1
          %s162 = scalar_lea.sflag [#allocation5], %s161
          %s163 = sand.u32 %s72, 1
          %s164 = smul.addr %s163, 4
          %s165 = scalar_lea.vmem [#allocation4], %s164
          %s166 = smul.u32 4, %s15
          %168 = vsyncadd %s162, 0
          %s169 = scalar_lea.hbm %s2, %s166
          %s171 = sshll.u32 %s169, 4
          %s172 = int_to_ptr.hbm [resolvable:$true] %s171
          %s173 = sshll.u32 %s165, 4
          %s174 = int_to_ptr.vmem [resolvable:$true] %s173
          %176 = dma.hbm_to_vmem [thread:$0]  %s172, 64, %s174, %s162
        $region28: #{_lambda_.7} parent=19 // pred_fallthru
          _
      $region20: #{_lambda_.7} parent=5 // pred_fallthru
        _
      %p177 = scmp.le.s32.totalorder 1, %s15
      %p178 = scmp.lt.s32.totalorder %s15, 5
      %p179 = pnand %p177, %p178
      %p180 = pneg %p179
      // Predicated region
      $region29: #{_lambda_.7} parent=5 // pred_check
        _
      $region30: #{_lambda_.7} parent=5 // pred_check_branch
        %182 = sbr.rel (%p179) target = $region32
      $region31: #{_lambda_.7} parent=5 // pred_region
        %s183 = ssub.s32 %s15, 1
        %s184 = sand.u32 %s49, 1
        %s185 = scalar_lea.sflag [#allocation3], %s184
        %s186 = sand.u32 %s49, 1
        %s187 = smul.addr %s186, 3152
        %s188 = scalar_lea.vmem [#allocation2], %s187
        // Predicated region
        $region33: #{_lambda_.7} parent=31 // pred_check
          %p189 = pneg %p62
        $region34: #{_lambda_.7} parent=31 // pred_check_branch
          %191 = sbr.rel (%p189) target = $region36
        $region35: #{_lambda_.7} parent=31 // pred_region
          %193 = dma.done %s185, 50432
        $region36: #{_lambda_.7} parent=31 // pred_fallthru
          _
        %s194 = sand.u32 %s75, 1
        %s195 = scalar_lea.sflag [#allocation5], %s194
        %s196 = sand.u32 %s75, 1
        %s197 = smul.addr %s196, 4
        %s198 = scalar_lea.vmem [#allocation4], %s197
        // Predicated region
        $region37: #{_lambda_.7} parent=31 // pred_check
          %p199 = pneg %p88
        $region38: #{_lambda_.7} parent=31 // pred_check_branch
          %201 = sbr.rel (%p199) target = $region40
        $region39: #{_lambda_.7} parent=31 // pred_region
          %203 = dma.done %s195, 64
        $region40: #{_lambda_.7} parent=31 // pred_fallthru
          _
        %p204 = pneg %p36
        %p205 = pneg %p33
        %s206 = sand.u32 %s49, 1
        %s207 = scalar_lea.sflag [#allocation3], %s206
        %s208 = sand.u32 %s49, 1
        %s209 = smul.addr %s208, 3152
        %s210 = scalar_lea.vmem [#allocation2], %s209
        %p211 = pneg %p62
        %p212 = pneg %p59
        %s213 = sand.u32 %s75, 1
        %s214 = scalar_lea.sflag [#allocation5], %s213
        %s215 = sand.u32 %s75, 1
        %s216 = smul.addr %s215, 4
        %s217 = scalar_lea.vmem [#allocation4], %s216
        %p218 = pneg %p88
        %p219 = pneg %p85
        %p220 = pneg %p114
        %p221 = pneg %p111
        %s222 = smul.u32 4, %s20
        %p223 = scmp.lt.s32.totalorder %s222, 15
        %s224 = scalar_select %p223, %s222, 15
        %s225 = smul.addr %s224, 2
        %s226 = scalar_lea.vmem %s3, %s225
        %s227 = smul.u32 4, %s20
        %s228 = smul.u32 4, %s20
        %s229 = smul.u32 4, %s20
        %p230 = scmp.lt.s32.totalorder %s229, 15
        %s231 = scalar_select %p230, %s229, 15
        %s232 = smul.addr %s231, 2
        %s233 = scalar_lea.vmem %s3, %s232
        %s234 = smul.u32 4, %s20
        %v236 = vld [vmem:[%s0] sm:$0xff]
        %v237 = vld [vmem:[%s0 + $0x8] sm:$0x1f]
        %v238 = vld [vmem:[%s188] sm:$0xff]
        %v239 = vld [vmem:[%s188 + $0x8] sm:$0xff]
        %v240 = vld [vmem:[%s188 + $0x10] sm:$0xff]
        %v241 = vld [vmem:[%s188 + $0x18] sm:$0xff]
        %v242 = vld [vmem:[%s188 + $0x20] sm:$0xff]
        %v243 = vld [vmem:[%s188 + $0x28] sm:$0xff]
        %v244 = vld [vmem:[%s188 + $0x30] sm:$0xff]
        %v245 = vld [vmem:[%s188 + $0x38] sm:$0xff]
        %v246 = vld [vmem:[%s188 + $0x40] sm:$0xff]
        %v247 = vld [vmem:[%s188 + $0x48] sm:$0xff]
        %v248 = vld [vmem:[%s188 + $0x50] sm:$0xff]
        %v249 = vld [vmem:[%s188 + $0x58] sm:$0xff]
        %v250 = vld [vmem:[%s188 + $0x60] sm:$0xff]
        %v251 = vld [vmem:[%s188 + $0x68] sm:$0xff]
        %v252 = vld [vmem:[%s188 + $0x70] sm:$0xff]
        %v253 = vld [vmem:[%s188 + $0x78] sm:$0xff]
        %v254 = vld [vmem:[%s188 + $0x80] sm:$0xff]
        %v255 = vld [vmem:[%s188 + $0x88] sm:$0xff]
        %v256 = vld [vmem:[%s188 + $0x90] sm:$0xff]
        %v257 = vld [vmem:[%s188 + $0x98] sm:$0xff]
        %v258 = vld [vmem:[%s188 + $0xa0] sm:$0xff]
        %v259 = vld [vmem:[%s188 + $0xa8] sm:$0xff]
        %v260 = vld [vmem:[%s188 + $0xb0] sm:$0xff]
        %v261 = vld [vmem:[%s188 + $0xb8] sm:$0xff]
        %v262 = vld [vmem:[%s188 + $0xc0] sm:$0xff]
        %v263 = vld [vmem:[%s188 + $0xc8] sm:$0xff]
        %v264 = vld [vmem:[%s188 + $0xd0] sm:$0xff]
        %v265 = vld [vmem:[%s188 + $0xd8] sm:$0xff]
        %v266 = vld [vmem:[%s188 + $0xe0] sm:$0xff]
        %v267 = vld [vmem:[%s188 + $0xe8] sm:$0xff]
        %v268 = vld [vmem:[%s188 + $0xf0] sm:$0xff]
        %v269 = vld [vmem:[%s188 + $0xf8] sm:$0xff]
        %v270 = vld [vmem:[%s188 + $0x100] sm:$0xff]
        %v271 = vld [vmem:[%s188 + $0x108] sm:$0xff]
        %v272 = vld [vmem:[%s188 + $0x110] sm:$0xff]
        %v273 = vld [vmem:[%s188 + $0x118] sm:$0xff]
        %v274 = vld [vmem:[%s188 + $0x120] sm:$0xff]
        %v275 = vld [vmem:[%s188 + $0x128] sm:$0xff]
        %v276 = vld [vmem:[%s188 + $0x130] sm:$0xff]
        %v277 = vld [vmem:[%s188 + $0x138] sm:$0xff]
        %v278 = vld [vmem:[%s188 + $0x140] sm:$0xff]
        %v279 = vld [vmem:[%s188 + $0x148] sm:$0xff]
        %v280 = vld [vmem:[%s188 + $0x150] sm:$0xff]
        %v281 = vld [vmem:[%s188 + $0x158] sm:$0xff]
        %v282 = vld [vmem:[%s188 + $0x160] sm:$0xff]
        %v283 = vld [vmem:[%s188 + $0x168] sm:$0xff]
        %v284 = vld [vmem:[%s188 + $0x170] sm:$0xff]
        %v285 = vld [vmem:[%s188 + $0x178] sm:$0xff]
        %v286 = vld [vmem:[%s188 + $0x180] sm:$0xff]
        %v287 = vld [vmem:[%s188 + $0x188] sm:$0xff]
        %v288 = vld [vmem:[%s188 + $0x190] sm:$0xff]
        %v289 = vld [vmem:[%s188 + $0x198] sm:$0xff]
        %v290 = vld [vmem:[%s188 + $0x1a0] sm:$0xff]
        %v291 = vld [vmem:[%s188 + $0x1a8] sm:$0xff]
        %v292 = vld [vmem:[%s188 + $0x1b0] sm:$0xff]
        %v293 = vld [vmem:[%s188 + $0x1b8] sm:$0xff]
        %v294 = vld [vmem:[%s188 + $0x1c0] sm:$0xff]
        %v295 = vld [vmem:[%s188 + $0x1c8] sm:$0xff]
        %v296 = vld [vmem:[%s188 + $0x1d0] sm:$0xff]
        %v297 = vld [vmem:[%s188 + $0x1d8] sm:$0xff]
        %v298 = vld [vmem:[%s188 + $0x1e0] sm:$0xff]
        %v299 = vld [vmem:[%s188 + $0x1e8] sm:$0xff]
        %v300 = vld [vmem:[%s188 + $0x1f0] sm:$0xff]
        %v301 = vld [vmem:[%s188 + $0x1f8] sm:$0xff]
        %v302 = vld [vmem:[%s188 + $0x200] sm:$0xff]
        %v303 = vld [vmem:[%s188 + $0x208] sm:$0xff]
        %v304 = vld [vmem:[%s188 + $0x210] sm:$0xff]
        %v305 = vld [vmem:[%s188 + $0x218] sm:$0xff]
        %v306 = vld [vmem:[%s188 + $0x220] sm:$0xff]
        %v307 = vld [vmem:[%s188 + $0x228] sm:$0xff]
        %v308 = vld [vmem:[%s188 + $0x230] sm:$0xff]
        %v309 = vld [vmem:[%s188 + $0x238] sm:$0xff]
        %v310 = vld [vmem:[%s188 + $0x240] sm:$0xff]
        %v311 = vld [vmem:[%s188 + $0x248] sm:$0xff]
        %v312 = vld [vmem:[%s188 + $0x250] sm:$0xff]
        %v313 = vld [vmem:[%s188 + $0x258] sm:$0xff]
        %v314 = vld [vmem:[%s188 + $0x260] sm:$0xff]
        %v315 = vld [vmem:[%s188 + $0x268] sm:$0xff]
        %v316 = vld [vmem:[%s188 + $0x270] sm:$0xff]
        %v317 = vld [vmem:[%s188 + $0x278] sm:$0xff]
        %v318 = vld [vmem:[%s188 + $0x280] sm:$0xff]
        %v319 = vld [vmem:[%s188 + $0x288] sm:$0xff]
        %v320 = vld [vmem:[%s188 + $0x290] sm:$0xff]
        %v321 = vld [vmem:[%s188 + $0x298] sm:$0xff]
        %v322 = vld [vmem:[%s188 + $0x2a0] sm:$0xff]
        %v323 = vld [vmem:[%s188 + $0x2a8] sm:$0xff]
        %v324 = vld [vmem:[%s188 + $0x2b0] sm:$0xff]
        %v325 = vld [vmem:[%s188 + $0x2b8] sm:$0xff]
        %v326 = vld [vmem:[%s188 + $0x2c0] sm:$0xff]
        %v327 = vld [vmem:[%s188 + $0x2c8] sm:$0xff]
        %v328 = vld [vmem:[%s188 + $0x2d0] sm:$0xff]
        %v329 = vld [vmem:[%s188 + $0x2d8] sm:$0xff]
        %v330 = vld [vmem:[%s188 + $0x2e0] sm:$0xff]
        %v331 = vld [vmem:[%s188 + $0x2e8] sm:$0xff]
        %v332 = vld [vmem:[%s188 + $0x2f0] sm:$0xff]
        %v333 = vld [vmem:[%s188 + $0x2f8] sm:$0xff]
        %v334 = vld [vmem:[%s188 + $0x300] sm:$0xff]
        %v335 = vld [vmem:[%s188 + $0x308] sm:$0xff]
        %v336 = vld [vmem:[%s188 + $0x310] sm:$0xff]
        %v337 = vld [vmem:[%s188 + $0x318] sm:$0xff]
        %v338 = vld [vmem:[%s188 + $0x320] sm:$0xff]
        %v339 = vld [vmem:[%s188 + $0x328] sm:$0xff]
        %v340 = vld [vmem:[%s188 + $0x330] sm:$0xff]
        %v341 = vld [vmem:[%s188 + $0x338] sm:$0xff]
        %v342 = vld [vmem:[%s188 + $0x340] sm:$0xff]
        %v343 = vld [vmem:[%s188 + $0x348] sm:$0xff]
        %v344 = vld [vmem:[%s188 + $0x350] sm:$0xff]
        %v345 = vld [vmem:[%s188 + $0x358] sm:$0xff]
        %v346 = vld [vmem:[%s188 + $0x360] sm:$0xff]
        %v347 = vld [vmem:[%s188 + $0x368] sm:$0xff]
        %v348 = vld [vmem:[%s188 + $0x370] sm:$0xff]
        %v349 = vld [vmem:[%s188 + $0x378] sm:$0xff]
        %v350 = vld [vmem:[%s188 + $0x380] sm:$0xff]
        %v351 = vld [vmem:[%s188 + $0x388] sm:$0xff]
        %v352 = vld [vmem:[%s188 + $0x390] sm:$0xff]
        %v353 = vld [vmem:[%s188 + $0x398] sm:$0xff]
        %v354 = vld [vmem:[%s188 + $0x3a0] sm:$0xff]
        %v355 = vld [vmem:[%s188 + $0x3a8] sm:$0xff]
        %v356 = vld [vmem:[%s188 + $0x3b0] sm:$0xff]
        %v357 = vld [vmem:[%s188 + $0x3b8] sm:$0xff]
        %v358 = vld [vmem:[%s188 + $0x3c0] sm:$0xff]
        %v359 = vld [vmem:[%s188 + $0x3c8] sm:$0xff]
        %v360 = vld [vmem:[%s188 + $0x3d0] sm:$0xff]
        %v361 = vld [vmem:[%s188 + $0x3d8] sm:$0xff]
        %v362 = vld [vmem:[%s188 + $0x3e0] sm:$0xff]
        %v363 = vld [vmem:[%s188 + $0x3e8] sm:$0xff]
        %v364 = vld [vmem:[%s188 + $0x3f0] sm:$0xff]
        %v365 = vld [vmem:[%s188 + $0x3f8] sm:$0xff]
        %v366 = vld [vmem:[%s188 + $0x400] sm:$0xff]
        %v367 = vld [vmem:[%s188 + $0x408] sm:$0xff]
        %v368 = vld [vmem:[%s188 + $0x410] sm:$0xff]
        %v369 = vld [vmem:[%s188 + $0x418] sm:$0xff]
        %v370 = vld [vmem:[%s188 + $0x420] sm:$0xff]
        %v371 = vld [vmem:[%s188 + $0x428] sm:$0xff]
        %v372 = vld [vmem:[%s188 + $0x430] sm:$0xff]
        %v373 = vld [vmem:[%s188 + $0x438] sm:$0xff]
        %v374 = vld [vmem:[%s188 + $0x440] sm:$0xff]
        %v375 = vld [vmem:[%s188 + $0x448] sm:$0xff]
        %v376 = vld [vmem:[%s188 + $0x450] sm:$0xff]
        %v377 = vld [vmem:[%s188 + $0x458] sm:$0xff]
        %v378 = vld [vmem:[%s188 + $0x460] sm:$0xff]
        %v379 = vld [vmem:[%s188 + $0x468] sm:$0xff]
        %v380 = vld [vmem:[%s188 + $0x470] sm:$0xff]
        %v381 = vld [vmem:[%s188 + $0x478] sm:$0xff]
        %v382 = vld [vmem:[%s188 + $0x480] sm:$0xff]
        %v383 = vld [vmem:[%s188 + $0x488] sm:$0xff]
        %v384 = vld [vmem:[%s188 + $0x490] sm:$0xff]
        %v385 = vld [vmem:[%s188 + $0x498] sm:$0xff]
        %v386 = vld [vmem:[%s188 + $0x4a0] sm:$0xff]
        %v387 = vld [vmem:[%s188 + $0x4a8] sm:$0xff]
        %v388 = vld [vmem:[%s188 + $0x4b0] sm:$0xff]
        %v389 = vld [vmem:[%s188 + $0x4b8] sm:$0xff]
        %v390 = vld [vmem:[%s188 + $0x4c0] sm:$0xff]
        %v391 = vld [vmem:[%s188 + $0x4c8] sm:$0xff]
        %v392 = vld [vmem:[%s188 + $0x4d0] sm:$0xff]
        %v393 = vld [vmem:[%s188 + $0x4d8] sm:$0xff]
        %v394 = vld [vmem:[%s188 + $0x4e0] sm:$0xff]
        %v395 = vld [vmem:[%s188 + $0x4e8] sm:$0xff]
        %v396 = vld [vmem:[%s188 + $0x4f0] sm:$0xff]
        %v397 = vld [vmem:[%s188 + $0x4f8] sm:$0xff]
        %v398 = vld [vmem:[%s188 + $0x500] sm:$0xff]
        %v399 = vld [vmem:[%s188 + $0x508] sm:$0xff]
        %v400 = vld [vmem:[%s188 + $0x510] sm:$0xff]
        %v401 = vld [vmem:[%s188 + $0x518] sm:$0xff]
        %v402 = vld [vmem:[%s188 + $0x520] sm:$0xff]
        %v403 = vld [vmem:[%s188 + $0x528] sm:$0xff]
        %v404 = vld [vmem:[%s188 + $0x530] sm:$0xff]
        %v405 = vld [vmem:[%s188 + $0x538] sm:$0xff]
        %v406 = vld [vmem:[%s188 + $0x540] sm:$0xff]
        %v407 = vld [vmem:[%s188 + $0x548] sm:$0xff]
        %v408 = vld [vmem:[%s188 + $0x550] sm:$0xff]
        %v409 = vld [vmem:[%s188 + $0x558] sm:$0xff]
        %v410 = vld [vmem:[%s188 + $0x560] sm:$0xff]
        %v411 = vld [vmem:[%s188 + $0x568] sm:$0xff]
        %v412 = vld [vmem:[%s188 + $0x570] sm:$0xff]
        %v413 = vld [vmem:[%s188 + $0x578] sm:$0xff]
        %v414 = vld [vmem:[%s188 + $0x580] sm:$0xff]
        %v415 = vld [vmem:[%s188 + $0x588] sm:$0xff]
        %v416 = vld [vmem:[%s188 + $0x590] sm:$0xff]
        %v417 = vld [vmem:[%s188 + $0x598] sm:$0xff]
        %v418 = vld [vmem:[%s188 + $0x5a0] sm:$0xff]
        %v419 = vld [vmem:[%s188 + $0x5a8] sm:$0xff]
        %v420 = vld [vmem:[%s188 + $0x5b0] sm:$0xff]
        %v421 = vld [vmem:[%s188 + $0x5b8] sm:$0xff]
        %v422 = vld [vmem:[%s188 + $0x5c0] sm:$0xff]
        %v423 = vld [vmem:[%s188 + $0x5c8] sm:$0xff]
        %v424 = vld [vmem:[%s188 + $0x5d0] sm:$0xff]
        %v425 = vld [vmem:[%s188 + $0x5d8] sm:$0xff]
        %v426 = vld [vmem:[%s188 + $0x5e0] sm:$0xff]
        %v427 = vld [vmem:[%s188 + $0x5e8] sm:$0xff]
        %v428 = vld [vmem:[%s188 + $0x5f0] sm:$0xff]
        %v429 = vld [vmem:[%s188 + $0x5f8] sm:$0xff]
        %v430 = vld [vmem:[%s188 + $0x600] sm:$0xff]
        %v431 = vld [vmem:[%s188 + $0x608] sm:$0xff]
        %v432 = vld [vmem:[%s188 + $0x610] sm:$0xff]
        %v433 = vld [vmem:[%s188 + $0x618] sm:$0xff]
        %v434 = vld [vmem:[%s188 + $0x620] sm:$0xff]
        %v435 = vld [vmem:[%s188 + $0x628] sm:$0xff]
        %v436 = vld [vmem:[%s188 + $0x630] sm:$0xff]
        %v437 = vld [vmem:[%s188 + $0x638] sm:$0xff]
        %v438 = vld [vmem:[%s188 + $0x640] sm:$0xff]
        %v439 = vld [vmem:[%s188 + $0x648] sm:$0xff]
        %v440 = vld [vmem:[%s188 + $0x650] sm:$0xff]
        %v441 = vld [vmem:[%s188 + $0x658] sm:$0xff]
        %v442 = vld [vmem:[%s188 + $0x660] sm:$0xff]
        %v443 = vld [vmem:[%s188 + $0x668] sm:$0xff]
        %v444 = vld [vmem:[%s188 + $0x670] sm:$0xff]
        %v445 = vld [vmem:[%s188 + $0x678] sm:$0xff]
        %v446 = vld [vmem:[%s188 + $0x680] sm:$0xff]
        %v447 = vld [vmem:[%s188 + $0x688] sm:$0xff]
        %v448 = vld [vmem:[%s188 + $0x690] sm:$0xff]
        %v449 = vld [vmem:[%s188 + $0x698] sm:$0xff]
        %v450 = vld [vmem:[%s188 + $0x6a0] sm:$0xff]
        %v451 = vld [vmem:[%s188 + $0x6a8] sm:$0xff]
        %v452 = vld [vmem:[%s188 + $0x6b0] sm:$0xff]
        %v453 = vld [vmem:[%s188 + $0x6b8] sm:$0xff]
        %v454 = vld [vmem:[%s188 + $0x6c0] sm:$0xff]
        %v455 = vld [vmem:[%s188 + $0x6c8] sm:$0xff]
        %v456 = vld [vmem:[%s188 + $0x6d0] sm:$0xff]
        %v457 = vld [vmem:[%s188 + $0x6d8] sm:$0xff]
        %v458 = vld [vmem:[%s188 + $0x6e0] sm:$0xff]
        %v459 = vld [vmem:[%s188 + $0x6e8] sm:$0xff]
        %v460 = vld [vmem:[%s188 + $0x6f0] sm:$0xff]
        %v461 = vld [vmem:[%s188 + $0x6f8] sm:$0xff]
        %v462 = vld [vmem:[%s188 + $0x700] sm:$0xff]
        %v463 = vld [vmem:[%s188 + $0x708] sm:$0xff]
        %v464 = vld [vmem:[%s188 + $0x710] sm:$0xff]
        %v465 = vld [vmem:[%s188 + $0x718] sm:$0xff]
        %v466 = vld [vmem:[%s188 + $0x720] sm:$0xff]
        %v467 = vld [vmem:[%s188 + $0x728] sm:$0xff]
        %v468 = vld [vmem:[%s188 + $0x730] sm:$0xff]
        %v469 = vld [vmem:[%s188 + $0x738] sm:$0xff]
        %v470 = vld [vmem:[%s188 + $0x740] sm:$0xff]
        %v471 = vld [vmem:[%s188 + $0x748] sm:$0xff]
        %v472 = vld [vmem:[%s188 + $0x750] sm:$0xff]
        %v473 = vld [vmem:[%s188 + $0x758] sm:$0xff]
        %v474 = vld [vmem:[%s188 + $0x760] sm:$0xff]
        %v475 = vld [vmem:[%s188 + $0x768] sm:$0xff]
        %v476 = vld [vmem:[%s188 + $0x770] sm:$0xff]
        %v477 = vld [vmem:[%s188 + $0x778] sm:$0xff]
        %v478 = vld [vmem:[%s188 + $0x780] sm:$0xff]
        %v479 = vld [vmem:[%s188 + $0x788] sm:$0xff]
        %v480 = vld [vmem:[%s188 + $0x790] sm:$0xff]
        %v481 = vld [vmem:[%s188 + $0x798] sm:$0xff]
        %v482 = vld [vmem:[%s188 + $0x7a0] sm:$0xff]
        %v483 = vld [vmem:[%s188 + $0x7a8] sm:$0xff]
        %v484 = vld [vmem:[%s188 + $0x7b0] sm:$0xff]
        %v485 = vld [vmem:[%s188 + $0x7b8] sm:$0xff]
        %v486 = vld [vmem:[%s188 + $0x7c0] sm:$0xff]
        %v487 = vld [vmem:[%s188 + $0x7c8] sm:$0xff]
        %v488 = vld [vmem:[%s188 + $0x7d0] sm:$0xff]
        %v489 = vld [vmem:[%s188 + $0x7d8] sm:$0xff]
        %v490 = vld [vmem:[%s188 + $0x7e0] sm:$0xff]
        %v491 = vld [vmem:[%s188 + $0x7e8] sm:$0xff]
        %v492 = vld [vmem:[%s188 + $0x7f0] sm:$0xff]
        %v493 = vld [vmem:[%s188 + $0x7f8] sm:$0xff]
        %v494 = vld [vmem:[%s188 + $0x800] sm:$0xff]
        %v495 = vld [vmem:[%s188 + $0x808] sm:$0xff]
        %v496 = vld [vmem:[%s188 + $0x810] sm:$0xff]
        %v497 = vld [vmem:[%s188 + $0x818] sm:$0xff]
        %v498 = vld [vmem:[%s188 + $0x820] sm:$0xff]
        %v499 = vld [vmem:[%s188 + $0x828] sm:$0xff]
        %v500 = vld [vmem:[%s188 + $0x830] sm:$0xff]
        %v501 = vld [vmem:[%s188 + $0x838] sm:$0xff]
        %v502 = vld [vmem:[%s188 + $0x840] sm:$0xff]
        %v503 = vld [vmem:[%s188 + $0x848] sm:$0xff]
        %v504 = vld [vmem:[%s188 + $0x850] sm:$0xff]
        %v505 = vld [vmem:[%s188 + $0x858] sm:$0xff]
        %v506 = vld [vmem:[%s188 + $0x860] sm:$0xff]
        %v507 = vld [vmem:[%s188 + $0x868] sm:$0xff]
        %v508 = vld [vmem:[%s188 + $0x870] sm:$0xff]
        %v509 = vld [vmem:[%s188 + $0x878] sm:$0xff]
        %v510 = vld [vmem:[%s188 + $0x880] sm:$0xff]
        %v511 = vld [vmem:[%s188 + $0x888] sm:$0xff]
        %v512 = vld [vmem:[%s188 + $0x890] sm:$0xff]
        %v513 = vld [vmem:[%s188 + $0x898] sm:$0xff]
        %v514 = vld [vmem:[%s188 + $0x8a0] sm:$0xff]
        %v515 = vld [vmem:[%s188 + $0x8a8] sm:$0xff]
        %v516 = vld [vmem:[%s188 + $0x8b0] sm:$0xff]
        %v517 = vld [vmem:[%s188 + $0x8b8] sm:$0xff]
        %v518 = vld [vmem:[%s188 + $0x8c0] sm:$0xff]
        %v519 = vld [vmem:[%s188 + $0x8c8] sm:$0xff]
        %v520 = vld [vmem:[%s188 + $0x8d0] sm:$0xff]
        %v521 = vld [vmem:[%s188 + $0x8d8] sm:$0xff]
        %v522 = vld [vmem:[%s188 + $0x8e0] sm:$0xff]
        %v523 = vld [vmem:[%s188 + $0x8e8] sm:$0xff]
        %v524 = vld [vmem:[%s188 + $0x8f0] sm:$0xff]
        %v525 = vld [vmem:[%s188 + $0x8f8] sm:$0xff]
        %v526 = vld [vmem:[%s188 + $0x900] sm:$0xff]
        %v527 = vld [vmem:[%s188 + $0x908] sm:$0xff]
        %v528 = vld [vmem:[%s188 + $0x910] sm:$0xff]
        %v529 = vld [vmem:[%s188 + $0x918] sm:$0xff]
        %v530 = vld [vmem:[%s188 + $0x920] sm:$0xff]
        %v531 = vld [vmem:[%s188 + $0x928] sm:$0xff]
        %v532 = vld [vmem:[%s188 + $0x930] sm:$0xff]
        %v533 = vld [vmem:[%s188 + $0x938] sm:$0xff]
        %v534 = vld [vmem:[%s188 + $0x940] sm:$0xff]
        %v535 = vld [vmem:[%s188 + $0x948] sm:$0xff]
        %v536 = vld [vmem:[%s188 + $0x950] sm:$0xff]
        %v537 = vld [vmem:[%s188 + $0x958] sm:$0xff]
        %v538 = vld [vmem:[%s188 + $0x960] sm:$0xff]
        %v539 = vld [vmem:[%s188 + $0x968] sm:$0xff]
        %v540 = vld [vmem:[%s188 + $0x970] sm:$0xff]
        %v541 = vld [vmem:[%s188 + $0x978] sm:$0xff]
        %v542 = vld [vmem:[%s188 + $0x980] sm:$0xff]
        %v543 = vld [vmem:[%s188 + $0x988] sm:$0xff]
        %v544 = vld [vmem:[%s188 + $0x990] sm:$0xff]
        %v545 = vld [vmem:[%s188 + $0x998] sm:$0xff]
        %v546 = vld [vmem:[%s188 + $0x9a0] sm:$0xff]
        %v547 = vld [vmem:[%s188 + $0x9a8] sm:$0xff]
        %v548 = vld [vmem:[%s188 + $0x9b0] sm:$0xff]
        %v549 = vld [vmem:[%s188 + $0x9b8] sm:$0xff]
        %v550 = vld [vmem:[%s188 + $0x9c0] sm:$0xff]
        %v551 = vld [vmem:[%s188 + $0x9c8] sm:$0xff]
        %v552 = vld [vmem:[%s188 + $0x9d0] sm:$0xff]
        %v553 = vld [vmem:[%s188 + $0x9d8] sm:$0xff]
        %v554 = vld [vmem:[%s188 + $0x9e0] sm:$0xff]
        %v555 = vld [vmem:[%s188 + $0x9e8] sm:$0xff]
        %v556 = vld [vmem:[%s188 + $0x9f0] sm:$0xff]
        %v557 = vld [vmem:[%s188 + $0x9f8] sm:$0xff]
        %v558 = vld [vmem:[%s188 + $0xa00] sm:$0xff]
        %v559 = vld [vmem:[%s188 + $0xa08] sm:$0xff]
        %v560 = vld [vmem:[%s188 + $0xa10] sm:$0xff]
        %v561 = vld [vmem:[%s188 + $0xa18] sm:$0xff]
        %v562 = vld [vmem:[%s188 + $0xa20] sm:$0xff]
        %v563 = vld [vmem:[%s188 + $0xa28] sm:$0xff]
        %v564 = vld [vmem:[%s188 + $0xa30] sm:$0xff]
        %v565 = vld [vmem:[%s188 + $0xa38] sm:$0xff]
        %v566 = vld [vmem:[%s188 + $0xa40] sm:$0xff]
        %v567 = vld [vmem:[%s188 + $0xa48] sm:$0xff]
        %v568 = vld [vmem:[%s188 + $0xa50] sm:$0xff]
        %v569 = vld [vmem:[%s188 + $0xa58] sm:$0xff]
        %v570 = vld [vmem:[%s188 + $0xa60] sm:$0xff]
        %v571 = vld [vmem:[%s188 + $0xa68] sm:$0xff]
        %v572 = vld [vmem:[%s188 + $0xa70] sm:$0xff]
        %v573 = vld [vmem:[%s188 + $0xa78] sm:$0xff]
        %v574 = vld [vmem:[%s188 + $0xa80] sm:$0xff]
        %v575 = vld [vmem:[%s188 + $0xa88] sm:$0xff]
        %v576 = vld [vmem:[%s188 + $0xa90] sm:$0xff]
        %v577 = vld [vmem:[%s188 + $0xa98] sm:$0xff]
        %v578 = vld [vmem:[%s188 + $0xaa0] sm:$0xff]
        %v579 = vld [vmem:[%s188 + $0xaa8] sm:$0xff]
        %v580 = vld [vmem:[%s188 + $0xab0] sm:$0xff]
        %v581 = vld [vmem:[%s188 + $0xab8] sm:$0xff]
        %v582 = vld [vmem:[%s188 + $0xac0] sm:$0xff]
        %v583 = vld [vmem:[%s188 + $0xac8] sm:$0xff]
        %v584 = vld [vmem:[%s188 + $0xad0] sm:$0xff]
        %v585 = vld [vmem:[%s188 + $0xad8] sm:$0xff]
        %v586 = vld [vmem:[%s188 + $0xae0] sm:$0xff]
        %v587 = vld [vmem:[%s188 + $0xae8] sm:$0xff]
        %v588 = vld [vmem:[%s188 + $0xaf0] sm:$0xff]
        %v589 = vld [vmem:[%s188 + $0xaf8] sm:$0xff]
        %v590 = vld [vmem:[%s188 + $0xb00] sm:$0xff]
        %v591 = vld [vmem:[%s188 + $0xb08] sm:$0xff]
        %v592 = vld [vmem:[%s188 + $0xb10] sm:$0xff]
        %v593 = vld [vmem:[%s188 + $0xb18] sm:$0xff]
        %v594 = vld [vmem:[%s188 + $0xb20] sm:$0xff]
        %v595 = vld [vmem:[%s188 + $0xb28] sm:$0xff]
        %v596 = vld [vmem:[%s188 + $0xb30] sm:$0xff]
        %v597 = vld [vmem:[%s188 + $0xb38] sm:$0xff]
        %v598 = vld [vmem:[%s188 + $0xb40] sm:$0xff]
        %v599 = vld [vmem:[%s188 + $0xb48] sm:$0xff]
        %v600 = vld [vmem:[%s188 + $0xb50] sm:$0xff]
        %v601 = vld [vmem:[%s188 + $0xb58] sm:$0xff]
        %v602 = vld [vmem:[%s188 + $0xb60] sm:$0xff]
        %v603 = vld [vmem:[%s188 + $0xb68] sm:$0xff]
        %v604 = vld [vmem:[%s188 + $0xb70] sm:$0xff]
        %v605 = vld [vmem:[%s188 + $0xb78] sm:$0xff]
        %v606 = vld [vmem:[%s188 + $0xb80] sm:$0xff]
        %v607 = vld [vmem:[%s188 + $0xb88] sm:$0xff]
        %v608 = vld [vmem:[%s188 + $0xb90] sm:$0xff]
        %v609 = vld [vmem:[%s188 + $0xb98] sm:$0xff]
        %v610 = vld [vmem:[%s188 + $0xba0] sm:$0xff]
        %v611 = vld [vmem:[%s188 + $0xba8] sm:$0xff]
        %v612 = vld [vmem:[%s188 + $0xbb0] sm:$0xff]
        %v613 = vld [vmem:[%s188 + $0xbb8] sm:$0xff]
        %v614 = vld [vmem:[%s188 + $0xbc0] sm:$0xff]
        %v615 = vld [vmem:[%s188 + $0xbc8] sm:$0xff]
        %v616 = vld [vmem:[%s188 + $0xbd0] sm:$0xff]
        %v617 = vld [vmem:[%s188 + $0xbd8] sm:$0xff]
        %v618 = vld [vmem:[%s188 + $0xbe0] sm:$0xff]
        %v619 = vld [vmem:[%s188 + $0xbe8] sm:$0xff]
        %v620 = vld [vmem:[%s188 + $0xbf0] sm:$0xff]
        %v621 = vld [vmem:[%s188 + $0xbf8] sm:$0xff]
        %v622 = vld [vmem:[%s188 + $0xc00] sm:$0xff]
        %v623 = vld [vmem:[%s188 + $0xc08] sm:$0xff]
        %v624 = vld [vmem:[%s188 + $0xc10] sm:$0xff]
        %v625 = vld [vmem:[%s188 + $0xc18] sm:$0xff]
        %v626 = vld [vmem:[%s188 + $0xc20] sm:$0xff]
        %v627 = vld [vmem:[%s188 + $0xc28] sm:$0xff]
        %v628 = vld [vmem:[%s188 + $0xc30] sm:$0xff]
        %v629 = vld [vmem:[%s188 + $0xc38] sm:$0xff]
        %v630 = vld [vmem:[%s188 + $0xc40] sm:$0x33]
        %v631 = vld [vmem:[%s188 + $0xc48] sm:$0x33]
        %v632 = vld [vmem:[%s198] sm:$0xf]
        %v634 = vperm.slane %v632, 0
        %v635 = vperm.slane %v632, 1
        %v636 = vperm.slane %v632, 2
        %v637 = vperm.slane %v632, 3
        %643 = vst [vmem:[#allocation1] ss:$9 sm:$0xff] %v236
        %v644 = vld [vmem:[#allocation1] sm:$0xff]
        %v645 = vld [vmem:[#allocation1 + $0x9] sm:$0xff]
        %v646 = vld [vmem:[#allocation1 + $0x12] sm:$0xff]
        %v647 = vld [vmem:[#allocation1 + $0x1b] sm:$0xff]
        %v648 = vld [vmem:[#allocation1 + $0x24] sm:$0xff]
        %v649 = vld [vmem:[#allocation1 + $0x2d] sm:$0xff]
        %v650 = vld [vmem:[#allocation1 + $0x36] sm:$0xff]
        %v651 = vld [vmem:[#allocation1 + $0x3f] sm:$0xff]
        %653 = vst [vmem:[#allocation1] ss:$9 sm:$0xff] %v237
        %v654 = vld [vmem:[#allocation1] sm:$0xff]
        %v655 = vld [vmem:[#allocation1 + $0x9] sm:$0xff]
        %v656 = vld [vmem:[#allocation1 + $0x12] sm:$0xff]
        %v657 = vld [vmem:[#allocation1 + $0x1b] sm:$0xff]
        %v658 = vld [vmem:[#allocation1 + $0x24] sm:$0xff]
        %v1065 = vunpack.c.l.b16 %v238
        %v1066 = vunpack.c.h.b16 %v238
        %v1067 = vunpack.c.l.b16 %v239
        %v1068 = vunpack.c.h.b16 %v239
        %v1069 = vunpack.c.l.b16 %v240
        %v1070 = vunpack.c.h.b16 %v240
        %v1071 = vunpack.c.l.b16 %v241
        %v1072 = vunpack.c.h.b16 %v241
        %v1073 = vunpack.c.l.b16 %v242
        %v1074 = vunpack.c.h.b16 %v242
        %v1075 = vunpack.c.l.b16 %v243
        %v1076 = vunpack.c.h.b16 %v243
        %v1077 = vunpack.c.l.b16 %v244
        %v1078 = vunpack.c.h.b16 %v244
        %v1079 = vunpack.c.l.b16 %v245
        %v1080 = vunpack.c.h.b16 %v245
        %v1081 = vunpack.c.l.b16 %v246
        %v1082 = vunpack.c.h.b16 %v246
        %v1083 = vunpack.c.l.b16 %v247
        %v1084 = vunpack.c.h.b16 %v247
        %v1085 = vunpack.c.l.b16 %v248
        %v1086 = vunpack.c.h.b16 %v248
        %v1087 = vunpack.c.l.b16 %v249
        %v1088 = vunpack.c.h.b16 %v249
        %v1089 = vunpack.c.l.b16 %v250
        %v1090 = vunpack.c.h.b16 %v250
        %v1091 = vunpack.c.l.b16 %v251
        %v1092 = vunpack.c.h.b16 %v251
        %v1093 = vunpack.c.l.b16 %v252
        %v1094 = vunpack.c.h.b16 %v252
        %v1095 = vunpack.c.l.b16 %v253
        %v1096 = vunpack.c.h.b16 %v253
        %v1097 = vunpack.c.l.b16 %v254
        %v1098 = vunpack.c.h.b16 %v254
        %v1099 = vunpack.c.l.b16 %v255
        %v1100 = vunpack.c.h.b16 %v255
        %v1101 = vunpack.c.l.b16 %v256
        %v1102 = vunpack.c.h.b16 %v256
        %v1103 = vunpack.c.l.b16 %v257
        %v1104 = vunpack.c.h.b16 %v257
        %v1105 = vunpack.c.l.b16 %v258
        %v1106 = vunpack.c.h.b16 %v258
        %v1107 = vunpack.c.l.b16 %v259
        %v1108 = vunpack.c.h.b16 %v259
        %v1109 = vunpack.c.l.b16 %v260
        %v1110 = vunpack.c.h.b16 %v260
        %v1111 = vunpack.c.l.b16 %v261
        %v1112 = vunpack.c.h.b16 %v261
        %v1113 = vunpack.c.l.b16 %v262
        %v1114 = vunpack.c.h.b16 %v262
        %v1115 = vunpack.c.l.b16 %v263
        %v1116 = vunpack.c.h.b16 %v263
        %v1117 = vunpack.c.l.b16 %v264
        %v1118 = vunpack.c.h.b16 %v264
        %v1119 = vunpack.c.l.b16 %v265
        %v1120 = vunpack.c.h.b16 %v265
        %v1121 = vunpack.c.l.b16 %v266
        %v1122 = vunpack.c.h.b16 %v266
        %v1123 = vunpack.c.l.b16 %v267
        %v1124 = vunpack.c.h.b16 %v267
        %v1125 = vunpack.c.l.b16 %v268
        %v1126 = vunpack.c.h.b16 %v268
        %v1127 = vunpack.c.l.b16 %v269
        %v1128 = vunpack.c.h.b16 %v269
        %v1129 = vunpack.c.l.b16 %v270
        %v1130 = vunpack.c.h.b16 %v270
        %v1131 = vunpack.c.l.b16 %v271
        %v1132 = vunpack.c.h.b16 %v271
        %v1133 = vunpack.c.l.b16 %v272
        %v1134 = vunpack.c.h.b16 %v272
        %v1135 = vunpack.c.l.b16 %v273
        %v1136 = vunpack.c.h.b16 %v273
        %v1137 = vunpack.c.l.b16 %v274
        %v1138 = vunpack.c.h.b16 %v274
        %v1139 = vunpack.c.l.b16 %v275
        %v1140 = vunpack.c.h.b16 %v275
        %v1141 = vunpack.c.l.b16 %v276
        %v1142 = vunpack.c.h.b16 %v276
        %v1143 = vunpack.c.l.b16 %v277
        %v1144 = vunpack.c.h.b16 %v277
        %v1145 = vunpack.c.l.b16 %v278
        %v1146 = vunpack.c.h.b16 %v278
        %v1147 = vunpack.c.l.b16 %v279
        %v1148 = vunpack.c.h.b16 %v279
        %v1149 = vunpack.c.l.b16 %v280
        %v1150 = vunpack.c.h.b16 %v280
        %v1151 = vunpack.c.l.b16 %v281
        %v1152 = vunpack.c.h.b16 %v281
        %v1153 = vunpack.c.l.b16 %v282
        %v1154 = vunpack.c.h.b16 %v282
        %v1155 = vunpack.c.l.b16 %v283
        %v1156 = vunpack.c.h.b16 %v283
        %v1157 = vunpack.c.l.b16 %v284
        %v1158 = vunpack.c.h.b16 %v284
        %v1159 = vunpack.c.l.b16 %v285
        %v1160 = vunpack.c.h.b16 %v285
        %v1161 = vunpack.c.l.b16 %v286
        %v1162 = vunpack.c.h.b16 %v286
        %v1163 = vunpack.c.l.b16 %v287
        %v1164 = vunpack.c.h.b16 %v287
        %v1165 = vunpack.c.l.b16 %v288
        %v1166 = vunpack.c.h.b16 %v288
        %v1167 = vunpack.c.l.b16 %v289
        %v1168 = vunpack.c.h.b16 %v289
        %v1169 = vunpack.c.l.b16 %v290
        %v1170 = vunpack.c.h.b16 %v290
        %v1171 = vunpack.c.l.b16 %v291
        %v1172 = vunpack.c.h.b16 %v291
        %v1173 = vunpack.c.l.b16 %v292
        %v1174 = vunpack.c.h.b16 %v292
        %v1175 = vunpack.c.l.b16 %v293
        %v1176 = vunpack.c.h.b16 %v293
        %v1177 = vunpack.c.l.b16 %v294
        %v1178 = vunpack.c.h.b16 %v294
        %v1179 = vunpack.c.l.b16 %v295
        %v1180 = vunpack.c.h.b16 %v295
        %v1181 = vunpack.c.l.b16 %v296
        %v1182 = vunpack.c.h.b16 %v296
        %v1183 = vunpack.c.l.b16 %v297
        %v1184 = vunpack.c.h.b16 %v297
        %v1185 = vunpack.c.l.b16 %v298
        %v1186 = vunpack.c.h.b16 %v298
        %v1187 = vunpack.c.l.b16 %v299
        %v1188 = vunpack.c.h.b16 %v299
        %v1189 = vunpack.c.l.b16 %v300
        %v1190 = vunpack.c.h.b16 %v300
        %v1191 = vunpack.c.l.b16 %v301
        %v1192 = vunpack.c.h.b16 %v301
        %v1193 = vunpack.c.l.b16 %v302
        %v1194 = vunpack.c.h.b16 %v302
        %v1195 = vunpack.c.l.b16 %v303
        %v1196 = vunpack.c.h.b16 %v303
        %v1197 = vunpack.c.l.b16 %v304
        %v1198 = vunpack.c.h.b16 %v304
        %v1199 = vunpack.c.l.b16 %v305
        %v1200 = vunpack.c.h.b16 %v305
        %v1201 = vunpack.c.l.b16 %v306
        %v1202 = vunpack.c.h.b16 %v306
        %v1203 = vunpack.c.l.b16 %v307
        %v1204 = vunpack.c.h.b16 %v307
        %v1205 = vunpack.c.l.b16 %v308
        %v1206 = vunpack.c.h.b16 %v308
        %v1207 = vunpack.c.l.b16 %v309
        %v1208 = vunpack.c.h.b16 %v309
        %v1209 = vunpack.c.l.b16 %v310
        %v1210 = vunpack.c.h.b16 %v310
        %v1211 = vunpack.c.l.b16 %v311
        %v1212 = vunpack.c.h.b16 %v311
        %v1213 = vunpack.c.l.b16 %v312
        %v1214 = vunpack.c.h.b16 %v312
        %v1215 = vunpack.c.l.b16 %v313
        %v1216 = vunpack.c.h.b16 %v313
        %v1217 = vunpack.c.l.b16 %v314
        %v1218 = vunpack.c.h.b16 %v314
        %v1219 = vunpack.c.l.b16 %v315
        %v1220 = vunpack.c.h.b16 %v315
        %v1221 = vunpack.c.l.b16 %v316
        %v1222 = vunpack.c.h.b16 %v316
        %v1223 = vunpack.c.l.b16 %v317
        %v1224 = vunpack.c.h.b16 %v317
        %v1225 = vunpack.c.l.b16 %v318
        %v1226 = vunpack.c.h.b16 %v318
        %v1227 = vunpack.c.l.b16 %v319
        %v1228 = vunpack.c.h.b16 %v319
        %v1229 = vunpack.c.l.b16 %v320
        %v1230 = vunpack.c.h.b16 %v320
        %v1231 = vunpack.c.l.b16 %v321
        %v1232 = vunpack.c.h.b16 %v321
        %v1233 = vunpack.c.l.b16 %v322
        %v1234 = vunpack.c.h.b16 %v322
        %v1235 = vunpack.c.l.b16 %v323
        %v1236 = vunpack.c.h.b16 %v323
        %v1237 = vunpack.c.l.b16 %v324
        %v1238 = vunpack.c.h.b16 %v324
        %v1239 = vunpack.c.l.b16 %v325
        %v1240 = vunpack.c.h.b16 %v325
        %v1241 = vunpack.c.l.b16 %v326
        %v1242 = vunpack.c.h.b16 %v326
        %v1243 = vunpack.c.l.b16 %v327
        %v1244 = vunpack.c.h.b16 %v327
        %v1245 = vunpack.c.l.b16 %v328
        %v1246 = vunpack.c.h.b16 %v328
        %v1247 = vunpack.c.l.b16 %v329
        %v1248 = vunpack.c.h.b16 %v329
        %v1249 = vunpack.c.l.b16 %v330
        %v1250 = vunpack.c.h.b16 %v330
        %v1251 = vunpack.c.l.b16 %v331
        %v1252 = vunpack.c.h.b16 %v331
        %v1253 = vunpack.c.l.b16 %v332
        %v1254 = vunpack.c.h.b16 %v332
        %v1255 = vunpack.c.l.b16 %v333
        %v1256 = vunpack.c.h.b16 %v333
        %v1257 = vunpack.c.l.b16 %v334
        %v1258 = vunpack.c.h.b16 %v334
        %v1259 = vunpack.c.l.b16 %v335
        %v1260 = vunpack.c.h.b16 %v335
        %v1261 = vunpack.c.l.b16 %v336
        %v1262 = vunpack.c.h.b16 %v336
        %v1263 = vunpack.c.l.b16 %v337
        %v1264 = vunpack.c.h.b16 %v337
        %v1265 = vunpack.c.l.b16 %v338
        %v1266 = vunpack.c.h.b16 %v338
        %v1267 = vunpack.c.l.b16 %v339
        %v1268 = vunpack.c.h.b16 %v339
        %v1269 = vunpack.c.l.b16 %v340
        %v1270 = vunpack.c.h.b16 %v340
        %v1271 = vunpack.c.l.b16 %v341
        %v1272 = vunpack.c.h.b16 %v341
        %v1273 = vunpack.c.l.b16 %v342
        %v1274 = vunpack.c.h.b16 %v342
        %v1275 = vunpack.c.l.b16 %v343
        %v1276 = vunpack.c.h.b16 %v343
        %v1277 = vunpack.c.l.b16 %v344
        %v1278 = vunpack.c.h.b16 %v344
        %v1279 = vunpack.c.l.b16 %v345
        %v1280 = vunpack.c.h.b16 %v345
        %v1281 = vunpack.c.l.b16 %v346
        %v1282 = vunpack.c.h.b16 %v346
        %v1283 = vunpack.c.l.b16 %v347
        %v1284 = vunpack.c.h.b16 %v347
        %v1285 = vunpack.c.l.b16 %v348
        %v1286 = vunpack.c.h.b16 %v348
        %v1287 = vunpack.c.l.b16 %v349
        %v1288 = vunpack.c.h.b16 %v349
        %v1289 = vunpack.c.l.b16 %v350
        %v1290 = vunpack.c.h.b16 %v350
        %v1291 = vunpack.c.l.b16 %v351
        %v1292 = vunpack.c.h.b16 %v351
        %v1293 = vunpack.c.l.b16 %v352
        %v1294 = vunpack.c.h.b16 %v352
        %v1295 = vunpack.c.l.b16 %v353
        %v1296 = vunpack.c.h.b16 %v353
        %v1297 = vunpack.c.l.b16 %v354
        %v1298 = vunpack.c.h.b16 %v354
        %v1299 = vunpack.c.l.b16 %v355
        %v1300 = vunpack.c.h.b16 %v355
        %v1301 = vunpack.c.l.b16 %v356
        %v1302 = vunpack.c.h.b16 %v356
        %v1303 = vunpack.c.l.b16 %v357
        %v1304 = vunpack.c.h.b16 %v357
        %v1305 = vunpack.c.l.b16 %v358
        %v1306 = vunpack.c.h.b16 %v358
        %v1307 = vunpack.c.l.b16 %v359
        %v1308 = vunpack.c.h.b16 %v359
        %v1309 = vunpack.c.l.b16 %v360
        %v1310 = vunpack.c.h.b16 %v360
        %v1311 = vunpack.c.l.b16 %v361
        %v1312 = vunpack.c.h.b16 %v361
        %v1313 = vunpack.c.l.b16 %v362
        %v1314 = vunpack.c.h.b16 %v362
        %v1315 = vunpack.c.l.b16 %v363
        %v1316 = vunpack.c.h.b16 %v363
        %v1317 = vunpack.c.l.b16 %v364
        %v1318 = vunpack.c.h.b16 %v364
        %v1319 = vunpack.c.l.b16 %v365
        %v1320 = vunpack.c.h.b16 %v365
        %v1321 = vunpack.c.l.b16 %v366
        %v1322 = vunpack.c.h.b16 %v366
        %v1323 = vunpack.c.l.b16 %v367
        %v1324 = vunpack.c.h.b16 %v367
        %v1325 = vunpack.c.l.b16 %v368
        %v1326 = vunpack.c.h.b16 %v368
        %v1327 = vunpack.c.l.b16 %v369
        %v1328 = vunpack.c.h.b16 %v369
        %v1329 = vunpack.c.l.b16 %v370
        %v1330 = vunpack.c.h.b16 %v370
        %v1331 = vunpack.c.l.b16 %v371
        %v1332 = vunpack.c.h.b16 %v371
        %v1333 = vunpack.c.l.b16 %v372
        %v1334 = vunpack.c.h.b16 %v372
        %v1335 = vunpack.c.l.b16 %v373
        %v1336 = vunpack.c.h.b16 %v373
        %v1337 = vunpack.c.l.b16 %v374
        %v1338 = vunpack.c.h.b16 %v374
        %v1339 = vunpack.c.l.b16 %v375
        %v1340 = vunpack.c.h.b16 %v375
        %v1341 = vunpack.c.l.b16 %v376
        %v1342 = vunpack.c.h.b16 %v376
        %v1343 = vunpack.c.l.b16 %v377
        %v1344 = vunpack.c.h.b16 %v377
        %v1345 = vunpack.c.l.b16 %v378
        %v1346 = vunpack.c.h.b16 %v378
        %v1347 = vunpack.c.l.b16 %v379
        %v1348 = vunpack.c.h.b16 %v379
        %v1349 = vunpack.c.l.b16 %v380
        %v1350 = vunpack.c.h.b16 %v380
        %v1351 = vunpack.c.l.b16 %v381
        %v1352 = vunpack.c.h.b16 %v381
        %v1353 = vunpack.c.l.b16 %v382
        %v1354 = vunpack.c.h.b16 %v382
        %v1355 = vunpack.c.l.b16 %v383
        %v1356 = vunpack.c.h.b16 %v383
        %v1357 = vunpack.c.l.b16 %v384
        %v1358 = vunpack.c.h.b16 %v384
        %v1359 = vunpack.c.l.b16 %v385
        %v1360 = vunpack.c.h.b16 %v385
        %v1361 = vunpack.c.l.b16 %v386
        %v1362 = vunpack.c.h.b16 %v386
        %v1363 = vunpack.c.l.b16 %v387
        %v1364 = vunpack.c.h.b16 %v387
        %v1365 = vunpack.c.l.b16 %v388
        %v1366 = vunpack.c.h.b16 %v388
        %v1367 = vunpack.c.l.b16 %v389
        %v1368 = vunpack.c.h.b16 %v389
        %v1369 = vunpack.c.l.b16 %v390
        %v1370 = vunpack.c.h.b16 %v390
        %v1371 = vunpack.c.l.b16 %v391
        %v1372 = vunpack.c.h.b16 %v391
        %v1373 = vunpack.c.l.b16 %v392
        %v1374 = vunpack.c.h.b16 %v392
        %v1375 = vunpack.c.l.b16 %v393
        %v1376 = vunpack.c.h.b16 %v393
        %v1377 = vunpack.c.l.b16 %v394
        %v1378 = vunpack.c.h.b16 %v394
        %v1379 = vunpack.c.l.b16 %v395
        %v1380 = vunpack.c.h.b16 %v395
        %v1381 = vunpack.c.l.b16 %v396
        %v1382 = vunpack.c.h.b16 %v396
        %v1383 = vunpack.c.l.b16 %v397
        %v1384 = vunpack.c.h.b16 %v397
        %v1385 = vunpack.c.l.b16 %v398
        %v1386 = vunpack.c.h.b16 %v398
        %v1387 = vunpack.c.l.b16 %v399
        %v1388 = vunpack.c.h.b16 %v399
        %v1389 = vunpack.c.l.b16 %v400
        %v1390 = vunpack.c.h.b16 %v400
        %v1391 = vunpack.c.l.b16 %v401
        %v1392 = vunpack.c.h.b16 %v401
        %v1393 = vunpack.c.l.b16 %v402
        %v1394 = vunpack.c.h.b16 %v402
        %v1395 = vunpack.c.l.b16 %v403
        %v1396 = vunpack.c.h.b16 %v403
        %v1397 = vunpack.c.l.b16 %v404
        %v1398 = vunpack.c.h.b16 %v404
        %v1399 = vunpack.c.l.b16 %v405
        %v1400 = vunpack.c.h.b16 %v405
        %v1401 = vunpack.c.l.b16 %v406
        %v1402 = vunpack.c.h.b16 %v406
        %v1403 = vunpack.c.l.b16 %v407
        %v1404 = vunpack.c.h.b16 %v407
        %v1405 = vunpack.c.l.b16 %v408
        %v1406 = vunpack.c.h.b16 %v408
        %v1407 = vunpack.c.l.b16 %v409
        %v1408 = vunpack.c.h.b16 %v409
        %v1409 = vunpack.c.l.b16 %v410
        %v1410 = vunpack.c.h.b16 %v410
        %v1411 = vunpack.c.l.b16 %v411
        %v1412 = vunpack.c.h.b16 %v411
        %v1413 = vunpack.c.l.b16 %v412
        %v1414 = vunpack.c.h.b16 %v412
        %v1415 = vunpack.c.l.b16 %v413
        %v1416 = vunpack.c.h.b16 %v413
        %v1417 = vunpack.c.l.b16 %v414
        %v1418 = vunpack.c.h.b16 %v414
        %v1419 = vunpack.c.l.b16 %v415
        %v1420 = vunpack.c.h.b16 %v415
        %v1421 = vunpack.c.l.b16 %v416
        %v1422 = vunpack.c.h.b16 %v416
        %v1423 = vunpack.c.l.b16 %v417
        %v1424 = vunpack.c.h.b16 %v417
        %v1425 = vunpack.c.l.b16 %v418
        %v1426 = vunpack.c.h.b16 %v418
        %v1427 = vunpack.c.l.b16 %v419
        %v1428 = vunpack.c.h.b16 %v419
        %v1429 = vunpack.c.l.b16 %v420
        %v1430 = vunpack.c.h.b16 %v420
        %v1431 = vunpack.c.l.b16 %v421
        %v1432 = vunpack.c.h.b16 %v421
        %v1433 = vunpack.c.l.b16 %v422
        %v1434 = vunpack.c.h.b16 %v422
        %v1435 = vunpack.c.l.b16 %v423
        %v1436 = vunpack.c.h.b16 %v423
        %v1437 = vunpack.c.l.b16 %v424
        %v1438 = vunpack.c.h.b16 %v424
        %v1439 = vunpack.c.l.b16 %v425
        %v1440 = vunpack.c.h.b16 %v425
        %v1441 = vunpack.c.l.b16 %v426
        %v1442 = vunpack.c.h.b16 %v426
        %v1443 = vunpack.c.l.b16 %v427
        %v1444 = vunpack.c.h.b16 %v427
        %v1445 = vunpack.c.l.b16 %v428
        %v1446 = vunpack.c.h.b16 %v428
        %v1447 = vunpack.c.l.b16 %v429
        %v1448 = vunpack.c.h.b16 %v429
        %v1449 = vunpack.c.l.b16 %v430
        %v1450 = vunpack.c.h.b16 %v430
        %v1451 = vunpack.c.l.b16 %v431
        %v1452 = vunpack.c.h.b16 %v431
        %v1453 = vunpack.c.l.b16 %v432
        %v1454 = vunpack.c.h.b16 %v432
        %v1455 = vunpack.c.l.b16 %v433
        %v1456 = vunpack.c.h.b16 %v433
        %v1457 = vunpack.c.l.b16 %v434
        %v1458 = vunpack.c.h.b16 %v434
        %v1459 = vunpack.c.l.b16 %v435
        %v1460 = vunpack.c.h.b16 %v435
        %v1461 = vunpack.c.l.b16 %v436
        %v1462 = vunpack.c.h.b16 %v436
        %v1463 = vunpack.c.l.b16 %v437
        %v1464 = vunpack.c.h.b16 %v437
        %v1465 = vunpack.c.l.b16 %v438
        %v1466 = vunpack.c.h.b16 %v438
        %v1467 = vunpack.c.l.b16 %v439
        %v1468 = vunpack.c.h.b16 %v439
        %v1469 = vunpack.c.l.b16 %v440
        %v1470 = vunpack.c.h.b16 %v440
        %v1471 = vunpack.c.l.b16 %v441
        %v1472 = vunpack.c.h.b16 %v441
        %v1473 = vunpack.c.l.b16 %v442
        %v1474 = vunpack.c.h.b16 %v442
        %v1475 = vunpack.c.l.b16 %v443
        %v1476 = vunpack.c.h.b16 %v443
        %v1477 = vunpack.c.l.b16 %v444
        %v1478 = vunpack.c.h.b16 %v444
        %v1479 = vunpack.c.l.b16 %v445
        %v1480 = vunpack.c.h.b16 %v445
        %v1481 = vunpack.c.l.b16 %v446
        %v1482 = vunpack.c.h.b16 %v446
        %v1483 = vunpack.c.l.b16 %v447
        %v1484 = vunpack.c.h.b16 %v447
        %v1485 = vunpack.c.l.b16 %v448
        %v1486 = vunpack.c.h.b16 %v448
        %v1487 = vunpack.c.l.b16 %v449
        %v1488 = vunpack.c.h.b16 %v449
        %v1489 = vunpack.c.l.b16 %v450
        %v1490 = vunpack.c.h.b16 %v450
        %v1491 = vunpack.c.l.b16 %v451
        %v1492 = vunpack.c.h.b16 %v451
        %v1493 = vunpack.c.l.b16 %v452
        %v1494 = vunpack.c.h.b16 %v452
        %v1495 = vunpack.c.l.b16 %v453
        %v1496 = vunpack.c.h.b16 %v453
        %v1497 = vunpack.c.l.b16 %v454
        %v1498 = vunpack.c.h.b16 %v454
        %v1499 = vunpack.c.l.b16 %v455
        %v1500 = vunpack.c.h.b16 %v455
        %v1501 = vunpack.c.l.b16 %v456
        %v1502 = vunpack.c.h.b16 %v456
        %v1503 = vunpack.c.l.b16 %v457
        %v1504 = vunpack.c.h.b16 %v457
        %v1505 = vunpack.c.l.b16 %v458
        %v1506 = vunpack.c.h.b16 %v458
        %v1507 = vunpack.c.l.b16 %v459
        %v1508 = vunpack.c.h.b16 %v459
        %v1509 = vunpack.c.l.b16 %v460
        %v1510 = vunpack.c.h.b16 %v460
        %v1511 = vunpack.c.l.b16 %v461
        %v1512 = vunpack.c.h.b16 %v461
        %v1513 = vunpack.c.l.b16 %v462
        %v1514 = vunpack.c.h.b16 %v462
        %v1515 = vunpack.c.l.b16 %v463
        %v1516 = vunpack.c.h.b16 %v463
        %v1517 = vunpack.c.l.b16 %v464
        %v1518 = vunpack.c.h.b16 %v464
        %v1519 = vunpack.c.l.b16 %v465
        %v1520 = vunpack.c.h.b16 %v465
        %v1521 = vunpack.c.l.b16 %v466
        %v1522 = vunpack.c.h.b16 %v466
        %v1523 = vunpack.c.l.b16 %v467
        %v1524 = vunpack.c.h.b16 %v467
        %v1525 = vunpack.c.l.b16 %v468
        %v1526 = vunpack.c.h.b16 %v468
        %v1527 = vunpack.c.l.b16 %v469
        %v1528 = vunpack.c.h.b16 %v469
        %v1529 = vunpack.c.l.b16 %v470
        %v1530 = vunpack.c.h.b16 %v470
        %v1531 = vunpack.c.l.b16 %v471
        %v1532 = vunpack.c.h.b16 %v471
        %v1533 = vunpack.c.l.b16 %v472
        %v1534 = vunpack.c.h.b16 %v472
        %v1535 = vunpack.c.l.b16 %v473
        %v1536 = vunpack.c.h.b16 %v473
        %v1537 = vunpack.c.l.b16 %v474
        %v1538 = vunpack.c.h.b16 %v474
        %v1539 = vunpack.c.l.b16 %v475
        %v1540 = vunpack.c.h.b16 %v475
        %v1541 = vunpack.c.l.b16 %v476
        %v1542 = vunpack.c.h.b16 %v476
        %v1543 = vunpack.c.l.b16 %v477
        %v1544 = vunpack.c.h.b16 %v477
        %v1545 = vunpack.c.l.b16 %v478
        %v1546 = vunpack.c.h.b16 %v478
        %v1547 = vunpack.c.l.b16 %v479
        %v1548 = vunpack.c.h.b16 %v479
        %v1549 = vunpack.c.l.b16 %v480
        %v1550 = vunpack.c.h.b16 %v480
        %v1551 = vunpack.c.l.b16 %v481
        %v1552 = vunpack.c.h.b16 %v481
        %v1553 = vunpack.c.l.b16 %v482
        %v1554 = vunpack.c.h.b16 %v482
        %v1555 = vunpack.c.l.b16 %v483
        %v1556 = vunpack.c.h.b16 %v483
        %v1557 = vunpack.c.l.b16 %v484
        %v1558 = vunpack.c.h.b16 %v484
        %v1559 = vunpack.c.l.b16 %v485
        %v1560 = vunpack.c.h.b16 %v485
        %v1561 = vunpack.c.l.b16 %v486
        %v1562 = vunpack.c.h.b16 %v486
        %v1563 = vunpack.c.l.b16 %v487
        %v1564 = vunpack.c.h.b16 %v487
        %v1565 = vunpack.c.l.b16 %v488
        %v1566 = vunpack.c.h.b16 %v488
        %v1567 = vunpack.c.l.b16 %v489
        %v1568 = vunpack.c.h.b16 %v489
        %v1569 = vunpack.c.l.b16 %v490
        %v1570 = vunpack.c.h.b16 %v490
        %v1571 = vunpack.c.l.b16 %v491
        %v1572 = vunpack.c.h.b16 %v491
        %v1573 = vunpack.c.l.b16 %v492
        %v1574 = vunpack.c.h.b16 %v492
        %v1575 = vunpack.c.l.b16 %v493
        %v1576 = vunpack.c.h.b16 %v493
        %v1577 = vunpack.c.l.b16 %v494
        %v1578 = vunpack.c.h.b16 %v494
        %v1579 = vunpack.c.l.b16 %v495
        %v1580 = vunpack.c.h.b16 %v495
        %v1581 = vunpack.c.l.b16 %v496
        %v1582 = vunpack.c.h.b16 %v496
        %v1583 = vunpack.c.l.b16 %v497
        %v1584 = vunpack.c.h.b16 %v497
        %v1585 = vunpack.c.l.b16 %v498
        %v1586 = vunpack.c.h.b16 %v498
        %v1587 = vunpack.c.l.b16 %v499
        %v1588 = vunpack.c.h.b16 %v499
        %v1589 = vunpack.c.l.b16 %v500
        %v1590 = vunpack.c.h.b16 %v500
        %v1591 = vunpack.c.l.b16 %v501
        %v1592 = vunpack.c.h.b16 %v501
        %v1593 = vunpack.c.l.b16 %v502
        %v1594 = vunpack.c.h.b16 %v502
        %v1595 = vunpack.c.l.b16 %v503
        %v1596 = vunpack.c.h.b16 %v503
        %v1597 = vunpack.c.l.b16 %v504
        %v1598 = vunpack.c.h.b16 %v504
        %v1599 = vunpack.c.l.b16 %v505
        %v1600 = vunpack.c.h.b16 %v505
        %v1601 = vunpack.c.l.b16 %v506
        %v1602 = vunpack.c.h.b16 %v506
        %v1603 = vunpack.c.l.b16 %v507
        %v1604 = vunpack.c.h.b16 %v507
        %v1605 = vunpack.c.l.b16 %v508
        %v1606 = vunpack.c.h.b16 %v508
        %v1607 = vunpack.c.l.b16 %v509
        %v1608 = vunpack.c.h.b16 %v509
        %v1609 = vunpack.c.l.b16 %v510
        %v1610 = vunpack.c.h.b16 %v510
        %v1611 = vunpack.c.l.b16 %v511
        %v1612 = vunpack.c.h.b16 %v511
        %v1613 = vunpack.c.l.b16 %v512
        %v1614 = vunpack.c.h.b16 %v512
        %v1615 = vunpack.c.l.b16 %v513
        %v1616 = vunpack.c.h.b16 %v513
        %v1617 = vunpack.c.l.b16 %v514
        %v1618 = vunpack.c.h.b16 %v514
        %v1619 = vunpack.c.l.b16 %v515
        %v1620 = vunpack.c.h.b16 %v515
        %v1621 = vunpack.c.l.b16 %v516
        %v1622 = vunpack.c.h.b16 %v516
        %v1623 = vunpack.c.l.b16 %v517
        %v1624 = vunpack.c.h.b16 %v517
        %v1625 = vunpack.c.l.b16 %v518
        %v1626 = vunpack.c.h.b16 %v518
        %v1627 = vunpack.c.l.b16 %v519
        %v1628 = vunpack.c.h.b16 %v519
        %v1629 = vunpack.c.l.b16 %v520
        %v1630 = vunpack.c.h.b16 %v520
        %v1631 = vunpack.c.l.b16 %v521
        %v1632 = vunpack.c.h.b16 %v521
        %v1633 = vunpack.c.l.b16 %v522
        %v1634 = vunpack.c.h.b16 %v522
        %v1635 = vunpack.c.l.b16 %v523
        %v1636 = vunpack.c.h.b16 %v523
        %v1637 = vunpack.c.l.b16 %v524
        %v1638 = vunpack.c.h.b16 %v524
        %v1639 = vunpack.c.l.b16 %v525
        %v1640 = vunpack.c.h.b16 %v525
        %v1641 = vunpack.c.l.b16 %v526
        %v1642 = vunpack.c.h.b16 %v526
        %v1643 = vunpack.c.l.b16 %v527
        %v1644 = vunpack.c.h.b16 %v527
        %v1645 = vunpack.c.l.b16 %v528
        %v1646 = vunpack.c.h.b16 %v528
        %v1647 = vunpack.c.l.b16 %v529
        %v1648 = vunpack.c.h.b16 %v529
        %v1649 = vunpack.c.l.b16 %v530
        %v1650 = vunpack.c.h.b16 %v530
        %v1651 = vunpack.c.l.b16 %v531
        %v1652 = vunpack.c.h.b16 %v531
        %v1653 = vunpack.c.l.b16 %v532
        %v1654 = vunpack.c.h.b16 %v532
        %v1655 = vunpack.c.l.b16 %v533
        %v1656 = vunpack.c.h.b16 %v533
        %v1657 = vunpack.c.l.b16 %v534
        %v1658 = vunpack.c.h.b16 %v534
        %v1659 = vunpack.c.l.b16 %v535
        %v1660 = vunpack.c.h.b16 %v535
        %v1661 = vunpack.c.l.b16 %v536
        %v1662 = vunpack.c.h.b16 %v536
        %v1663 = vunpack.c.l.b16 %v537
        %v1664 = vunpack.c.h.b16 %v537
        %v1665 = vunpack.c.l.b16 %v538
        %v1666 = vunpack.c.h.b16 %v538
        %v1667 = vunpack.c.l.b16 %v539
        %v1668 = vunpack.c.h.b16 %v539
        %v1669 = vunpack.c.l.b16 %v540
        %v1670 = vunpack.c.h.b16 %v540
        %v1671 = vunpack.c.l.b16 %v541
        %v1672 = vunpack.c.h.b16 %v541
        %v1673 = vunpack.c.l.b16 %v542
        %v1674 = vunpack.c.h.b16 %v542
        %v1675 = vunpack.c.l.b16 %v543
        %v1676 = vunpack.c.h.b16 %v543
        %v1677 = vunpack.c.l.b16 %v544
        %v1678 = vunpack.c.h.b16 %v544
        %v1679 = vunpack.c.l.b16 %v545
        %v1680 = vunpack.c.h.b16 %v545
        %v1681 = vunpack.c.l.b16 %v546
        %v1682 = vunpack.c.h.b16 %v546
        %v1683 = vunpack.c.l.b16 %v547
        %v1684 = vunpack.c.h.b16 %v547
        %v1685 = vunpack.c.l.b16 %v548
        %v1686 = vunpack.c.h.b16 %v548
        %v1687 = vunpack.c.l.b16 %v549
        %v1688 = vunpack.c.h.b16 %v549
        %v1689 = vunpack.c.l.b16 %v550
        %v1690 = vunpack.c.h.b16 %v550
        %v1691 = vunpack.c.l.b16 %v551
        %v1692 = vunpack.c.h.b16 %v551
        %v1693 = vunpack.c.l.b16 %v552
        %v1694 = vunpack.c.h.b16 %v552
        %v1695 = vunpack.c.l.b16 %v553
        %v1696 = vunpack.c.h.b16 %v553
        %v1697 = vunpack.c.l.b16 %v554
        %v1698 = vunpack.c.h.b16 %v554
        %v1699 = vunpack.c.l.b16 %v555
        %v1700 = vunpack.c.h.b16 %v555
        %v1701 = vunpack.c.l.b16 %v556
        %v1702 = vunpack.c.h.b16 %v556
        %v1703 = vunpack.c.l.b16 %v557
        %v1704 = vunpack.c.h.b16 %v557
        %v1705 = vunpack.c.l.b16 %v558
        %v1706 = vunpack.c.h.b16 %v558
        %v1707 = vunpack.c.l.b16 %v559
        %v1708 = vunpack.c.h.b16 %v559
        %v1709 = vunpack.c.l.b16 %v560
        %v1710 = vunpack.c.h.b16 %v560
        %v1711 = vunpack.c.l.b16 %v561
        %v1712 = vunpack.c.h.b16 %v561
        %v1713 = vunpack.c.l.b16 %v562
        %v1714 = vunpack.c.h.b16 %v562
        %v1715 = vunpack.c.l.b16 %v563
        %v1716 = vunpack.c.h.b16 %v563
        %v1717 = vunpack.c.l.b16 %v564
        %v1718 = vunpack.c.h.b16 %v564
        %v1719 = vunpack.c.l.b16 %v565
        %v1720 = vunpack.c.h.b16 %v565
        %v1721 = vunpack.c.l.b16 %v566
        %v1722 = vunpack.c.h.b16 %v566
        %v1723 = vunpack.c.l.b16 %v567
        %v1724 = vunpack.c.h.b16 %v567
        %v1725 = vunpack.c.l.b16 %v568
        %v1726 = vunpack.c.h.b16 %v568
        %v1727 = vunpack.c.l.b16 %v569
        %v1728 = vunpack.c.h.b16 %v569
        %v1729 = vunpack.c.l.b16 %v570
        %v1730 = vunpack.c.h.b16 %v570
        %v1731 = vunpack.c.l.b16 %v571
        %v1732 = vunpack.c.h.b16 %v571
        %v1733 = vunpack.c.l.b16 %v572
        %v1734 = vunpack.c.h.b16 %v572
        %v1735 = vunpack.c.l.b16 %v573
        %v1736 = vunpack.c.h.b16 %v573
        %v1737 = vunpack.c.l.b16 %v574
        %v1738 = vunpack.c.h.b16 %v574
        %v1739 = vunpack.c.l.b16 %v575
        %v1740 = vunpack.c.h.b16 %v575
        %v1741 = vunpack.c.l.b16 %v576
        %v1742 = vunpack.c.h.b16 %v576
        %v1743 = vunpack.c.l.b16 %v577
        %v1744 = vunpack.c.h.b16 %v577
        %v1745 = vunpack.c.l.b16 %v578
        %v1746 = vunpack.c.h.b16 %v578
        %v1747 = vunpack.c.l.b16 %v579
        %v1748 = vunpack.c.h.b16 %v579
        %v1749 = vunpack.c.l.b16 %v580
        %v1750 = vunpack.c.h.b16 %v580
        %v1751 = vunpack.c.l.b16 %v581
        %v1752 = vunpack.c.h.b16 %v581
        %v1753 = vunpack.c.l.b16 %v582
        %v1754 = vunpack.c.h.b16 %v582
        %v1755 = vunpack.c.l.b16 %v583
        %v1756 = vunpack.c.h.b16 %v583
        %v1757 = vunpack.c.l.b16 %v584
        %v1758 = vunpack.c.h.b16 %v584
        %v1759 = vunpack.c.l.b16 %v585
        %v1760 = vunpack.c.h.b16 %v585
        %v1761 = vunpack.c.l.b16 %v586
        %v1762 = vunpack.c.h.b16 %v586
        %v1763 = vunpack.c.l.b16 %v587
        %v1764 = vunpack.c.h.b16 %v587
        %v1765 = vunpack.c.l.b16 %v588
        %v1766 = vunpack.c.h.b16 %v588
        %v1767 = vunpack.c.l.b16 %v589
        %v1768 = vunpack.c.h.b16 %v589
        %v1769 = vunpack.c.l.b16 %v590
        %v1770 = vunpack.c.h.b16 %v590
        %v1771 = vunpack.c.l.b16 %v591
        %v1772 = vunpack.c.h.b16 %v591
        %v1773 = vunpack.c.l.b16 %v592
        %v1774 = vunpack.c.h.b16 %v592
        %v1775 = vunpack.c.l.b16 %v593
        %v1776 = vunpack.c.h.b16 %v593
        %v1777 = vunpack.c.l.b16 %v594
        %v1778 = vunpack.c.h.b16 %v594
        %v1779 = vunpack.c.l.b16 %v595
        %v1780 = vunpack.c.h.b16 %v595
        %v1781 = vunpack.c.l.b16 %v596
        %v1782 = vunpack.c.h.b16 %v596
        %v1783 = vunpack.c.l.b16 %v597
        %v1784 = vunpack.c.h.b16 %v597
        %v1785 = vunpack.c.l.b16 %v598
        %v1786 = vunpack.c.h.b16 %v598
        %v1787 = vunpack.c.l.b16 %v599
        %v1788 = vunpack.c.h.b16 %v599
        %v1789 = vunpack.c.l.b16 %v600
        %v1790 = vunpack.c.h.b16 %v600
        %v1791 = vunpack.c.l.b16 %v601
        %v1792 = vunpack.c.h.b16 %v601
        %v1793 = vunpack.c.l.b16 %v602
        %v1794 = vunpack.c.h.b16 %v602
        %v1795 = vunpack.c.l.b16 %v603
        %v1796 = vunpack.c.h.b16 %v603
        %v1797 = vunpack.c.l.b16 %v604
        %v1798 = vunpack.c.h.b16 %v604
        %v1799 = vunpack.c.l.b16 %v605
        %v1800 = vunpack.c.h.b16 %v605
        %v1801 = vunpack.c.l.b16 %v606
        %v1802 = vunpack.c.h.b16 %v606
        %v1803 = vunpack.c.l.b16 %v607
        %v1804 = vunpack.c.h.b16 %v607
        %v1805 = vunpack.c.l.b16 %v608
        %v1806 = vunpack.c.h.b16 %v608
        %v1807 = vunpack.c.l.b16 %v609
        %v1808 = vunpack.c.h.b16 %v609
        %v1809 = vunpack.c.l.b16 %v610
        %v1810 = vunpack.c.h.b16 %v610
        %v1811 = vunpack.c.l.b16 %v611
        %v1812 = vunpack.c.h.b16 %v611
        %v1813 = vunpack.c.l.b16 %v612
        %v1814 = vunpack.c.h.b16 %v612
        %v1815 = vunpack.c.l.b16 %v613
        %v1816 = vunpack.c.h.b16 %v613
        %v1817 = vunpack.c.l.b16 %v614
        %v1818 = vunpack.c.h.b16 %v614
        %v1819 = vunpack.c.l.b16 %v615
        %v1820 = vunpack.c.h.b16 %v615
        %v1821 = vunpack.c.l.b16 %v616
        %v1822 = vunpack.c.h.b16 %v616
        %v1823 = vunpack.c.l.b16 %v617
        %v1824 = vunpack.c.h.b16 %v617
        %v1825 = vunpack.c.l.b16 %v618
        %v1826 = vunpack.c.h.b16 %v618
        %v1827 = vunpack.c.l.b16 %v619
        %v1828 = vunpack.c.h.b16 %v619
        %v1829 = vunpack.c.l.b16 %v620
        %v1830 = vunpack.c.h.b16 %v620
        %v1831 = vunpack.c.l.b16 %v621
        %v1832 = vunpack.c.h.b16 %v621
        %v1833 = vunpack.c.l.b16 %v622
        %v1834 = vunpack.c.h.b16 %v622
        %v1835 = vunpack.c.l.b16 %v623
        %v1836 = vunpack.c.h.b16 %v623
        %v1837 = vunpack.c.l.b16 %v624
        %v1838 = vunpack.c.h.b16 %v624
        %v1839 = vunpack.c.l.b16 %v625
        %v1840 = vunpack.c.h.b16 %v625
        %v1841 = vunpack.c.l.b16 %v626
        %v1842 = vunpack.c.h.b16 %v626
        %v1843 = vunpack.c.l.b16 %v627
        %v1844 = vunpack.c.h.b16 %v627
        %v1845 = vunpack.c.l.b16 %v628
        %v1846 = vunpack.c.h.b16 %v628
        %v1847 = vunpack.c.l.b16 %v629
        %v1848 = vunpack.c.h.b16 %v629
        %v1849 = vunpack.c.l.b16 %v630
        %v1850 = vunpack.c.h.b16 %v630
        %v1851 = vunpack.c.l.b16 %v631
        %v1852 = vunpack.c.h.b16 %v631
        %v1853 = vpack.c.b16 %v1069, %v1065
        %v1854 = vpack.c.b16 %v1070, %v1066
        %v1855 = vpack.c.b16 %v1071, %v1067
        %v1856 = vpack.c.b16 %v1072, %v1068
        %v1857 = vpack.c.b16 %v1077, %v1073
        %v1858 = vpack.c.b16 %v1078, %v1074
        %v1859 = vpack.c.b16 %v1079, %v1075
        %v1860 = vpack.c.b16 %v1080, %v1076
        %v1861 = vpack.c.b16 %v1085, %v1081
        %v1862 = vpack.c.b16 %v1086, %v1082
        %v1863 = vpack.c.b16 %v1087, %v1083
        %v1864 = vpack.c.b16 %v1088, %v1084
        %v1865 = vpack.c.b16 %v1093, %v1089
        %v1866 = vpack.c.b16 %v1094, %v1090
        %v1867 = vpack.c.b16 %v1095, %v1091
        %v1868 = vpack.c.b16 %v1096, %v1092
        %v1869 = vpack.c.b16 %v1101, %v1097
        %v1870 = vpack.c.b16 %v1102, %v1098
        %v1871 = vpack.c.b16 %v1103, %v1099
        %v1872 = vpack.c.b16 %v1104, %v1100
        %v1873 = vpack.c.b16 %v1109, %v1105
        %v1874 = vpack.c.b16 %v1110, %v1106
        %v1875 = vpack.c.b16 %v1111, %v1107
        %v1876 = vpack.c.b16 %v1112, %v1108
        %v1877 = vpack.c.b16 %v1117, %v1113
        %v1878 = vpack.c.b16 %v1118, %v1114
        %v1879 = vpack.c.b16 %v1119, %v1115
        %v1880 = vpack.c.b16 %v1120, %v1116
        %v1881 = vpack.c.b16 %v1125, %v1121
        %v1882 = vpack.c.b16 %v1126, %v1122
        %v1883 = vpack.c.b16 %v1127, %v1123
        %v1884 = vpack.c.b16 %v1128, %v1124
        %v1885 = vpack.c.b16 %v1133, %v1129
        %v1886 = vpack.c.b16 %v1134, %v1130
        %v1887 = vpack.c.b16 %v1135, %v1131
        %v1888 = vpack.c.b16 %v1136, %v1132
        %v1889 = vpack.c.b16 %v1141, %v1137
        %v1890 = vpack.c.b16 %v1142, %v1138
        %v1891 = vpack.c.b16 %v1143, %v1139
        %v1892 = vpack.c.b16 %v1144, %v1140
        %v1893 = vpack.c.b16 %v1149, %v1145
        %v1894 = vpack.c.b16 %v1150, %v1146
        %v1895 = vpack.c.b16 %v1151, %v1147
        %v1896 = vpack.c.b16 %v1152, %v1148
        %v1897 = vpack.c.b16 %v1157, %v1153
        %v1898 = vpack.c.b16 %v1158, %v1154
        %v1899 = vpack.c.b16 %v1159, %v1155
        %v1900 = vpack.c.b16 %v1160, %v1156
        %v1901 = vpack.c.b16 %v1165, %v1161
        %v1902 = vpack.c.b16 %v1166, %v1162
        %v1903 = vpack.c.b16 %v1167, %v1163
        %v1904 = vpack.c.b16 %v1168, %v1164
        %v1905 = vpack.c.b16 %v1173, %v1169
        %v1906 = vpack.c.b16 %v1174, %v1170
        %v1907 = vpack.c.b16 %v1175, %v1171
        %v1908 = vpack.c.b16 %v1176, %v1172
        %v1909 = vpack.c.b16 %v1181, %v1177
        %v1910 = vpack.c.b16 %v1182, %v1178
        %v1911 = vpack.c.b16 %v1183, %v1179
        %v1912 = vpack.c.b16 %v1184, %v1180
        %v1913 = vpack.c.b16 %v1189, %v1185
        %v1914 = vpack.c.b16 %v1190, %v1186
        %v1915 = vpack.c.b16 %v1191, %v1187
        %v1916 = vpack.c.b16 %v1192, %v1188
        %v1917 = vpack.c.b16 %v1197, %v1193
        %v1918 = vpack.c.b16 %v1198, %v1194
        %v1919 = vpack.c.b16 %v1199, %v1195
        %v1920 = vpack.c.b16 %v1200, %v1196
        %v1921 = vpack.c.b16 %v1205, %v1201
        %v1922 = vpack.c.b16 %v1206, %v1202
        %v1923 = vpack.c.b16 %v1207, %v1203
        %v1924 = vpack.c.b16 %v1208, %v1204
        %v1925 = vpack.c.b16 %v1213, %v1209
        %v1926 = vpack.c.b16 %v1214, %v1210
        %v1927 = vpack.c.b16 %v1215, %v1211
        %v1928 = vpack.c.b16 %v1216, %v1212
        %v1929 = vpack.c.b16 %v1221, %v1217
        %v1930 = vpack.c.b16 %v1222, %v1218
        %v1931 = vpack.c.b16 %v1223, %v1219
        %v1932 = vpack.c.b16 %v1224, %v1220
        %v1933 = vpack.c.b16 %v1229, %v1225
        %v1934 = vpack.c.b16 %v1230, %v1226
        %v1935 = vpack.c.b16 %v1231, %v1227
        %v1936 = vpack.c.b16 %v1232, %v1228
        %v1937 = vpack.c.b16 %v1237, %v1233
        %v1938 = vpack.c.b16 %v1238, %v1234
        %v1939 = vpack.c.b16 %v1239, %v1235
        %v1940 = vpack.c.b16 %v1240, %v1236
        %v1941 = vpack.c.b16 %v1245, %v1241
        %v1942 = vpack.c.b16 %v1246, %v1242
        %v1943 = vpack.c.b16 %v1247, %v1243
        %v1944 = vpack.c.b16 %v1248, %v1244
        %v1945 = vpack.c.b16 %v1253, %v1249
        %v1946 = vpack.c.b16 %v1254, %v1250
        %v1947 = vpack.c.b16 %v1255, %v1251
        %v1948 = vpack.c.b16 %v1256, %v1252
        %v1949 = vpack.c.b16 %v1261, %v1257
        %v1950 = vpack.c.b16 %v1262, %v1258
        %v1951 = vpack.c.b16 %v1263, %v1259
        %v1952 = vpack.c.b16 %v1264, %v1260
        %v1953 = vpack.c.b16 %v1269, %v1265
        %v1954 = vpack.c.b16 %v1270, %v1266
        %v1955 = vpack.c.b16 %v1271, %v1267
        %v1956 = vpack.c.b16 %v1272, %v1268
        %v1957 = vpack.c.b16 %v1277, %v1273
        %v1958 = vpack.c.b16 %v1278, %v1274
        %v1959 = vpack.c.b16 %v1279, %v1275
        %v1960 = vpack.c.b16 %v1280, %v1276
        %v1961 = vpack.c.b16 %v1285, %v1281
        %v1962 = vpack.c.b16 %v1286, %v1282
        %v1963 = vpack.c.b16 %v1287, %v1283
        %v1964 = vpack.c.b16 %v1288, %v1284
        %v1965 = vpack.c.b16 %v1293, %v1289
        %v1966 = vpack.c.b16 %v1294, %v1290
        %v1967 = vpack.c.b16 %v1295, %v1291
        %v1968 = vpack.c.b16 %v1296, %v1292
        %v1969 = vpack.c.b16 %v1301, %v1297
        %v1970 = vpack.c.b16 %v1302, %v1298
        %v1971 = vpack.c.b16 %v1303, %v1299
        %v1972 = vpack.c.b16 %v1304, %v1300
        %v1973 = vpack.c.b16 %v1309, %v1305
        %v1974 = vpack.c.b16 %v1310, %v1306
        %v1975 = vpack.c.b16 %v1311, %v1307
        %v1976 = vpack.c.b16 %v1312, %v1308
        %v1977 = vpack.c.b16 %v1317, %v1313
        %v1978 = vpack.c.b16 %v1318, %v1314
        %v1979 = vpack.c.b16 %v1319, %v1315
        %v1980 = vpack.c.b16 %v1320, %v1316
        %v1981 = vpack.c.b16 %v1325, %v1321
        %v1982 = vpack.c.b16 %v1326, %v1322
        %v1983 = vpack.c.b16 %v1327, %v1323
        %v1984 = vpack.c.b16 %v1328, %v1324
        %v1985 = vpack.c.b16 %v1333, %v1329
        %v1986 = vpack.c.b16 %v1334, %v1330
        %v1987 = vpack.c.b16 %v1335, %v1331
        %v1988 = vpack.c.b16 %v1336, %v1332
        %v1989 = vpack.c.b16 %v1341, %v1337
        %v1990 = vpack.c.b16 %v1342, %v1338
        %v1991 = vpack.c.b16 %v1343, %v1339
        %v1992 = vpack.c.b16 %v1344, %v1340
        %v1993 = vpack.c.b16 %v1349, %v1345
        %v1994 = vpack.c.b16 %v1350, %v1346
        %v1995 = vpack.c.b16 %v1351, %v1347
        %v1996 = vpack.c.b16 %v1352, %v1348
        %v1997 = vpack.c.b16 %v1357, %v1353
        %v1998 = vpack.c.b16 %v1358, %v1354
        %v1999 = vpack.c.b16 %v1359, %v1355
        %v2000 = vpack.c.b16 %v1360, %v1356
        %v2001 = vpack.c.b16 %v1365, %v1361
        %v2002 = vpack.c.b16 %v1366, %v1362
        %v2003 = vpack.c.b16 %v1367, %v1363
        %v2004 = vpack.c.b16 %v1368, %v1364
        %v2005 = vpack.c.b16 %v1373, %v1369
        %v2006 = vpack.c.b16 %v1374, %v1370
        %v2007 = vpack.c.b16 %v1375, %v1371
        %v2008 = vpack.c.b16 %v1376, %v1372
        %v2009 = vpack.c.b16 %v1381, %v1377
        %v2010 = vpack.c.b16 %v1382, %v1378
        %v2011 = vpack.c.b16 %v1383, %v1379
        %v2012 = vpack.c.b16 %v1384, %v1380
        %v2013 = vpack.c.b16 %v1389, %v1385
        %v2014 = vpack.c.b16 %v1390, %v1386
        %v2015 = vpack.c.b16 %v1391, %v1387
        %v2016 = vpack.c.b16 %v1392, %v1388
        %v2017 = vpack.c.b16 %v1397, %v1393
        %v2018 = vpack.c.b16 %v1398, %v1394
        %v2019 = vpack.c.b16 %v1399, %v1395
        %v2020 = vpack.c.b16 %v1400, %v1396
        %v2021 = vpack.c.b16 %v1405, %v1401
        %v2022 = vpack.c.b16 %v1406, %v1402
        %v2023 = vpack.c.b16 %v1407, %v1403
        %v2024 = vpack.c.b16 %v1408, %v1404
        %v2025 = vpack.c.b16 %v1413, %v1409
        %v2026 = vpack.c.b16 %v1414, %v1410
        %v2027 = vpack.c.b16 %v1415, %v1411
        %v2028 = vpack.c.b16 %v1416, %v1412
        %v2029 = vpack.c.b16 %v1421, %v1417
        %v2030 = vpack.c.b16 %v1422, %v1418
        %v2031 = vpack.c.b16 %v1423, %v1419
        %v2032 = vpack.c.b16 %v1424, %v1420
        %v2033 = vpack.c.b16 %v1429, %v1425
        %v2034 = vpack.c.b16 %v1430, %v1426
        %v2035 = vpack.c.b16 %v1431, %v1427
        %v2036 = vpack.c.b16 %v1432, %v1428
        %v2037 = vpack.c.b16 %v1437, %v1433
        %v2038 = vpack.c.b16 %v1438, %v1434
        %v2039 = vpack.c.b16 %v1439, %v1435
        %v2040 = vpack.c.b16 %v1440, %v1436
        %v2041 = vpack.c.b16 %v1445, %v1441
        %v2042 = vpack.c.b16 %v1446, %v1442
        %v2043 = vpack.c.b16 %v1447, %v1443
        %v2044 = vpack.c.b16 %v1448, %v1444
        %v2045 = vpack.c.b16 %v1453, %v1449
        %v2046 = vpack.c.b16 %v1454, %v1450
        %v2047 = vpack.c.b16 %v1455, %v1451
        %v2048 = vpack.c.b16 %v1456, %v1452
        %v2049 = vpack.c.b16 %v1461, %v1457
        %v2050 = vpack.c.b16 %v1462, %v1458
        %v2051 = vpack.c.b16 %v1463, %v1459
        %v2052 = vpack.c.b16 %v1464, %v1460
        %v2053 = vpack.c.b16 %v1469, %v1465
        %v2054 = vpack.c.b16 %v1470, %v1466
        %v2055 = vpack.c.b16 %v1471, %v1467
        %v2056 = vpack.c.b16 %v1472, %v1468
        %v2057 = vpack.c.b16 %v1477, %v1473
        %v2058 = vpack.c.b16 %v1478, %v1474
        %v2059 = vpack.c.b16 %v1479, %v1475
        %v2060 = vpack.c.b16 %v1480, %v1476
        %v2061 = vpack.c.b16 %v1485, %v1481
        %v2062 = vpack.c.b16 %v1486, %v1482
        %v2063 = vpack.c.b16 %v1487, %v1483
        %v2064 = vpack.c.b16 %v1488, %v1484
        %v2065 = vpack.c.b16 %v1493, %v1489
        %v2066 = vpack.c.b16 %v1494, %v1490
        %v2067 = vpack.c.b16 %v1495, %v1491
        %v2068 = vpack.c.b16 %v1496, %v1492
        %v2069 = vpack.c.b16 %v1501, %v1497
        %v2070 = vpack.c.b16 %v1502, %v1498
        %v2071 = vpack.c.b16 %v1503, %v1499
        %v2072 = vpack.c.b16 %v1504, %v1500
        %v2073 = vpack.c.b16 %v1509, %v1505
        %v2074 = vpack.c.b16 %v1510, %v1506
        %v2075 = vpack.c.b16 %v1511, %v1507
        %v2076 = vpack.c.b16 %v1512, %v1508
        %v2077 = vpack.c.b16 %v1517, %v1513
        %v2078 = vpack.c.b16 %v1518, %v1514
        %v2079 = vpack.c.b16 %v1519, %v1515
        %v2080 = vpack.c.b16 %v1520, %v1516
        %v2081 = vpack.c.b16 %v1525, %v1521
        %v2082 = vpack.c.b16 %v1526, %v1522
        %v2083 = vpack.c.b16 %v1527, %v1523
        %v2084 = vpack.c.b16 %v1528, %v1524
        %v2085 = vpack.c.b16 %v1533, %v1529
        %v2086 = vpack.c.b16 %v1534, %v1530
        %v2087 = vpack.c.b16 %v1535, %v1531
        %v2088 = vpack.c.b16 %v1536, %v1532
        %v2089 = vpack.c.b16 %v1541, %v1537
        %v2090 = vpack.c.b16 %v1542, %v1538
        %v2091 = vpack.c.b16 %v1543, %v1539
        %v2092 = vpack.c.b16 %v1544, %v1540
        %v2093 = vpack.c.b16 %v1549, %v1545
        %v2094 = vpack.c.b16 %v1550, %v1546
        %v2095 = vpack.c.b16 %v1551, %v1547
        %v2096 = vpack.c.b16 %v1552, %v1548
        %v2097 = vpack.c.b16 %v1557, %v1553
        %v2098 = vpack.c.b16 %v1558, %v1554
        %v2099 = vpack.c.b16 %v1559, %v1555
        %v2100 = vpack.c.b16 %v1560, %v1556
        %v2101 = vpack.c.b16 %v1565, %v1561
        %v2102 = vpack.c.b16 %v1566, %v1562
        %v2103 = vpack.c.b16 %v1567, %v1563
        %v2104 = vpack.c.b16 %v1568, %v1564
        %v2105 = vpack.c.b16 %v1573, %v1569
        %v2106 = vpack.c.b16 %v1574, %v1570
        %v2107 = vpack.c.b16 %v1575, %v1571
        %v2108 = vpack.c.b16 %v1576, %v1572
        %v2109 = vpack.c.b16 %v1581, %v1577
        %v2110 = vpack.c.b16 %v1582, %v1578
        %v2111 = vpack.c.b16 %v1583, %v1579
        %v2112 = vpack.c.b16 %v1584, %v1580
        %v2113 = vpack.c.b16 %v1589, %v1585
        %v2114 = vpack.c.b16 %v1590, %v1586
        %v2115 = vpack.c.b16 %v1591, %v1587
        %v2116 = vpack.c.b16 %v1592, %v1588
        %v2117 = vpack.c.b16 %v1597, %v1593
        %v2118 = vpack.c.b16 %v1598, %v1594
        %v2119 = vpack.c.b16 %v1599, %v1595
        %v2120 = vpack.c.b16 %v1600, %v1596
        %v2121 = vpack.c.b16 %v1605, %v1601
        %v2122 = vpack.c.b16 %v1606, %v1602
        %v2123 = vpack.c.b16 %v1607, %v1603
        %v2124 = vpack.c.b16 %v1608, %v1604
        %v2125 = vpack.c.b16 %v1613, %v1609
        %v2126 = vpack.c.b16 %v1614, %v1610
        %v2127 = vpack.c.b16 %v1615, %v1611
        %v2128 = vpack.c.b16 %v1616, %v1612
        %v2129 = vpack.c.b16 %v1621, %v1617
        %v2130 = vpack.c.b16 %v1622, %v1618
        %v2131 = vpack.c.b16 %v1623, %v1619
        %v2132 = vpack.c.b16 %v1624, %v1620
        %v2133 = vpack.c.b16 %v1629, %v1625
        %v2134 = vpack.c.b16 %v1630, %v1626
        %v2135 = vpack.c.b16 %v1631, %v1627
        %v2136 = vpack.c.b16 %v1632, %v1628
        %v2137 = vpack.c.b16 %v1637, %v1633
        %v2138 = vpack.c.b16 %v1638, %v1634
        %v2139 = vpack.c.b16 %v1639, %v1635
        %v2140 = vpack.c.b16 %v1640, %v1636
        %v2141 = vpack.c.b16 %v1645, %v1641
        %v2142 = vpack.c.b16 %v1646, %v1642
        %v2143 = vpack.c.b16 %v1647, %v1643
        %v2144 = vpack.c.b16 %v1648, %v1644
        %v2145 = vpack.c.b16 %v1653, %v1649
        %v2146 = vpack.c.b16 %v1654, %v1650
        %v2147 = vpack.c.b16 %v1655, %v1651
        %v2148 = vpack.c.b16 %v1656, %v1652
        %v2149 = vpack.c.b16 %v1661, %v1657
        %v2150 = vpack.c.b16 %v1662, %v1658
        %v2151 = vpack.c.b16 %v1663, %v1659
        %v2152 = vpack.c.b16 %v1664, %v1660
        %v2153 = vpack.c.b16 %v1669, %v1665
        %v2154 = vpack.c.b16 %v1670, %v1666
        %v2155 = vpack.c.b16 %v1671, %v1667
        %v2156 = vpack.c.b16 %v1672, %v1668
        %v2157 = vpack.c.b16 %v1677, %v1673
        %v2158 = vpack.c.b16 %v1678, %v1674
        %v2159 = vpack.c.b16 %v1679, %v1675
        %v2160 = vpack.c.b16 %v1680, %v1676
        %v2161 = vpack.c.b16 %v1685, %v1681
        %v2162 = vpack.c.b16 %v1686, %v1682
        %v2163 = vpack.c.b16 %v1687, %v1683
        %v2164 = vpack.c.b16 %v1688, %v1684
        %v2165 = vpack.c.b16 %v1693, %v1689
        %v2166 = vpack.c.b16 %v1694, %v1690
        %v2167 = vpack.c.b16 %v1695, %v1691
        %v2168 = vpack.c.b16 %v1696, %v1692
        %v2169 = vpack.c.b16 %v1701, %v1697
        %v2170 = vpack.c.b16 %v1702, %v1698
        %v2171 = vpack.c.b16 %v1703, %v1699
        %v2172 = vpack.c.b16 %v1704, %v1700
        %v2173 = vpack.c.b16 %v1709, %v1705
        %v2174 = vpack.c.b16 %v1710, %v1706
        %v2175 = vpack.c.b16 %v1711, %v1707
        %v2176 = vpack.c.b16 %v1712, %v1708
        %v2177 = vpack.c.b16 %v1717, %v1713
        %v2178 = vpack.c.b16 %v1718, %v1714
        %v2179 = vpack.c.b16 %v1719, %v1715
        %v2180 = vpack.c.b16 %v1720, %v1716
        %v2181 = vpack.c.b16 %v1725, %v1721
        %v2182 = vpack.c.b16 %v1726, %v1722
        %v2183 = vpack.c.b16 %v1727, %v1723
        %v2184 = vpack.c.b16 %v1728, %v1724
        %v2185 = vpack.c.b16 %v1733, %v1729
        %v2186 = vpack.c.b16 %v1734, %v1730
        %v2187 = vpack.c.b16 %v1735, %v1731
        %v2188 = vpack.c.b16 %v1736, %v1732
        %v2189 = vpack.c.b16 %v1741, %v1737
        %v2190 = vpack.c.b16 %v1742, %v1738
        %v2191 = vpack.c.b16 %v1743, %v1739
        %v2192 = vpack.c.b16 %v1744, %v1740
        %v2193 = vpack.c.b16 %v1749, %v1745
        %v2194 = vpack.c.b16 %v1750, %v1746
        %v2195 = vpack.c.b16 %v1751, %v1747
        %v2196 = vpack.c.b16 %v1752, %v1748
        %v2197 = vpack.c.b16 %v1757, %v1753
        %v2198 = vpack.c.b16 %v1758, %v1754
        %v2199 = vpack.c.b16 %v1759, %v1755
        %v2200 = vpack.c.b16 %v1760, %v1756
        %v2201 = vpack.c.b16 %v1765, %v1761
        %v2202 = vpack.c.b16 %v1766, %v1762
        %v2203 = vpack.c.b16 %v1767, %v1763
        %v2204 = vpack.c.b16 %v1768, %v1764
        %v2205 = vpack.c.b16 %v1773, %v1769
        %v2206 = vpack.c.b16 %v1774, %v1770
        %v2207 = vpack.c.b16 %v1775, %v1771
        %v2208 = vpack.c.b16 %v1776, %v1772
        %v2209 = vpack.c.b16 %v1781, %v1777
        %v2210 = vpack.c.b16 %v1782, %v1778
        %v2211 = vpack.c.b16 %v1783, %v1779
        %v2212 = vpack.c.b16 %v1784, %v1780
        %v2213 = vpack.c.b16 %v1789, %v1785
        %v2214 = vpack.c.b16 %v1790, %v1786
        %v2215 = vpack.c.b16 %v1791, %v1787
        %v2216 = vpack.c.b16 %v1792, %v1788
        %v2217 = vpack.c.b16 %v1797, %v1793
        %v2218 = vpack.c.b16 %v1798, %v1794
        %v2219 = vpack.c.b16 %v1799, %v1795
        %v2220 = vpack.c.b16 %v1800, %v1796
        %v2221 = vpack.c.b16 %v1805, %v1801
        %v2222 = vpack.c.b16 %v1806, %v1802
        %v2223 = vpack.c.b16 %v1807, %v1803
        %v2224 = vpack.c.b16 %v1808, %v1804
        %v2225 = vpack.c.b16 %v1813, %v1809
        %v2226 = vpack.c.b16 %v1814, %v1810
        %v2227 = vpack.c.b16 %v1815, %v1811
        %v2228 = vpack.c.b16 %v1816, %v1812
        %v2229 = vpack.c.b16 %v1821, %v1817
        %v2230 = vpack.c.b16 %v1822, %v1818
        %v2231 = vpack.c.b16 %v1823, %v1819
        %v2232 = vpack.c.b16 %v1824, %v1820
        %v2233 = vpack.c.b16 %v1829, %v1825
        %v2234 = vpack.c.b16 %v1830, %v1826
        %v2235 = vpack.c.b16 %v1831, %v1827
        %v2236 = vpack.c.b16 %v1832, %v1828
        %v2237 = vpack.c.b16 %v1837, %v1833
        %v2238 = vpack.c.b16 %v1838, %v1834
        %v2239 = vpack.c.b16 %v1839, %v1835
        %v2240 = vpack.c.b16 %v1840, %v1836
        %v2241 = vpack.c.b16 %v1845, %v1841
        %v2242 = vpack.c.b16 %v1846, %v1842
        %v2243 = vpack.c.b16 %v1847, %v1843
        %v2244 = vpack.c.b16 %v1848, %v1844
        %v2245 = vpack.c.b16 %v1849, %v1849
        %v2246 = vpack.c.b16 %v1850, %v1850
        %v2247 = vpack.c.b16 %v1851, %v1851
        %v2248 = vpack.c.b16 %v1852, %v1852
        %vm2641 = vcmask 293888
        %v2642 = vsel %vm2641, %v658, 0
        %vm2644 = vcmask 1041408
        %v2646 = vsel %vm2644, %v2245, 0
        %v2649 = vsel %vm2644, %v2246, 0
        %v2652 = vsel %vm2644, %v2247, 0
        %v2655 = vsel %vm2644, %v2248, 0
        %2657 = vmatpush.bf16.msra.mxu0 %v1881
        %2658 = vmatpush.bf16.msra.mxu0 %v1877
        %2659 = vmatpush.bf16.msra.mxu0 %v1873
        %2660 = vmatpush.bf16.msra.mxu0 %v1869
        %2661 = vmatpush.bf16.msra.mxu0 %v1865
        %2662 = vmatpush.bf16.msra.mxu0 %v1861
        %2663 = vmatpush.bf16.msra.mxu0 %v1857
        %2664 = vmatpush.bf16.msra.mxu0 %v1853
        %2665 = vmatmul.bf16.gmra.mxu0 %v644
        %v2666 = vpop.f32.mrf.mxu0
        %v2667 = vadd.f32 %v634, %v2666
        %v2668 = vpop.f32.mrf.mxu0
        %2669 = vdwg.mxu0
        %2670 = vmatpush.bf16.msra.mxu0 %v1913
        %2671 = vmatpush.bf16.msra.mxu0 %v1909
        %2672 = vmatpush.bf16.msra.mxu0 %v1905
        %2673 = vmatpush.bf16.msra.mxu0 %v1901
        %2674 = vmatpush.bf16.msra.mxu0 %v1897
        %2675 = vmatpush.bf16.msra.mxu0 %v1893
        %2676 = vmatpush.bf16.msra.mxu0 %v1889
        %2677 = vmatpush.bf16.msra.mxu0 %v1885
        %2678 = vmatmul.bf16.gmra.mxu0 %v645
        %v2679 = vpop.f32.mrf.mxu0
        %v2680 = vadd.f32 %v2667, %v2679
        %v2681 = vpop.f32.mrf.mxu0
        %2682 = vdwg.mxu0
        %2683 = vmatpush.bf16.msra.mxu0 %v1945
        %2684 = vmatpush.bf16.msra.mxu0 %v1941
        %2685 = vmatpush.bf16.msra.mxu0 %v1937
        %2686 = vmatpush.bf16.msra.mxu0 %v1933
        %2687 = vmatpush.bf16.msra.mxu0 %v1929
        %2688 = vmatpush.bf16.msra.mxu0 %v1925
        %2689 = vmatpush.bf16.msra.mxu0 %v1921
        %2690 = vmatpush.bf16.msra.mxu0 %v1917
        %2691 = vmatmul.bf16.gmra.mxu0 %v646
        %v2692 = vpop.f32.mrf.mxu0
        %v2693 = vadd.f32 %v2680, %v2692
        %v2694 = vpop.f32.mrf.mxu0
        %2695 = vdwg.mxu0
        %2696 = vmatpush.bf16.msra.mxu0 %v1977
        %2697 = vmatpush.bf16.msra.mxu0 %v1973
        %2698 = vmatpush.bf16.msra.mxu0 %v1969
        %2699 = vmatpush.bf16.msra.mxu0 %v1965
        %2700 = vmatpush.bf16.msra.mxu0 %v1961
        %2701 = vmatpush.bf16.msra.mxu0 %v1957
        %2702 = vmatpush.bf16.msra.mxu0 %v1953
        %2703 = vmatpush.bf16.msra.mxu0 %v1949
        %2704 = vmatmul.bf16.gmra.mxu0 %v647
        %v2705 = vpop.f32.mrf.mxu0
        %v2706 = vadd.f32 %v2693, %v2705
        %v2707 = vpop.f32.mrf.mxu0
        %2708 = vdwg.mxu0
        %2709 = vmatpush.bf16.msra.mxu0 %v2009
        %2710 = vmatpush.bf16.msra.mxu0 %v2005
        %2711 = vmatpush.bf16.msra.mxu0 %v2001
        %2712 = vmatpush.bf16.msra.mxu0 %v1997
        %2713 = vmatpush.bf16.msra.mxu0 %v1993
        %2714 = vmatpush.bf16.msra.mxu0 %v1989
        %2715 = vmatpush.bf16.msra.mxu0 %v1985
        %2716 = vmatpush.bf16.msra.mxu0 %v1981
        %2717 = vmatmul.bf16.gmra.mxu0 %v648
        %v2718 = vpop.f32.mrf.mxu0
        %v2719 = vadd.f32 %v2706, %v2718
        %v2720 = vpop.f32.mrf.mxu0
        %2721 = vdwg.mxu0
        %2722 = vmatpush.bf16.msra.mxu0 %v2041
        %2723 = vmatpush.bf16.msra.mxu0 %v2037
        %2724 = vmatpush.bf16.msra.mxu0 %v2033
        %2725 = vmatpush.bf16.msra.mxu0 %v2029
        %2726 = vmatpush.bf16.msra.mxu0 %v2025
        %2727 = vmatpush.bf16.msra.mxu0 %v2021
        %2728 = vmatpush.bf16.msra.mxu0 %v2017
        %2729 = vmatpush.bf16.msra.mxu0 %v2013
        %2730 = vmatmul.bf16.gmra.mxu0 %v649
        %v2731 = vpop.f32.mrf.mxu0
        %v2732 = vadd.f32 %v2719, %v2731
        %v2733 = vpop.f32.mrf.mxu0
        %2734 = vdwg.mxu0
        %2735 = vmatpush.bf16.msra.mxu0 %v2073
        %2736 = vmatpush.bf16.msra.mxu0 %v2069
        %2737 = vmatpush.bf16.msra.mxu0 %v2065
        %2738 = vmatpush.bf16.msra.mxu0 %v2061
        %2739 = vmatpush.bf16.msra.mxu0 %v2057
        %2740 = vmatpush.bf16.msra.mxu0 %v2053
        %2741 = vmatpush.bf16.msra.mxu0 %v2049
        %2742 = vmatpush.bf16.msra.mxu0 %v2045
        %2743 = vmatmul.bf16.gmra.mxu0 %v650
        %v2744 = vpop.f32.mrf.mxu0
        %v2745 = vadd.f32 %v2732, %v2744
        %v2746 = vpop.f32.mrf.mxu0
        %2747 = vdwg.mxu0
        %2748 = vmatpush.bf16.msra.mxu0 %v2105
        %2749 = vmatpush.bf16.msra.mxu0 %v2101
        %2750 = vmatpush.bf16.msra.mxu0 %v2097
        %2751 = vmatpush.bf16.msra.mxu0 %v2093
        %2752 = vmatpush.bf16.msra.mxu0 %v2089
        %2753 = vmatpush.bf16.msra.mxu0 %v2085
        %2754 = vmatpush.bf16.msra.mxu0 %v2081
        %2755 = vmatpush.bf16.msra.mxu0 %v2077
        %2756 = vmatmul.bf16.gmra.mxu0 %v651
        %v2757 = vpop.f32.mrf.mxu0
        %v2758 = vadd.f32 %v2745, %v2757
        %v2759 = vpop.f32.mrf.mxu0
        %2760 = vdwg.mxu0
        %2761 = vmatpush.bf16.msra.mxu0 %v2137
        %2762 = vmatpush.bf16.msra.mxu0 %v2133
        %2763 = vmatpush.bf16.msra.mxu0 %v2129
        %2764 = vmatpush.bf16.msra.mxu0 %v2125
        %2765 = vmatpush.bf16.msra.mxu0 %v2121
        %2766 = vmatpush.bf16.msra.mxu0 %v2117
        %2767 = vmatpush.bf16.msra.mxu0 %v2113
        %2768 = vmatpush.bf16.msra.mxu0 %v2109
        %2769 = vmatmul.bf16.gmra.mxu0 %v654
        %v2770 = vpop.f32.mrf.mxu0
        %v2771 = vadd.f32 %v2758, %v2770
        %v2772 = vpop.f32.mrf.mxu0
        %2773 = vdwg.mxu0
        %2774 = vmatpush.bf16.msra.mxu0 %v2169
        %2775 = vmatpush.bf16.msra.mxu0 %v2165
        %2776 = vmatpush.bf16.msra.mxu0 %v2161
        %2777 = vmatpush.bf16.msra.mxu0 %v2157
        %2778 = vmatpush.bf16.msra.mxu0 %v2153
        %2779 = vmatpush.bf16.msra.mxu0 %v2149
        %2780 = vmatpush.bf16.msra.mxu0 %v2145
        %2781 = vmatpush.bf16.msra.mxu0 %v2141
        %2782 = vmatmul.bf16.gmra.mxu0 %v655
        %v2783 = vpop.f32.mrf.mxu0
        %v2784 = vadd.f32 %v2771, %v2783
        %v2785 = vpop.f32.mrf.mxu0
        %2786 = vdwg.mxu0
        %2787 = vmatpush.bf16.msra.mxu0 %v2201
        %2788 = vmatpush.bf16.msra.mxu0 %v2197
        %2789 = vmatpush.bf16.msra.mxu0 %v2193
        %2790 = vmatpush.bf16.msra.mxu0 %v2189
        %2791 = vmatpush.bf16.msra.mxu0 %v2185
        %2792 = vmatpush.bf16.msra.mxu0 %v2181
        %2793 = vmatpush.bf16.msra.mxu0 %v2177
        %2794 = vmatpush.bf16.msra.mxu0 %v2173
        %2795 = vmatmul.bf16.gmra.mxu0 %v656
        %v2796 = vpop.f32.mrf.mxu0
        %v2797 = vadd.f32 %v2784, %v2796
        %v2798 = vpop.f32.mrf.mxu0
        %2799 = vdwg.mxu0
        %2800 = vmatpush.bf16.msra.mxu0 %v2233
        %2801 = vmatpush.bf16.msra.mxu0 %v2229
        %2802 = vmatpush.bf16.msra.mxu0 %v2225
        %2803 = vmatpush.bf16.msra.mxu0 %v2221
        %2804 = vmatpush.bf16.msra.mxu0 %v2217
        %2805 = vmatpush.bf16.msra.mxu0 %v2213
        %2806 = vmatpush.bf16.msra.mxu0 %v2209
        %2807 = vmatpush.bf16.msra.mxu0 %v2205
        %2808 = vmatmul.bf16.gmra.mxu0 %v657
        %v2809 = vpop.f32.mrf.mxu0
        %v2810 = vadd.f32 %v2797, %v2809
        %v2811 = vpop.f32.mrf.mxu0
        %2812 = vdwg.mxu0
        %2813 = vmatpush.bf16.msra.mxu0 0
        %2814 = vmatpush.bf16.msra.mxu0 0
        %2815 = vmatpush.bf16.msra.mxu0 0
        %2816 = vmatpush.bf16.msra.mxu0 0
        %2817 = vmatpush.bf16.msra.mxu0 0
        %2818 = vmatpush.bf16.msra.mxu0 %v2646
        %2819 = vmatpush.bf16.msra.mxu0 %v2241
        %2820 = vmatpush.bf16.msra.mxu0 %v2237
        %2821 = vmatmul.bf16.gmra.mxu0 %v2642
        %v2822 = vpop.f32.mrf.mxu0
        %v2823 = vadd.f32 %v2810, %v2822
        %v2824 = vpop.f32.mrf.mxu0
        %2825 = vdwg.mxu0
        %2826 = vmatpush.bf16.msra.mxu0 %v1882
        %2827 = vmatpush.bf16.msra.mxu0 %v1878
        %2828 = vmatpush.bf16.msra.mxu0 %v1874
        %2829 = vmatpush.bf16.msra.mxu0 %v1870
        %2830 = vmatpush.bf16.msra.mxu0 %v1866
        %2831 = vmatpush.bf16.msra.mxu0 %v1862
        %2832 = vmatpush.bf16.msra.mxu0 %v1858
        %2833 = vmatpush.bf16.msra.mxu0 %v1854
        %2834 = vmatmul.bf16.gmra.mxu0 %v644
        %v2835 = vpop.f32.mrf.mxu0
        %v2836 = vadd.f32 %v635, %v2835
        %v2837 = vpop.f32.mrf.mxu0
        %2838 = vdwg.mxu0
        %2839 = vmatpush.bf16.msra.mxu0 %v1914
        %2840 = vmatpush.bf16.msra.mxu0 %v1910
        %2841 = vmatpush.bf16.msra.mxu0 %v1906
        %2842 = vmatpush.bf16.msra.mxu0 %v1902
        %2843 = vmatpush.bf16.msra.mxu0 %v1898
        %2844 = vmatpush.bf16.msra.mxu0 %v1894
        %2845 = vmatpush.bf16.msra.mxu0 %v1890
        %2846 = vmatpush.bf16.msra.mxu0 %v1886
        %2847 = vmatmul.bf16.gmra.mxu0 %v645
        %v2848 = vpop.f32.mrf.mxu0
        %v2849 = vadd.f32 %v2836, %v2848
        %v2850 = vpop.f32.mrf.mxu0
        %2851 = vdwg.mxu0
        %2852 = vmatpush.bf16.msra.mxu0 %v1946
        %2853 = vmatpush.bf16.msra.mxu0 %v1942
        %2854 = vmatpush.bf16.msra.mxu0 %v1938
        %2855 = vmatpush.bf16.msra.mxu0 %v1934
        %2856 = vmatpush.bf16.msra.mxu0 %v1930
        %2857 = vmatpush.bf16.msra.mxu0 %v1926
        %2858 = vmatpush.bf16.msra.mxu0 %v1922
        %2859 = vmatpush.bf16.msra.mxu0 %v1918
        %2860 = vmatmul.bf16.gmra.mxu0 %v646
        %v2861 = vpop.f32.mrf.mxu0
        %v2862 = vadd.f32 %v2849, %v2861
        %v2863 = vpop.f32.mrf.mxu0
        %2864 = vdwg.mxu0
        %2865 = vmatpush.bf16.msra.mxu0 %v1978
        %2866 = vmatpush.bf16.msra.mxu0 %v1974
        %2867 = vmatpush.bf16.msra.mxu0 %v1970
        %2868 = vmatpush.bf16.msra.mxu0 %v1966
        %2869 = vmatpush.bf16.msra.mxu0 %v1962
        %2870 = vmatpush.bf16.msra.mxu0 %v1958
        %2871 = vmatpush.bf16.msra.mxu0 %v1954
        %2872 = vmatpush.bf16.msra.mxu0 %v1950
        %2873 = vmatmul.bf16.gmra.mxu0 %v647
        %v2874 = vpop.f32.mrf.mxu0
        %v2875 = vadd.f32 %v2862, %v2874
        %v2876 = vpop.f32.mrf.mxu0
        %2877 = vdwg.mxu0
        %2878 = vmatpush.bf16.msra.mxu0 %v2010
        %2879 = vmatpush.bf16.msra.mxu0 %v2006
        %2880 = vmatpush.bf16.msra.mxu0 %v2002
        %2881 = vmatpush.bf16.msra.mxu0 %v1998
        %2882 = vmatpush.bf16.msra.mxu0 %v1994
        %2883 = vmatpush.bf16.msra.mxu0 %v1990
        %2884 = vmatpush.bf16.msra.mxu0 %v1986
        %2885 = vmatpush.bf16.msra.mxu0 %v1982
        %2886 = vmatmul.bf16.gmra.mxu0 %v648
        %v2887 = vpop.f32.mrf.mxu0
        %v2888 = vadd.f32 %v2875, %v2887
        %v2889 = vpop.f32.mrf.mxu0
        %2890 = vdwg.mxu0
        %2891 = vmatpush.bf16.msra.mxu0 %v2042
        %2892 = vmatpush.bf16.msra.mxu0 %v2038
        %2893 = vmatpush.bf16.msra.mxu0 %v2034
        %2894 = vmatpush.bf16.msra.mxu0 %v2030
        %2895 = vmatpush.bf16.msra.mxu0 %v2026
        %2896 = vmatpush.bf16.msra.mxu0 %v2022
        %2897 = vmatpush.bf16.msra.mxu0 %v2018
        %2898 = vmatpush.bf16.msra.mxu0 %v2014
        %2899 = vmatmul.bf16.gmra.mxu0 %v649
        %v2900 = vpop.f32.mrf.mxu0
        %v2901 = vadd.f32 %v2888, %v2900
        %v2902 = vpop.f32.mrf.mxu0
        %2903 = vdwg.mxu0
        %2904 = vmatpush.bf16.msra.mxu0 %v2074
        %2905 = vmatpush.bf16.msra.mxu0 %v2070
        %2906 = vmatpush.bf16.msra.mxu0 %v2066
        %2907 = vmatpush.bf16.msra.mxu0 %v2062
        %2908 = vmatpush.bf16.msra.mxu0 %v2058
        %2909 = vmatpush.bf16.msra.mxu0 %v2054
        %2910 = vmatpush.bf16.msra.mxu0 %v2050
        %2911 = vmatpush.bf16.msra.mxu0 %v2046
        %2912 = vmatmul.bf16.gmra.mxu0 %v650
        %v2913 = vpop.f32.mrf.mxu0
        %v2914 = vadd.f32 %v2901, %v2913
        %v2915 = vpop.f32.mrf.mxu0
        %2916 = vdwg.mxu0
        %2917 = vmatpush.bf16.msra.mxu0 %v2106
        %2918 = vmatpush.bf16.msra.mxu0 %v2102
        %2919 = vmatpush.bf16.msra.mxu0 %v2098
        %2920 = vmatpush.bf16.msra.mxu0 %v2094
        %2921 = vmatpush.bf16.msra.mxu0 %v2090
        %2922 = vmatpush.bf16.msra.mxu0 %v2086
        %2923 = vmatpush.bf16.msra.mxu0 %v2082
        %2924 = vmatpush.bf16.msra.mxu0 %v2078
        %2925 = vmatmul.bf16.gmra.mxu0 %v651
        %v2926 = vpop.f32.mrf.mxu0
        %v2927 = vadd.f32 %v2914, %v2926
        %v2928 = vpop.f32.mrf.mxu0
        %2929 = vdwg.mxu0
        %2930 = vmatpush.bf16.msra.mxu0 %v2138
        %2931 = vmatpush.bf16.msra.mxu0 %v2134
        %2932 = vmatpush.bf16.msra.mxu0 %v2130
        %2933 = vmatpush.bf16.msra.mxu0 %v2126
        %2934 = vmatpush.bf16.msra.mxu0 %v2122
        %2935 = vmatpush.bf16.msra.mxu0 %v2118
        %2936 = vmatpush.bf16.msra.mxu0 %v2114
        %2937 = vmatpush.bf16.msra.mxu0 %v2110
        %2938 = vmatmul.bf16.gmra.mxu0 %v654
        %v2939 = vpop.f32.mrf.mxu0
        %v2940 = vadd.f32 %v2927, %v2939
        %v2941 = vpop.f32.mrf.mxu0
        %2942 = vdwg.mxu0
        %2943 = vmatpush.bf16.msra.mxu0 %v2170
        %2944 = vmatpush.bf16.msra.mxu0 %v2166
        %2945 = vmatpush.bf16.msra.mxu0 %v2162
        %2946 = vmatpush.bf16.msra.mxu0 %v2158
        %2947 = vmatpush.bf16.msra.mxu0 %v2154
        %2948 = vmatpush.bf16.msra.mxu0 %v2150
        %2949 = vmatpush.bf16.msra.mxu0 %v2146
        %2950 = vmatpush.bf16.msra.mxu0 %v2142
        %2951 = vmatmul.bf16.gmra.mxu0 %v655
        %v2952 = vpop.f32.mrf.mxu0
        %v2953 = vadd.f32 %v2940, %v2952
        %v2954 = vpop.f32.mrf.mxu0
        %2955 = vdwg.mxu0
        %2956 = vmatpush.bf16.msra.mxu0 %v2202
        %2957 = vmatpush.bf16.msra.mxu0 %v2198
        %2958 = vmatpush.bf16.msra.mxu0 %v2194
        %2959 = vmatpush.bf16.msra.mxu0 %v2190
        %2960 = vmatpush.bf16.msra.mxu0 %v2186
        %2961 = vmatpush.bf16.msra.mxu0 %v2182
        %2962 = vmatpush.bf16.msra.mxu0 %v2178
        %2963 = vmatpush.bf16.msra.mxu0 %v2174
        %2964 = vmatmul.bf16.gmra.mxu0 %v656
        %v2965 = vpop.f32.mrf.mxu0
        %v2966 = vadd.f32 %v2953, %v2965
        %v2967 = vpop.f32.mrf.mxu0
        %2968 = vdwg.mxu0
        %2969 = vmatpush.bf16.msra.mxu0 %v2234
        %2970 = vmatpush.bf16.msra.mxu0 %v2230
        %2971 = vmatpush.bf16.msra.mxu0 %v2226
        %2972 = vmatpush.bf16.msra.mxu0 %v2222
        %2973 = vmatpush.bf16.msra.mxu0 %v2218
        %2974 = vmatpush.bf16.msra.mxu0 %v2214
        %2975 = vmatpush.bf16.msra.mxu0 %v2210
        %2976 = vmatpush.bf16.msra.mxu0 %v2206
        %2977 = vmatmul.bf16.gmra.mxu0 %v657
        %v2978 = vpop.f32.mrf.mxu0
        %v2979 = vadd.f32 %v2966, %v2978
        %v2980 = vpop.f32.mrf.mxu0
        %2981 = vdwg.mxu0
        %2982 = vmatpush.bf16.msra.mxu0 0
        %2983 = vmatpush.bf16.msra.mxu0 0
        %2984 = vmatpush.bf16.msra.mxu0 0
        %2985 = vmatpush.bf16.msra.mxu0 0
        %2986 = vmatpush.bf16.msra.mxu0 0
        %2987 = vmatpush.bf16.msra.mxu0 %v2649
        %2988 = vmatpush.bf16.msra.mxu0 %v2242
        %2989 = vmatpush.bf16.msra.mxu0 %v2238
        %2990 = vmatmul.bf16.gmra.mxu0 %v2642
        %v2991 = vpop.f32.mrf.mxu0
        %v2992 = vadd.f32 %v2979, %v2991
        %v2993 = vpop.f32.mrf.mxu0
        %2994 = vdwg.mxu0
        %2995 = vmatpush.bf16.msra.mxu0 %v1883
        %2996 = vmatpush.bf16.msra.mxu0 %v1879
        %2997 = vmatpush.bf16.msra.mxu0 %v1875
        %2998 = vmatpush.bf16.msra.mxu0 %v1871
        %2999 = vmatpush.bf16.msra.mxu0 %v1867
        %3000 = vmatpush.bf16.msra.mxu0 %v1863
        %3001 = vmatpush.bf16.msra.mxu0 %v1859
        %3002 = vmatpush.bf16.msra.mxu0 %v1855
        %3003 = vmatmul.bf16.gmra.mxu0 %v644
        %v3004 = vpop.f32.mrf.mxu0
        %v3005 = vadd.f32 %v636, %v3004
        %v3006 = vpop.f32.mrf.mxu0
        %3007 = vdwg.mxu0
        %3008 = vmatpush.bf16.msra.mxu0 %v1915
        %3009 = vmatpush.bf16.msra.mxu0 %v1911
        %3010 = vmatpush.bf16.msra.mxu0 %v1907
        %3011 = vmatpush.bf16.msra.mxu0 %v1903
        %3012 = vmatpush.bf16.msra.mxu0 %v1899
        %3013 = vmatpush.bf16.msra.mxu0 %v1895
        %3014 = vmatpush.bf16.msra.mxu0 %v1891
        %3015 = vmatpush.bf16.msra.mxu0 %v1887
        %3016 = vmatmul.bf16.gmra.mxu0 %v645
        %v3017 = vpop.f32.mrf.mxu0
        %v3018 = vadd.f32 %v3005, %v3017
        %v3019 = vpop.f32.mrf.mxu0
        %3020 = vdwg.mxu0
        %3021 = vmatpush.bf16.msra.mxu0 %v1947
        %3022 = vmatpush.bf16.msra.mxu0 %v1943
        %3023 = vmatpush.bf16.msra.mxu0 %v1939
        %3024 = vmatpush.bf16.msra.mxu0 %v1935
        %3025 = vmatpush.bf16.msra.mxu0 %v1931
        %3026 = vmatpush.bf16.msra.mxu0 %v1927
        %3027 = vmatpush.bf16.msra.mxu0 %v1923
        %3028 = vmatpush.bf16.msra.mxu0 %v1919
        %3029 = vmatmul.bf16.gmra.mxu0 %v646
        %v3030 = vpop.f32.mrf.mxu0
        %v3031 = vadd.f32 %v3018, %v3030
        %v3032 = vpop.f32.mrf.mxu0
        %3033 = vdwg.mxu0
        %3034 = vmatpush.bf16.msra.mxu0 %v1979
        %3035 = vmatpush.bf16.msra.mxu0 %v1975
        %3036 = vmatpush.bf16.msra.mxu0 %v1971
        %3037 = vmatpush.bf16.msra.mxu0 %v1967
        %3038 = vmatpush.bf16.msra.mxu0 %v1963
        %3039 = vmatpush.bf16.msra.mxu0 %v1959
        %3040 = vmatpush.bf16.msra.mxu0 %v1955
        %3041 = vmatpush.bf16.msra.mxu0 %v1951
        %3042 = vmatmul.bf16.gmra.mxu0 %v647
        %v3043 = vpop.f32.mrf.mxu0
        %v3044 = vadd.f32 %v3031, %v3043
        %v3045 = vpop.f32.mrf.mxu0
        %3046 = vdwg.mxu0
        %3047 = vmatpush.bf16.msra.mxu0 %v2011
        %3048 = vmatpush.bf16.msra.mxu0 %v2007
        %3049 = vmatpush.bf16.msra.mxu0 %v2003
        %3050 = vmatpush.bf16.msra.mxu0 %v1999
        %3051 = vmatpush.bf16.msra.mxu0 %v1995
        %3052 = vmatpush.bf16.msra.mxu0 %v1991
        %3053 = vmatpush.bf16.msra.mxu0 %v1987
        %3054 = vmatpush.bf16.msra.mxu0 %v1983
        %3055 = vmatmul.bf16.gmra.mxu0 %v648
        %v3056 = vpop.f32.mrf.mxu0
        %v3057 = vadd.f32 %v3044, %v3056
        %v3058 = vpop.f32.mrf.mxu0
        %3059 = vdwg.mxu0
        %3060 = vmatpush.bf16.msra.mxu0 %v2043
        %3061 = vmatpush.bf16.msra.mxu0 %v2039
        %3062 = vmatpush.bf16.msra.mxu0 %v2035
        %3063 = vmatpush.bf16.msra.mxu0 %v2031
        %3064 = vmatpush.bf16.msra.mxu0 %v2027
        %3065 = vmatpush.bf16.msra.mxu0 %v2023
        %3066 = vmatpush.bf16.msra.mxu0 %v2019
        %3067 = vmatpush.bf16.msra.mxu0 %v2015
        %3068 = vmatmul.bf16.gmra.mxu0 %v649
        %v3069 = vpop.f32.mrf.mxu0
        %v3070 = vadd.f32 %v3057, %v3069
        %v3071 = vpop.f32.mrf.mxu0
        %3072 = vdwg.mxu0
        %3073 = vmatpush.bf16.msra.mxu0 %v2075
        %3074 = vmatpush.bf16.msra.mxu0 %v2071
        %3075 = vmatpush.bf16.msra.mxu0 %v2067
        %3076 = vmatpush.bf16.msra.mxu0 %v2063
        %3077 = vmatpush.bf16.msra.mxu0 %v2059
        %3078 = vmatpush.bf16.msra.mxu0 %v2055
        %3079 = vmatpush.bf16.msra.mxu0 %v2051
        %3080 = vmatpush.bf16.msra.mxu0 %v2047
        %3081 = vmatmul.bf16.gmra.mxu0 %v650
        %v3082 = vpop.f32.mrf.mxu0
        %v3083 = vadd.f32 %v3070, %v3082
        %v3084 = vpop.f32.mrf.mxu0
        %3085 = vdwg.mxu0
        %3086 = vmatpush.bf16.msra.mxu0 %v2107
        %3087 = vmatpush.bf16.msra.mxu0 %v2103
        %3088 = vmatpush.bf16.msra.mxu0 %v2099
        %3089 = vmatpush.bf16.msra.mxu0 %v2095
        %3090 = vmatpush.bf16.msra.mxu0 %v2091
        %3091 = vmatpush.bf16.msra.mxu0 %v2087
        %3092 = vmatpush.bf16.msra.mxu0 %v2083
        %3093 = vmatpush.bf16.msra.mxu0 %v2079
        %3094 = vmatmul.bf16.gmra.mxu0 %v651
        %v3095 = vpop.f32.mrf.mxu0
        %v3096 = vadd.f32 %v3083, %v3095
        %v3097 = vpop.f32.mrf.mxu0
        %3098 = vdwg.mxu0
        %3099 = vmatpush.bf16.msra.mxu0 %v2139
        %3100 = vmatpush.bf16.msra.mxu0 %v2135
        %3101 = vmatpush.bf16.msra.mxu0 %v2131
        %3102 = vmatpush.bf16.msra.mxu0 %v2127
        %3103 = vmatpush.bf16.msra.mxu0 %v2123
        %3104 = vmatpush.bf16.msra.mxu0 %v2119
        %3105 = vmatpush.bf16.msra.mxu0 %v2115
        %3106 = vmatpush.bf16.msra.mxu0 %v2111
        %3107 = vmatmul.bf16.gmra.mxu0 %v654
        %v3108 = vpop.f32.mrf.mxu0
        %v3109 = vadd.f32 %v3096, %v3108
        %v3110 = vpop.f32.mrf.mxu0
        %3111 = vdwg.mxu0
        %3112 = vmatpush.bf16.msra.mxu0 %v2171
        %3113 = vmatpush.bf16.msra.mxu0 %v2167
        %3114 = vmatpush.bf16.msra.mxu0 %v2163
        %3115 = vmatpush.bf16.msra.mxu0 %v2159
        %3116 = vmatpush.bf16.msra.mxu0 %v2155
        %3117 = vmatpush.bf16.msra.mxu0 %v2151
        %3118 = vmatpush.bf16.msra.mxu0 %v2147
        %3119 = vmatpush.bf16.msra.mxu0 %v2143
        %3120 = vmatmul.bf16.gmra.mxu0 %v655
        %v3121 = vpop.f32.mrf.mxu0
        %v3122 = vadd.f32 %v3109, %v3121
        %v3123 = vpop.f32.mrf.mxu0
        %3124 = vdwg.mxu0
        %3125 = vmatpush.bf16.msra.mxu0 %v2203
        %3126 = vmatpush.bf16.msra.mxu0 %v2199
        %3127 = vmatpush.bf16.msra.mxu0 %v2195
        %3128 = vmatpush.bf16.msra.mxu0 %v2191
        %3129 = vmatpush.bf16.msra.mxu0 %v2187
        %3130 = vmatpush.bf16.msra.mxu0 %v2183
        %3131 = vmatpush.bf16.msra.mxu0 %v2179
        %3132 = vmatpush.bf16.msra.mxu0 %v2175
        %3133 = vmatmul.bf16.gmra.mxu0 %v656
        %v3134 = vpop.f32.mrf.mxu0
        %v3135 = vadd.f32 %v3122, %v3134
        %v3136 = vpop.f32.mrf.mxu0
        %3137 = vdwg.mxu0
        %3138 = vmatpush.bf16.msra.mxu0 %v2235
        %3139 = vmatpush.bf16.msra.mxu0 %v2231
        %3140 = vmatpush.bf16.msra.mxu0 %v2227
        %3141 = vmatpush.bf16.msra.mxu0 %v2223
        %3142 = vmatpush.bf16.msra.mxu0 %v2219
        %3143 = vmatpush.bf16.msra.mxu0 %v2215
        %3144 = vmatpush.bf16.msra.mxu0 %v2211
        %3145 = vmatpush.bf16.msra.mxu0 %v2207
        %3146 = vmatmul.bf16.gmra.mxu0 %v657
        %v3147 = vpop.f32.mrf.mxu0
        %v3148 = vadd.f32 %v3135, %v3147
        %v3149 = vpop.f32.mrf.mxu0
        %3150 = vdwg.mxu0
        %3151 = vmatpush.bf16.msra.mxu0 0
        %3152 = vmatpush.bf16.msra.mxu0 0
        %3153 = vmatpush.bf16.msra.mxu0 0
        %3154 = vmatpush.bf16.msra.mxu0 0
        %3155 = vmatpush.bf16.msra.mxu0 0
        %3156 = vmatpush.bf16.msra.mxu0 %v2652
        %3157 = vmatpush.bf16.msra.mxu0 %v2243
        %3158 = vmatpush.bf16.msra.mxu0 %v2239
        %3159 = vmatmul.bf16.gmra.mxu0 %v2642
        %v3160 = vpop.f32.mrf.mxu0
        %v3161 = vadd.f32 %v3148, %v3160
        %v3162 = vpop.f32.mrf.mxu0
        %3163 = vdwg.mxu0
        %3164 = vmatpush.bf16.msra.mxu0 %v1884
        %3165 = vmatpush.bf16.msra.mxu0 %v1880
        %3166 = vmatpush.bf16.msra.mxu0 %v1876
        %3167 = vmatpush.bf16.msra.mxu0 %v1872
        %3168 = vmatpush.bf16.msra.mxu0 %v1868
        %3169 = vmatpush.bf16.msra.mxu0 %v1864
        %3170 = vmatpush.bf16.msra.mxu0 %v1860
        %3171 = vmatpush.bf16.msra.mxu0 %v1856
        %3172 = vmatmul.bf16.gmra.mxu0 %v644
        %v3173 = vpop.f32.mrf.mxu0
        %v3174 = vadd.f32 %v637, %v3173
        %v3175 = vpop.f32.mrf.mxu0
        %3176 = vdwg.mxu0
        %3177 = vmatpush.bf16.msra.mxu0 %v1916
        %3178 = vmatpush.bf16.msra.mxu0 %v1912
        %3179 = vmatpush.bf16.msra.mxu0 %v1908
        %3180 = vmatpush.bf16.msra.mxu0 %v1904
        %3181 = vmatpush.bf16.msra.mxu0 %v1900
        %3182 = vmatpush.bf16.msra.mxu0 %v1896
        %3183 = vmatpush.bf16.msra.mxu0 %v1892
        %3184 = vmatpush.bf16.msra.mxu0 %v1888
        %3185 = vmatmul.bf16.gmra.mxu0 %v645
        %v3186 = vpop.f32.mrf.mxu0
        %v3187 = vadd.f32 %v3174, %v3186
        %v3188 = vpop.f32.mrf.mxu0
        %3189 = vdwg.mxu0
        %3190 = vmatpush.bf16.msra.mxu0 %v1948
        %3191 = vmatpush.bf16.msra.mxu0 %v1944
        %3192 = vmatpush.bf16.msra.mxu0 %v1940
        %3193 = vmatpush.bf16.msra.mxu0 %v1936
        %3194 = vmatpush.bf16.msra.mxu0 %v1932
        %3195 = vmatpush.bf16.msra.mxu0 %v1928
        %3196 = vmatpush.bf16.msra.mxu0 %v1924
        %3197 = vmatpush.bf16.msra.mxu0 %v1920
        %3198 = vmatmul.bf16.gmra.mxu0 %v646
        %v3199 = vpop.f32.mrf.mxu0
        %v3200 = vadd.f32 %v3187, %v3199
        %v3201 = vpop.f32.mrf.mxu0
        %3202 = vdwg.mxu0
        %3203 = vmatpush.bf16.msra.mxu0 %v1980
        %3204 = vmatpush.bf16.msra.mxu0 %v1976
        %3205 = vmatpush.bf16.msra.mxu0 %v1972
        %3206 = vmatpush.bf16.msra.mxu0 %v1968
        %3207 = vmatpush.bf16.msra.mxu0 %v1964
        %3208 = vmatpush.bf16.msra.mxu0 %v1960
        %3209 = vmatpush.bf16.msra.mxu0 %v1956
        %3210 = vmatpush.bf16.msra.mxu0 %v1952
        %3211 = vmatmul.bf16.gmra.mxu0 %v647
        %v3212 = vpop.f32.mrf.mxu0
        %v3213 = vadd.f32 %v3200, %v3212
        %v3214 = vpop.f32.mrf.mxu0
        %3215 = vdwg.mxu0
        %3216 = vmatpush.bf16.msra.mxu0 %v2012
        %3217 = vmatpush.bf16.msra.mxu0 %v2008
        %3218 = vmatpush.bf16.msra.mxu0 %v2004
        %3219 = vmatpush.bf16.msra.mxu0 %v2000
        %3220 = vmatpush.bf16.msra.mxu0 %v1996
        %3221 = vmatpush.bf16.msra.mxu0 %v1992
        %3222 = vmatpush.bf16.msra.mxu0 %v1988
        %3223 = vmatpush.bf16.msra.mxu0 %v1984
        %3224 = vmatmul.bf16.gmra.mxu0 %v648
        %v3225 = vpop.f32.mrf.mxu0
        %v3226 = vadd.f32 %v3213, %v3225
        %v3227 = vpop.f32.mrf.mxu0
        %3228 = vdwg.mxu0
        %3229 = vmatpush.bf16.msra.mxu0 %v2044
        %3230 = vmatpush.bf16.msra.mxu0 %v2040
        %3231 = vmatpush.bf16.msra.mxu0 %v2036
        %3232 = vmatpush.bf16.msra.mxu0 %v2032
        %3233 = vmatpush.bf16.msra.mxu0 %v2028
        %3234 = vmatpush.bf16.msra.mxu0 %v2024
        %3235 = vmatpush.bf16.msra.mxu0 %v2020
        %3236 = vmatpush.bf16.msra.mxu0 %v2016
        %3237 = vmatmul.bf16.gmra.mxu0 %v649
        %v3238 = vpop.f32.mrf.mxu0
        %v3239 = vadd.f32 %v3226, %v3238
        %v3240 = vpop.f32.mrf.mxu0
        %3241 = vdwg.mxu0
        %3242 = vmatpush.bf16.msra.mxu0 %v2076
        %3243 = vmatpush.bf16.msra.mxu0 %v2072
        %3244 = vmatpush.bf16.msra.mxu0 %v2068
        %3245 = vmatpush.bf16.msra.mxu0 %v2064
        %3246 = vmatpush.bf16.msra.mxu0 %v2060
        %3247 = vmatpush.bf16.msra.mxu0 %v2056
        %3248 = vmatpush.bf16.msra.mxu0 %v2052
        %3249 = vmatpush.bf16.msra.mxu0 %v2048
        %3250 = vmatmul.bf16.gmra.mxu0 %v650
        %v3251 = vpop.f32.mrf.mxu0
        %v3252 = vadd.f32 %v3239, %v3251
        %v3253 = vpop.f32.mrf.mxu0
        %3254 = vdwg.mxu0
        %3255 = vmatpush.bf16.msra.mxu0 %v2108
        %3256 = vmatpush.bf16.msra.mxu0 %v2104
        %3257 = vmatpush.bf16.msra.mxu0 %v2100
        %3258 = vmatpush.bf16.msra.mxu0 %v2096
        %3259 = vmatpush.bf16.msra.mxu0 %v2092
        %3260 = vmatpush.bf16.msra.mxu0 %v2088
        %3261 = vmatpush.bf16.msra.mxu0 %v2084
        %3262 = vmatpush.bf16.msra.mxu0 %v2080
        %3263 = vmatmul.bf16.gmra.mxu0 %v651
        %v3264 = vpop.f32.mrf.mxu0
        %v3265 = vadd.f32 %v3252, %v3264
        %v3266 = vpop.f32.mrf.mxu0
        %3267 = vdwg.mxu0
        %3268 = vmatpush.bf16.msra.mxu0 %v2140
        %3269 = vmatpush.bf16.msra.mxu0 %v2136
        %3270 = vmatpush.bf16.msra.mxu0 %v2132
        %3271 = vmatpush.bf16.msra.mxu0 %v2128
        %3272 = vmatpush.bf16.msra.mxu0 %v2124
        %3273 = vmatpush.bf16.msra.mxu0 %v2120
        %3274 = vmatpush.bf16.msra.mxu0 %v2116
        %3275 = vmatpush.bf16.msra.mxu0 %v2112
        %3276 = vmatmul.bf16.gmra.mxu0 %v654
        %v3277 = vpop.f32.mrf.mxu0
        %v3278 = vadd.f32 %v3265, %v3277
        %v3279 = vpop.f32.mrf.mxu0
        %3280 = vdwg.mxu0
        %3281 = vmatpush.bf16.msra.mxu0 %v2172
        %3282 = vmatpush.bf16.msra.mxu0 %v2168
        %3283 = vmatpush.bf16.msra.mxu0 %v2164
        %3284 = vmatpush.bf16.msra.mxu0 %v2160
        %3285 = vmatpush.bf16.msra.mxu0 %v2156
        %3286 = vmatpush.bf16.msra.mxu0 %v2152
        %3287 = vmatpush.bf16.msra.mxu0 %v2148
        %3288 = vmatpush.bf16.msra.mxu0 %v2144
        %3289 = vmatmul.bf16.gmra.mxu0 %v655
        %v3290 = vpop.f32.mrf.mxu0
        %v3291 = vadd.f32 %v3278, %v3290
        %v3292 = vpop.f32.mrf.mxu0
        %3293 = vdwg.mxu0
        %3294 = vmatpush.bf16.msra.mxu0 %v2204
        %3295 = vmatpush.bf16.msra.mxu0 %v2200
        %3296 = vmatpush.bf16.msra.mxu0 %v2196
        %3297 = vmatpush.bf16.msra.mxu0 %v2192
        %3298 = vmatpush.bf16.msra.mxu0 %v2188
        %3299 = vmatpush.bf16.msra.mxu0 %v2184
        %3300 = vmatpush.bf16.msra.mxu0 %v2180
        %3301 = vmatpush.bf16.msra.mxu0 %v2176
        %3302 = vmatmul.bf16.gmra.mxu0 %v656
        %v3303 = vpop.f32.mrf.mxu0
        %v3304 = vadd.f32 %v3291, %v3303
        %v3305 = vpop.f32.mrf.mxu0
        %3306 = vdwg.mxu0
        %3307 = vmatpush.bf16.msra.mxu0 %v2236
        %3308 = vmatpush.bf16.msra.mxu0 %v2232
        %3309 = vmatpush.bf16.msra.mxu0 %v2228
        %3310 = vmatpush.bf16.msra.mxu0 %v2224
        %3311 = vmatpush.bf16.msra.mxu0 %v2220
        %3312 = vmatpush.bf16.msra.mxu0 %v2216
        %3313 = vmatpush.bf16.msra.mxu0 %v2212
        %3314 = vmatpush.bf16.msra.mxu0 %v2208
        %3315 = vmatmul.bf16.gmra.mxu0 %v657
        %v3316 = vpop.f32.mrf.mxu0
        %v3317 = vadd.f32 %v3304, %v3316
        %v3318 = vpop.f32.mrf.mxu0
        %3319 = vdwg.mxu0
        %3320 = vmatpush.bf16.msra.mxu0 0
        %3321 = vmatpush.bf16.msra.mxu0 0
        %3322 = vmatpush.bf16.msra.mxu0 0
        %3323 = vmatpush.bf16.msra.mxu0 0
        %3324 = vmatpush.bf16.msra.mxu0 0
        %3325 = vmatpush.bf16.msra.mxu0 %v2655
        %3326 = vmatpush.bf16.msra.mxu0 %v2244
        %3327 = vmatpush.bf16.msra.mxu0 %v2240
        %3328 = vmatmul.bf16.gmra.mxu0 %v2642
        %v3329 = vpop.f32.mrf.mxu0
        %v3330 = vadd.f32 %v3317, %v3329
        %v3331 = vpop.f32.mrf.mxu0
        %3332 = vdwg.mxu0
        %v3333 = vmax.f32 %v2823, 0.0
        %v3334 = vmax.f32 %v2992, 0.0
        %v3335 = vmax.f32 %v3161, 0.0
        %v3336 = vmax.f32 %v3330, 0.0
        %v3341 = vrot.slane %v3334, 6
        %v3342 = vrot.slane %v3335, 4
        %v3343 = vrot.slane %v3336, 2
        %v3344 = vsel %vm2644, %v3333, %v3341
        %vm3345 = vcmask 1045508
        %v3346 = vsel %vm3345, %v3342, %v3343
        %vm3347 = vcmask 1043456
        %v3348 = vsel %vm3347, %v3344, %v3346
        %3350 = vst [vmem:[%s233] sm:$0xff] %v3348
        %s3351 = smul.u32 4, %s20
        %p3352 = scmp.lt.s32.totalorder %s3351, 15
        %s3353 = scalar_select %p3352, %s3351, 15
        %s3354 = smul.addr %s3353, 2
        %s3355 = scalar_lea.vmem %s3, %s3354
        // Predicated region
        $region41: #{_lambda_.7} parent=31 // pred_check
          %p3356 = pneg %p111
        $region42: #{_lambda_.7} parent=31 // pred_check_branch
          %3358 = sbr.rel (%p3356) target = $region44
        $region43: #{_lambda_.7} parent=31 // pred_region
          %s3359 = smul.u32 4, %s20
        $region44: #{_lambda_.7} parent=31 // pred_fallthru
          _
      $region32: #{_lambda_.7} parent=5 // pred_fallthru
        _
      %p3360 = scmp.le.s32.totalorder 2, %s15
      // Predicated region
      $region45: #{_lambda_.7} parent=5 // pred_check
        %p3361 = pneg %p3360
      $region46: #{_lambda_.7} parent=5 // pred_check_branch
        %3363 = sbr.rel (%p3361) target = $region48
      $region47: #{_lambda_.7} parent=5 // pred_region
        %s3364 = ssub.s32 %s15, 2
        // Predicated region
        $region49: #{_lambda_.7} parent=47 // pred_check
          %p3365 = pneg %p117
        $region50: #{_lambda_.7} parent=47 // pred_check_branch
          %3367 = sbr.rel (%p3365) target = $region52
        $region51: #{_lambda_.7} parent=47 // pred_region
          %s3368 = smul.u32 4, %s21
          %p3369 = scmp.lt.s32.totalorder %s3368, 15
          %s3370 = scalar_select %p3369, %s3368, 15
          %s3371 = smul.addr %s3370, 2
          %s3372 = scalar_lea.vmem %s3, %s3371
        $region52: #{_lambda_.7} parent=47 // pred_fallthru
          _
      $region48: #{_lambda_.7} parent=5 // pred_fallthru
        _
    $region6: #{_lambda_.7} parent=1 // loop_footer
      %s19 = sadd.s32 1, %s15
    $region7: #{_lambda_.7} parent=1 // loop_footer_branch
      %14 = sbr.rel target = $region3
    $region8: #{_lambda_.7} parent=1 // loop_exit
      _
    %3373 = vsyncpa [#allocation3], 1
    %s3374 = scalar_lea.sflag [#allocation3], 1
    %3375 = vsyncpa %s3374, 1
    %3376 = vsyncpa [#allocation5], 1
    %s3377 = scalar_lea.sflag [#allocation5], 1
    %3378 = vsyncpa %s3377, 1

</llo_original>
